<compile_context>
chip_gen: v5e
topology: v5e:2x2
jax: 0.10.0
libtpu: 0.0.40
codegen_flags: <defaults>
</compile_context>

<pallas_src>
import math

import jax
import jax.numpy as jnp
from jax import lax
from jax.experimental import pallas as pl
from jax.experimental.pallas import tpu as pltpu


# ----------------------------------------------------------------------------
# In-kernel building block: conv3x3 (pre-padded bf16) + BN(batch stats) + ReLU
# + MaxPool2d(2)
# ----------------------------------------------------------------------------
def _conv_bn_relu_pool(pad_ref, w_ref, g_ref, be_ref, B, h, w, cin, cout):
    # pad_ref: (B, h+2, w+2, cin) bf16 (zero halo already present)
    # w_ref:   (9, cin, cout) bf16, tap index k = 3*dy + dx
    n = B * h * w

    def tap(dy, dx):
        win = pad_ref[:, dy:dy + h, dx:dx + w, :].reshape(n, cin)
        return jnp.dot(win, w_ref[3 * dy + dx],
                       preferred_element_type=jnp.float32)

    # 9 accumulating shifted matmuls (f32 accumulator) -- no im2col staging.
    acc = tap(0, 0)
    for dy in range(3):
        for dx in range(3):
            if dy == 0 and dx == 0:
                continue
            acc = acc + tap(dy, dx)

    # BatchNorm2d (training mode, biased variance).  Column sums go through the
    # MXU (ones-row matmuls) instead of XLU cross-sublane reductions; one pass
    # over acc, f32 accumulation, gamma/rsqrt folded into a single scale/shift.
    inv_n = 1.0 / n
    ones = jnp.ones((1, n), jnp.float32)
    s1 = jnp.dot(ones, acc, preferred_element_type=jnp.float32)        # (1, cout)
    s2 = jnp.dot(ones, acc * acc, preferred_element_type=jnp.float32)  # (1, cout)
    mean = s1 * inv_n
    var = s2 * inv_n - mean * mean
    scale = g_ref[...] * lax.rsqrt(var + 1e-5)
    shift = be_ref[...] - mean * scale
    y = jnp.maximum(acc * scale + shift, 0.0)                          # BN + ReLU

    # MaxPool2d(2).  Known-good reshape/max lowering.
    r = y.reshape(B, h, w, cout)
    r = r.reshape(B, h, w // 2, 2, cout).max(axis=3)
    r = r.reshape(B, h // 2, 2, w // 2, cout).max(axis=2)
    return r                                                           # (B, h//2, w//2, cout)


# ----------------------------------------------------------------------------
# Single fused kernel: layer1 + layer2 + fc1 + ReLU + fc2 + sigmoid
# ----------------------------------------------------------------------------
def _relation_network_kernel(xp_ref, w1_ref, g1_ref, be1_ref,
                             w2_ref, g2_ref, be2_ref,
                             fw1_ref, fb1_ref, fw2_ref, fb2_ref,
                             o_ref, pad2_ref):
    B = xp_ref.shape[0]
    H, W, Cin = xp_ref.shape[1] - 2, xp_ref.shape[2] - 2, xp_ref.shape[3]
    C1 = g1_ref.shape[-1]
    C2 = g2_ref.shape[-1]
    H2, W2 = H // 2, W // 2
    H4, W4 = H // 4, W // 4

    # ---- layer1: input is already zero-padded bf16 NHWC (done in wrapper) ----
    p1 = _conv_bn_relu_pool(xp_ref, w1_ref, g1_ref, be1_ref,
                            B, H, W, Cin, C1)                 # (B, H2, W2, C1) f32

    # ---- layer2: pad into a bf16 VMEM scratch (activation never leaves VMEM) -
    pad2_ref[...] = jnp.zeros_like(pad2_ref)
    pad2_ref[:, 1:H2 + 1, 1:W2 + 1, :] = p1.astype(jnp.bfloat16)
    p2 = _conv_bn_relu_pool(pad2_ref, w2_ref, g2_ref, be2_ref,
                            B, H2, W2, C1, C2)                # (B, H4, W4, C2) f32

    # ---- fc1 folded over spatial positions: no in-kernel flatten/concat ------
    # fw1_ref[k] is the (C2, hidden) column block matching NCHW flatten order
    # for spatial position k = i*W4 + j (permuted once at packing time).
    acc = jnp.dot(p2[:, 0, 0, :], fw1_ref[0], preferred_element_type=jnp.float32)
    for k in range(1, H4 * W4):
        i, j = divmod(k, W4)
        acc = acc + jnp.dot(p2[:, i, j, :], fw1_ref[k],
                            preferred_element_type=jnp.float32)
    hdn = jnp.maximum(acc + fb1_ref[...], 0.0)                # (B, hidden)

    # ---- fc2 (hidden -> 1) on the VPU, sigmoid via EUP approx reciprocal -----
    o = jnp.sum(hdn * fw2_ref[...], axis=-1, keepdims=True) + fb2_ref[...]
    o_ref[...] = pl.reciprocal(1.0 + jnp.exp(-o), approx=True)


# ----------------------------------------------------------------------------
# One-time parameter packing (hoisted out of the per-call path)
# ----------------------------------------------------------------------------
def pack_params(p, H, W):
    C1, Cin = p["cw1"].shape[0], p["cw1"].shape[1]
    C2 = p["cw2"].shape[0]
    H4, W4 = H // 4, W // 4
    hidden = p["fw1"].shape[0]
    bf16 = jnp.bfloat16

    # Conv weights: (Cout, Cin, 3, 3) -> (ky, kx, Cin, Cout) -> (9, Cin, Cout)
    # bf16; tap index k = 3*dy + dx matches the kernel's shifted-window loop.
    w1 = jnp.transpose(p["cw1"], (2, 3, 1, 0)).reshape(9, Cin, C1).astype(bf16)
    w2 = jnp.transpose(p["cw2"], (2, 3, 1, 0)).reshape(9, C1, C2).astype(bf16)
    # Conv biases intentionally dropped: cancelled by train-mode BN mean.

    # fc1 weight: torch flattens NCHW (col = c*H4*W4 + i*W4 + j).  Regroup the
    # columns into per-spatial-position (C2, hidden) blocks so the kernel can
    # consume NHWC activation slices directly.  Kept f32 (tiny matmuls).
    fw1 = (p["fw1"].reshape(hidden, C2, H4, W4)
                   .transpose(2, 3, 1, 0)
                   .reshape(H4 * W4, C2, hidden))

    return (w1, p["g1"].reshape(1, C1), p["be1"].reshape(1, C1),
            w2, p["g2"].reshape(1, C2), p["be2"].reshape(1, C2),
            fw1, p["fb1"].reshape(1, hidden), p["fw2"].reshape(1, hidden),
            p["fb2"].reshape(1, 1))


# ----------------------------------------------------------------------------
# Jitted forward: input prep (transpose + pad + bf16 cast) + single pallas_call
# ----------------------------------------------------------------------------
@jax.jit
def relation_network_forward(x_nchw, packed):
    (w1, g1, be1, w2, g2, be2, fw1, fb1, fw2, fb2) = packed
    B, Cin, H, W = x_nchw.shape
    C1 = g1.shape[-1]

    # NCHW -> NHWC, zero-pad the 3x3 halo, cast to bf16 -- once, outside the
    # kernel (removes the in-kernel zero-fill + masked interior store).
    xp = jnp.pad(jnp.transpose(x_nchw, (0, 2, 3, 1)),
                 ((0, 0), (1, 1), (1, 1), (0, 0))).astype(jnp.bfloat16)

    vmem = pl.BlockSpec(memory_space=pltpu.MemorySpace.VMEM)
    return pl.pallas_call(
        _relation_network_kernel,
        out_shape=jax.ShapeDtypeStruct((B, 1), jnp.float32),
        in_specs=[vmem] * 11,
        out_specs=vmem,
        scratch_shapes=[
            pltpu.VMEM((B, H // 2 + 2, W // 2 + 2, C1), jnp.bfloat16),  # padded layer2 input
        ],
    )(xp, w1, g1, be1, w2, g2, be2, fw1, fb1, fw2, fb2)


# ----------------------------------------------------------------------------
# Pure-JAX reference (mirrors the PyTorch module, train-mode BN, f32 HIGHEST)
# ----------------------------------------------------------------------------
def _reference_forward(x, p):
    def block(x, w, b, g, be):
        y = lax.conv_general_dilated(
            x, w, (1, 1), ((1, 1), (1, 1)),
            dimension_numbers=("NCHW", "OIHW", "NCHW"),
            precision=lax.Precision.HIGHEST)
        y = y + b[None, :, None, None]
        mean = y.mean(axis=(0, 2, 3), keepdims=True)
        var = ((y - mean) ** 2).mean(axis=(0, 2, 3), keepdims=True)
        y = (y - mean) / jnp.sqrt(var + 1e-5)
        y = y * g[None, :, None, None] + be[None, :, None, None]
        y = jnp.maximum(y, 0.0)
        Bc, C, Hh, Ww = y.shape
        return y.reshape(Bc, C, Hh // 2, 2, Ww // 2, 2).max(axis=(3, 5))

    y = block(x, p["cw1"], p["cb1"], p["g1"], p["be1"])
    y = block(y, p["cw2"], p["cb2"], p["g2"], p["be2"])
    y = y.reshape(y.shape[0], -1)
    h = jnp.maximum(y @ p["fw1"].T + p["fb1"], 0.0)
    return jax.nn.sigmoid(h @ p["fw2"].T + p["fb2"])


# ----------------------------------------------------------------------------
# Deterministic parameter init (shapes from RelationNetwork.__init__)
# ----------------------------------------------------------------------------
def init_params(key, input_size, hidden_size):
    ks = jax.random.split(key, 10)
    f32 = jnp.float32
    p = {}
    p["cw1"] = jax.random.normal(ks[0], (64, 128, 3, 3), f32) / math.sqrt(128 * 9)
    p["cb1"] = jax.random.normal(ks[1], (64,), f32) * 0.01
    p["g1"] = 1.0 + 0.1 * jax.random.normal(ks[2], (64,), f32)
    p["be1"] = 0.1 * jax.random.normal(ks[3], (64,), f32)
    p["cw2"] = jax.random.normal(ks[4], (64, 64, 3, 3), f32) / math.sqrt(64 * 9)
    p["cb2"] = jax.random.normal(ks[5], (64,), f32) * 0.01
    p["g2"] = 1.0 + 0.1 * jax.random.normal(ks[6], (64,), f32)
    p["be2"] = 0.1 * jax.random.normal(ks[7], (64,), f32)
    p["fw1"] = jax.random.normal(ks[8], (hidden_size, input_size), f32) / math.sqrt(input_size)
    p["fb1"] = jnp.zeros((hidden_size,), f32)
    p["fw2"] = jax.random.normal(ks[9], (1, hidden_size), f32) / math.sqrt(hidden_size)
    p["fb2"] = jnp.zeros((1,), f32)
    return p


if __name__ == "__main__":
    B, C, H, W = 2, 128, 8, 8               # 8 -> pool -> 4 -> pool -> 2
    input_size = 64 * (H // 4) * (W // 4)   # 64 * 2 * 2 = 256
    hidden_size = 8

    key = jax.random.PRNGKey(0)
    kx, kp = jax.random.split(key)
    x = jax.random.normal(kx, (B, C, H, W), jnp.float32)
    params = init_params(kp, input_size, hidden_size)

    packed = pack_params(params, H, W)      # one-time packing (not per forward)

    out = jax.block_until_ready(relation_network_forward(x, packed))
    assert out.shape == (B, 1), out.shape

    ref = jax.block_until_ready(_reference_forward(x, params))
    # bf16 MXU conv operands (f32 accumulation) + approx sigmoid reciprocal.
    assert jnp.allclose(out, ref, atol=1e-2, rtol=1e-2), (out, ref)

    print("KERNEL_OK")
</pallas_src>

<mosaic_0001>
module attributes {stable_mosaic.version = 11 : i64} {
  func.func @_relation_network_kernel(%arg0: memref<2x10x10x128xbf16, #tpu.memory_space<vmem>>, %arg1: memref<9x128x64xbf16, #tpu.memory_space<vmem>>, %arg2: memref<1x64xf32, #tpu.memory_space<vmem>>, %arg3: memref<1x64xf32, #tpu.memory_space<vmem>>, %arg4: memref<9x64x64xbf16, #tpu.memory_space<vmem>>, %arg5: memref<1x64xf32, #tpu.memory_space<vmem>>, %arg6: memref<1x64xf32, #tpu.memory_space<vmem>>, %arg7: memref<4x64x8xf32, #tpu.memory_space<vmem>>, %arg8: memref<1x8xf32, #tpu.memory_space<vmem>>, %arg9: memref<1x8xf32, #tpu.memory_space<vmem>>, %arg10: memref<1x1xf32, #tpu.memory_space<vmem>>, %arg11: memref<2x1xf32, #tpu.memory_space<vmem>>, %arg12: memref<2x6x6x64xbf16, #tpu.memory_space<vmem>>) attributes {dimension_semantics = [], scalar_prefetch = 0 : i64, scratch_operands = 1 : i64, tpu.core_type = #tpu.core_type<tc>} {
    %c0 = arith.constant 0 : index
    %c0_0 = arith.constant 0 : index
    %c0_1 = arith.constant 0 : index
    %c0_2 = arith.constant 0 : index
    %0 = vector.load %arg0[%c0, %c0_0, %c0_1, %c0_2] : memref<2x10x10x128xbf16, #tpu.memory_space<vmem>>, vector<2x8x8x128xbf16>
    %1 = vector.shape_cast %0 : vector<2x8x8x128xbf16> to vector<128x128xbf16>
    %c0_3 = arith.constant 0 : index
    %c0_4 = arith.constant 0 : index
    %c0_5 = arith.constant 0 : index
    %2 = vector.load %arg1[%c0_3, %c0_4, %c0_5] : memref<9x128x64xbf16, #tpu.memory_space<vmem>>, vector<1x128x64xbf16>
    %3 = vector.shape_cast %2 : vector<1x128x64xbf16> to vector<128x64xbf16>
    %cst = arith.constant dense<0.000000e+00> : vector<128x64xf32>
    %4 = tpu.matmul %1, %3, %cst {dimension_numbers = #tpu.dot_dimension_numbers<[1], [0], [0], [1], [0, 0, 1, 1], [], []>} : vector<128x128xbf16>, vector<128x64xbf16>, vector<128x64xf32> -> vector<128x64xf32>
    %c0_6 = arith.constant 0 : index
    %c0_7 = arith.constant 0 : index
    %c1 = arith.constant 1 : index
    %c0_8 = arith.constant 0 : index
    %5 = vector.load %arg0[%c0_6, %c0_7, %c1, %c0_8] : memref<2x10x10x128xbf16, #tpu.memory_space<vmem>>, vector<2x8x8x128xbf16>
    %6 = vector.shape_cast %5 : vector<2x8x8x128xbf16> to vector<128x128xbf16>
    %c1_9 = arith.constant 1 : index
    %c0_10 = arith.constant 0 : index
    %c0_11 = arith.constant 0 : index
    %7 = vector.load %arg1[%c1_9, %c0_10, %c0_11] : memref<9x128x64xbf16, #tpu.memory_space<vmem>>, vector<1x128x64xbf16>
    %8 = vector.shape_cast %7 : vector<1x128x64xbf16> to vector<128x64xbf16>
    %cst_12 = arith.constant dense<0.000000e+00> : vector<128x64xf32>
    %9 = tpu.matmul %6, %8, %cst_12 {dimension_numbers = #tpu.dot_dimension_numbers<[1], [0], [0], [1], [0, 0, 1, 1], [], []>} : vector<128x128xbf16>, vector<128x64xbf16>, vector<128x64xf32> -> vector<128x64xf32>
    %10 = arith.addf %4, %9 : vector<128x64xf32>
    %c0_13 = arith.constant 0 : index
    %c0_14 = arith.constant 0 : index
    %c2 = arith.constant 2 : index
    %c0_15 = arith.constant 0 : index
    %11 = vector.load %arg0[%c0_13, %c0_14, %c2, %c0_15] : memref<2x10x10x128xbf16, #tpu.memory_space<vmem>>, vector<2x8x8x128xbf16>
    %12 = vector.shape_cast %11 : vector<2x8x8x128xbf16> to vector<128x128xbf16>
    %c2_16 = arith.constant 2 : index
    %c0_17 = arith.constant 0 : index
    %c0_18 = arith.constant 0 : index
    %13 = vector.load %arg1[%c2_16, %c0_17, %c0_18] : memref<9x128x64xbf16, #tpu.memory_space<vmem>>, vector<1x128x64xbf16>
    %14 = vector.shape_cast %13 : vector<1x128x64xbf16> to vector<128x64xbf16>
    %cst_19 = arith.constant dense<0.000000e+00> : vector<128x64xf32>
    %15 = tpu.matmul %12, %14, %cst_19 {dimension_numbers = #tpu.dot_dimension_numbers<[1], [0], [0], [1], [0, 0, 1, 1], [], []>} : vector<128x128xbf16>, vector<128x64xbf16>, vector<128x64xf32> -> vector<128x64xf32>
    %16 = arith.addf %10, %15 : vector<128x64xf32>
    %c0_20 = arith.constant 0 : index
    %c1_21 = arith.constant 1 : index
    %c0_22 = arith.constant 0 : index
    %c0_23 = arith.constant 0 : index
    %17 = vector.load %arg0[%c0_20, %c1_21, %c0_22, %c0_23] : memref<2x10x10x128xbf16, #tpu.memory_space<vmem>>, vector<2x8x8x128xbf16>
    %18 = vector.shape_cast %17 : vector<2x8x8x128xbf16> to vector<128x128xbf16>
    %c3 = arith.constant 3 : index
    %c0_24 = arith.constant 0 : index
    %c0_25 = arith.constant 0 : index
    %19 = vector.load %arg1[%c3, %c0_24, %c0_25] : memref<9x128x64xbf16, #tpu.memory_space<vmem>>, vector<1x128x64xbf16>
    %20 = vector.shape_cast %19 : vector<1x128x64xbf16> to vector<128x64xbf16>
    %cst_26 = arith.constant dense<0.000000e+00> : vector<128x64xf32>
    %21 = tpu.matmul %18, %20, %cst_26 {dimension_numbers = #tpu.dot_dimension_numbers<[1], [0], [0], [1], [0, 0, 1, 1], [], []>} : vector<128x128xbf16>, vector<128x64xbf16>, vector<128x64xf32> -> vector<128x64xf32>
    %22 = arith.addf %16, %21 : vector<128x64xf32>
    %c0_27 = arith.constant 0 : index
    %c1_28 = arith.constant 1 : index
    %c1_29 = arith.constant 1 : index
    %c0_30 = arith.constant 0 : index
    %23 = vector.load %arg0[%c0_27, %c1_28, %c1_29, %c0_30] : memref<2x10x10x128xbf16, #tpu.memory_space<vmem>>, vector<2x8x8x128xbf16>
    %24 = vector.shape_cast %23 : vector<2x8x8x128xbf16> to vector<128x128xbf16>
    %c4 = arith.constant 4 : index
    %c0_31 = arith.constant 0 : index
    %c0_32 = arith.constant 0 : index
    %25 = vector.load %arg1[%c4, %c0_31, %c0_32] : memref<9x128x64xbf16, #tpu.memory_space<vmem>>, vector<1x128x64xbf16>
    %26 = vector.shape_cast %25 : vector<1x128x64xbf16> to vector<128x64xbf16>
    %cst_33 = arith.constant dense<0.000000e+00> : vector<128x64xf32>
    %27 = tpu.matmul %24, %26, %cst_33 {dimension_numbers = #tpu.dot_dimension_numbers<[1], [0], [0], [1], [0, 0, 1, 1], [], []>} : vector<128x128xbf16>, vector<128x64xbf16>, vector<128x64xf32> -> vector<128x64xf32>
    %28 = arith.addf %22, %27 : vector<128x64xf32>
    %c0_34 = arith.constant 0 : index
    %c1_35 = arith.constant 1 : index
    %c2_36 = arith.constant 2 : index
    %c0_37 = arith.constant 0 : index
    %29 = vector.load %arg0[%c0_34, %c1_35, %c2_36, %c0_37] : memref<2x10x10x128xbf16, #tpu.memory_space<vmem>>, vector<2x8x8x128xbf16>
    %30 = vector.shape_cast %29 : vector<2x8x8x128xbf16> to vector<128x128xbf16>
    %c5 = arith.constant 5 : index
    %c0_38 = arith.constant 0 : index
    %c0_39 = arith.constant 0 : index
    %31 = vector.load %arg1[%c5, %c0_38, %c0_39] : memref<9x128x64xbf16, #tpu.memory_space<vmem>>, vector<1x128x64xbf16>
    %32 = vector.shape_cast %31 : vector<1x128x64xbf16> to vector<128x64xbf16>
    %cst_40 = arith.constant dense<0.000000e+00> : vector<128x64xf32>
    %33 = tpu.matmul %30, %32, %cst_40 {dimension_numbers = #tpu.dot_dimension_numbers<[1], [0], [0], [1], [0, 0, 1, 1], [], []>} : vector<128x128xbf16>, vector<128x64xbf16>, vector<128x64xf32> -> vector<128x64xf32>
    %34 = arith.addf %28, %33 : vector<128x64xf32>
    %c0_41 = arith.constant 0 : index
    %c2_42 = arith.constant 2 : index
    %c0_43 = arith.constant 0 : index
    %c0_44 = arith.constant 0 : index
    %35 = vector.load %arg0[%c0_41, %c2_42, %c0_43, %c0_44] : memref<2x10x10x128xbf16, #tpu.memory_space<vmem>>, vector<2x8x8x128xbf16>
    %36 = vector.shape_cast %35 : vector<2x8x8x128xbf16> to vector<128x128xbf16>
    %c6 = arith.constant 6 : index
    %c0_45 = arith.constant 0 : index
    %c0_46 = arith.constant 0 : index
    %37 = vector.load %arg1[%c6, %c0_45, %c0_46] : memref<9x128x64xbf16, #tpu.memory_space<vmem>>, vector<1x128x64xbf16>
    %38 = vector.shape_cast %37 : vector<1x128x64xbf16> to vector<128x64xbf16>
    %cst_47 = arith.constant dense<0.000000e+00> : vector<128x64xf32>
    %39 = tpu.matmul %36, %38, %cst_47 {dimension_numbers = #tpu.dot_dimension_numbers<[1], [0], [0], [1], [0, 0, 1, 1], [], []>} : vector<128x128xbf16>, vector<128x64xbf16>, vector<128x64xf32> -> vector<128x64xf32>
    %40 = arith.addf %34, %39 : vector<128x64xf32>
    %c0_48 = arith.constant 0 : index
    %c2_49 = arith.constant 2 : index
    %c1_50 = arith.constant 1 : index
    %c0_51 = arith.constant 0 : index
    %41 = vector.load %arg0[%c0_48, %c2_49, %c1_50, %c0_51] : memref<2x10x10x128xbf16, #tpu.memory_space<vmem>>, vector<2x8x8x128xbf16>
    %42 = vector.shape_cast %41 : vector<2x8x8x128xbf16> to vector<128x128xbf16>
    %c7 = arith.constant 7 : index
    %c0_52 = arith.constant 0 : index
    %c0_53 = arith.constant 0 : index
    %43 = vector.load %arg1[%c7, %c0_52, %c0_53] : memref<9x128x64xbf16, #tpu.memory_space<vmem>>, vector<1x128x64xbf16>
    %44 = vector.shape_cast %43 : vector<1x128x64xbf16> to vector<128x64xbf16>
    %cst_54 = arith.constant dense<0.000000e+00> : vector<128x64xf32>
    %45 = tpu.matmul %42, %44, %cst_54 {dimension_numbers = #tpu.dot_dimension_numbers<[1], [0], [0], [1], [0, 0, 1, 1], [], []>} : vector<128x128xbf16>, vector<128x64xbf16>, vector<128x64xf32> -> vector<128x64xf32>
    %46 = arith.addf %40, %45 : vector<128x64xf32>
    %c0_55 = arith.constant 0 : index
    %c2_56 = arith.constant 2 : index
    %c2_57 = arith.constant 2 : index
    %c0_58 = arith.constant 0 : index
    %47 = vector.load %arg0[%c0_55, %c2_56, %c2_57, %c0_58] : memref<2x10x10x128xbf16, #tpu.memory_space<vmem>>, vector<2x8x8x128xbf16>
    %48 = vector.shape_cast %47 : vector<2x8x8x128xbf16> to vector<128x128xbf16>
    %c8 = arith.constant 8 : index
    %c0_59 = arith.constant 0 : index
    %c0_60 = arith.constant 0 : index
    %49 = vector.load %arg1[%c8, %c0_59, %c0_60] : memref<9x128x64xbf16, #tpu.memory_space<vmem>>, vector<1x128x64xbf16>
    %50 = vector.shape_cast %49 : vector<1x128x64xbf16> to vector<128x64xbf16>
    %cst_61 = arith.constant dense<0.000000e+00> : vector<128x64xf32>
    %51 = tpu.matmul %48, %50, %cst_61 {dimension_numbers = #tpu.dot_dimension_numbers<[1], [0], [0], [1], [0, 0, 1, 1], [], []>} : vector<128x128xbf16>, vector<128x64xbf16>, vector<128x64xf32> -> vector<128x64xf32>
    %52 = arith.addf %46, %51 : vector<128x64xf32>
    %cst_62 = arith.constant 1.000000e+00 : f32
    %53 = vector.broadcast %cst_62 : f32 to vector<1x128xf32>
    %cst_63 = arith.constant dense<0.000000e+00> : vector<1x64xf32>
    %54 = tpu.matmul %53, %52, %cst_63 {dimension_numbers = #tpu.dot_dimension_numbers<[1], [0], [0], [1], [0, 0, 1, 1], [], []>} : vector<1x128xf32>, vector<128x64xf32>, vector<1x64xf32> -> vector<1x64xf32>
    %55 = arith.mulf %52, %52 : vector<128x64xf32>
    %cst_64 = arith.constant dense<0.000000e+00> : vector<1x64xf32>
    %56 = tpu.matmul %53, %55, %cst_64 {dimension_numbers = #tpu.dot_dimension_numbers<[1], [0], [0], [1], [0, 0, 1, 1], [], []>} : vector<1x128xf32>, vector<128x64xf32>, vector<1x64xf32> -> vector<1x64xf32>
    %cst_65 = arith.constant 7.812500e-03 : f32
    %57 = vector.broadcast %cst_65 : f32 to vector<1x64xf32>
    %58 = arith.mulf %54, %57 : vector<1x64xf32>
    %cst_66 = arith.constant 7.812500e-03 : f32
    %59 = vector.broadcast %cst_66 : f32 to vector<1x64xf32>
    %60 = arith.mulf %56, %59 : vector<1x64xf32>
    %61 = arith.mulf %58, %58 : vector<1x64xf32>
    %62 = arith.subf %60, %61 : vector<1x64xf32>
    %c0_67 = arith.constant 0 : index
    %c0_68 = arith.constant 0 : index
    %63 = vector.load %arg2[%c0_67, %c0_68] : memref<1x64xf32, #tpu.memory_space<vmem>>, vector<1x64xf32>
    %cst_69 = arith.constant 9.99999974E-6 : f32
    %64 = vector.broadcast %cst_69 : f32 to vector<1x64xf32>
    %65 = arith.addf %62, %64 : vector<1x64xf32>
    %66 = math.rsqrt %65 : vector<1x64xf32>
    %67 = arith.mulf %63, %66 : vector<1x64xf32>
    %c0_70 = arith.constant 0 : index
    %c0_71 = arith.constant 0 : index
    %68 = vector.load %arg3[%c0_70, %c0_71] : memref<1x64xf32, #tpu.memory_space<vmem>>, vector<1x64xf32>
    %69 = arith.mulf %58, %67 : vector<1x64xf32>
    %70 = arith.subf %68, %69 : vector<1x64xf32>
    %71 = vector.broadcast %67 : vector<1x64xf32> to vector<128x64xf32>
    %72 = arith.mulf %52, %71 : vector<128x64xf32>
    %73 = vector.broadcast %70 : vector<1x64xf32> to vector<128x64xf32>
    %74 = arith.addf %72, %73 : vector<128x64xf32>
    %cst_72 = arith.constant 0.000000e+00 : f32
    %75 = vector.broadcast %cst_72 : f32 to vector<128x64xf32>
    %76 = arith.maximumf %74, %75 : vector<128x64xf32>
    %77 = vector.shape_cast %76 : vector<128x64xf32> to vector<2x8x8x64xf32>
    %78 = vector.shape_cast %77 : vector<2x8x8x64xf32> to vector<2x8x4x2x64xf32>
    %cst_73 = arith.constant dense<0xFF800000> : vector<2x8x4x64xf32>
    %79 = vector.multi_reduction <maximumf>, %78, %cst_73 [3] : vector<2x8x4x2x64xf32> to vector<2x8x4x64xf32>
    %80 = vector.shape_cast %79 : vector<2x8x4x64xf32> to vector<2x4x2x4x64xf32>
    %cst_74 = arith.constant dense<0xFF800000> : vector<2x4x4x64xf32>
    %81 = vector.multi_reduction <maximumf>, %80, %cst_74 [2] : vector<2x4x2x4x64xf32> to vector<2x4x4x64xf32>
    %cst_75 = arith.constant 0.000000e+00 : bf16
    %82 = vector.broadcast %cst_75 : bf16 to vector<2x6x6x64xbf16>
    %c0_76 = arith.constant 0 : index
    %c0_77 = arith.constant 0 : index
    %c0_78 = arith.constant 0 : index
    %c0_79 = arith.constant 0 : index
    %83 = vector.load %arg12[%c0_76, %c0_77, %c0_78, %c0_79] : memref<2x6x6x64xbf16, #tpu.memory_space<vmem>>, vector<2x6x6x64xbf16>
    tpu.vector_store %arg12[%c0_76, %c0_77, %c0_78, %c0_79], %82 {strides = array<i32>} : memref<2x6x6x64xbf16, #tpu.memory_space<vmem>>, vector<2x6x6x64xbf16>,
    %84 = arith.truncf %81 : vector<2x4x4x64xf32> to vector<2x4x4x64xbf16>
    %c0_80 = arith.constant 0 : index
    %c1_81 = arith.constant 1 : index
    %c1_82 = arith.constant 1 : index
    %c0_83 = arith.constant 0 : index
    %85 = vector.load %arg12[%c0_80, %c1_81, %c1_82, %c0_83] : memref<2x6x6x64xbf16, #tpu.memory_space<vmem>>, vector<2x4x4x64xbf16>
    tpu.vector_store %arg12[%c0_80, %c1_81, %c1_82, %c0_83], %84 {strides = array<i32>} : memref<2x6x6x64xbf16, #tpu.memory_space<vmem>>, vector<2x4x4x64xbf16>,
    %c0_84 = arith.constant 0 : index
    %c0_85 = arith.constant 0 : index
    %c0_86 = arith.constant 0 : index
    %c0_87 = arith.constant 0 : index
    %86 = vector.load %arg12[%c0_84, %c0_85, %c0_86, %c0_87] : memref<2x6x6x64xbf16, #tpu.memory_space<vmem>>, vector<2x4x4x64xbf16>
    %87 = vector.shape_cast %86 : vector<2x4x4x64xbf16> to vector<32x64xbf16>
    %c0_88 = arith.constant 0 : index
    %c0_89 = arith.constant 0 : index
    %c0_90 = arith.constant 0 : index
    %88 = vector.load %arg4[%c0_88, %c0_89, %c0_90] : memref<9x64x64xbf16, #tpu.memory_space<vmem>>, vector<1x64x64xbf16>
    %89 = vector.shape_cast %88 : vector<1x64x64xbf16> to vector<64x64xbf16>
    %cst_91 = arith.constant dense<0.000000e+00> : vector<32x64xf32>
    %90 = tpu.matmul %87, %89, %cst_91 {dimension_numbers = #tpu.dot_dimension_numbers<[1], [0], [0], [1], [0, 0, 1, 1], [], []>} : vector<32x64xbf16>, vector<64x64xbf16>, vector<32x64xf32> -> vector<32x64xf32>
    %c0_92 = arith.constant 0 : index
    %c0_93 = arith.constant 0 : index
    %c1_94 = arith.constant 1 : index
    %c0_95 = arith.constant 0 : index
    %91 = vector.load %arg12[%c0_92, %c0_93, %c1_94, %c0_95] : memref<2x6x6x64xbf16, #tpu.memory_space<vmem>>, vector<2x4x4x64xbf16>
    %92 = vector.shape_cast %91 : vector<2x4x4x64xbf16> to vector<32x64xbf16>
    %c1_96 = arith.constant 1 : index
    %c0_97 = arith.constant 0 : index
    %c0_98 = arith.constant 0 : index
    %93 = vector.load %arg4[%c1_96, %c0_97, %c0_98] : memref<9x64x64xbf16, #tpu.memory_space<vmem>>, vector<1x64x64xbf16>
    %94 = vector.shape_cast %93 : vector<1x64x64xbf16> to vector<64x64xbf16>
    %cst_99 = arith.constant dense<0.000000e+00> : vector<32x64xf32>
    %95 = tpu.matmul %92, %94, %cst_99 {dimension_numbers = #tpu.dot_dimension_numbers<[1], [0], [0], [1], [0, 0, 1, 1], [], []>} : vector<32x64xbf16>, vector<64x64xbf16>, vector<32x64xf32> -> vector<32x64xf32>
    %96 = arith.addf %90, %95 : vector<32x64xf32>
    %c0_100 = arith.constant 0 : index
    %c0_101 = arith.constant 0 : index
    %c2_102 = arith.constant 2 : index
    %c0_103 = arith.constant 0 : index
    %97 = vector.load %arg12[%c0_100, %c0_101, %c2_102, %c0_103] : memref<2x6x6x64xbf16, #tpu.memory_space<vmem>>, vector<2x4x4x64xbf16>
    %98 = vector.shape_cast %97 : vector<2x4x4x64xbf16> to vector<32x64xbf16>
    %c2_104 = arith.constant 2 : index
    %c0_105 = arith.constant 0 : index
    %c0_106 = arith.constant 0 : index
    %99 = vector.load %arg4[%c2_104, %c0_105, %c0_106] : memref<9x64x64xbf16, #tpu.memory_space<vmem>>, vector<1x64x64xbf16>
    %100 = vector.shape_cast %99 : vector<1x64x64xbf16> to vector<64x64xbf16>
    %cst_107 = arith.constant dense<0.000000e+00> : vector<32x64xf32>
    %101 = tpu.matmul %98, %100, %cst_107 {dimension_numbers = #tpu.dot_dimension_numbers<[1], [0], [0], [1], [0, 0, 1, 1], [], []>} : vector<32x64xbf16>, vector<64x64xbf16>, vector<32x64xf32> -> vector<32x64xf32>
    %102 = arith.addf %96, %101 : vector<32x64xf32>
    %c0_108 = arith.constant 0 : index
    %c1_109 = arith.constant 1 : index
    %c0_110 = arith.constant 0 : index
    %c0_111 = arith.constant 0 : index
    %103 = vector.load %arg12[%c0_108, %c1_109, %c0_110, %c0_111] : memref<2x6x6x64xbf16, #tpu.memory_space<vmem>>, vector<2x4x4x64xbf16>
    %104 = vector.shape_cast %103 : vector<2x4x4x64xbf16> to vector<32x64xbf16>
    %c3_112 = arith.constant 3 : index
    %c0_113 = arith.constant 0 : index
    %c0_114 = arith.constant 0 : index
    %105 = vector.load %arg4[%c3_112, %c0_113, %c0_114] : memref<9x64x64xbf16, #tpu.memory_space<vmem>>, vector<1x64x64xbf16>
    %106 = vector.shape_cast %105 : vector<1x64x64xbf16> to vector<64x64xbf16>
    %cst_115 = arith.constant dense<0.000000e+00> : vector<32x64xf32>
    %107 = tpu.matmul %104, %106, %cst_115 {dimension_numbers = #tpu.dot_dimension_numbers<[1], [0], [0], [1], [0, 0, 1, 1], [], []>} : vector<32x64xbf16>, vector<64x64xbf16>, vector<32x64xf32> -> vector<32x64xf32>
    %108 = arith.addf %102, %107 : vector<32x64xf32>
    %c0_116 = arith.constant 0 : index
    %c1_117 = arith.constant 1 : index
    %c1_118 = arith.constant 1 : index
    %c0_119 = arith.constant 0 : index
    %109 = vector.load %arg12[%c0_116, %c1_117, %c1_118, %c0_119] : memref<2x6x6x64xbf16, #tpu.memory_space<vmem>>, vector<2x4x4x64xbf16>
    %110 = vector.shape_cast %109 : vector<2x4x4x64xbf16> to vector<32x64xbf16>
    %c4_120 = arith.constant 4 : index
    %c0_121 = arith.constant 0 : index
    %c0_122 = arith.constant 0 : index
    %111 = vector.load %arg4[%c4_120, %c0_121, %c0_122] : memref<9x64x64xbf16, #tpu.memory_space<vmem>>, vector<1x64x64xbf16>
    %112 = vector.shape_cast %111 : vector<1x64x64xbf16> to vector<64x64xbf16>
    %cst_123 = arith.constant dense<0.000000e+00> : vector<32x64xf32>
    %113 = tpu.matmul %110, %112, %cst_123 {dimension_numbers = #tpu.dot_dimension_numbers<[1], [0], [0], [1], [0, 0, 1, 1], [], []>} : vector<32x64xbf16>, vector<64x64xbf16>, vector<32x64xf32> -> vector<32x64xf32>
    %114 = arith.addf %108, %113 : vector<32x64xf32>
    %c0_124 = arith.constant 0 : index
    %c1_125 = arith.constant 1 : index
    %c2_126 = arith.constant 2 : index
    %c0_127 = arith.constant 0 : index
    %115 = vector.load %arg12[%c0_124, %c1_125, %c2_126, %c0_127] : memref<2x6x6x64xbf16, #tpu.memory_space<vmem>>, vector<2x4x4x64xbf16>
    %116 = vector.shape_cast %115 : vector<2x4x4x64xbf16> to vector<32x64xbf16>
    %c5_128 = arith.constant 5 : index
    %c0_129 = arith.constant 0 : index
    %c0_130 = arith.constant 0 : index
    %117 = vector.load %arg4[%c5_128, %c0_129, %c0_130] : memref<9x64x64xbf16, #tpu.memory_space<vmem>>, vector<1x64x64xbf16>
    %118 = vector.shape_cast %117 : vector<1x64x64xbf16> to vector<64x64xbf16>
    %cst_131 = arith.constant dense<0.000000e+00> : vector<32x64xf32>
    %119 = tpu.matmul %116, %118, %cst_131 {dimension_numbers = #tpu.dot_dimension_numbers<[1], [0], [0], [1], [0, 0, 1, 1], [], []>} : vector<32x64xbf16>, vector<64x64xbf16>, vector<32x64xf32> -> vector<32x64xf32>
    %120 = arith.addf %114, %119 : vector<32x64xf32>
    %c0_132 = arith.constant 0 : index
    %c2_133 = arith.constant 2 : index
    %c0_134 = arith.constant 0 : index
    %c0_135 = arith.constant 0 : index
    %121 = vector.load %arg12[%c0_132, %c2_133, %c0_134, %c0_135] : memref<2x6x6x64xbf16, #tpu.memory_space<vmem>>, vector<2x4x4x64xbf16>
    %122 = vector.shape_cast %121 : vector<2x4x4x64xbf16> to vector<32x64xbf16>
    %c6_136 = arith.constant 6 : index
    %c0_137 = arith.constant 0 : index
    %c0_138 = arith.constant 0 : index
    %123 = vector.load %arg4[%c6_136, %c0_137, %c0_138] : memref<9x64x64xbf16, #tpu.memory_space<vmem>>, vector<1x64x64xbf16>
    %124 = vector.shape_cast %123 : vector<1x64x64xbf16> to vector<64x64xbf16>
    %cst_139 = arith.constant dense<0.000000e+00> : vector<32x64xf32>
    %125 = tpu.matmul %122, %124, %cst_139 {dimension_numbers = #tpu.dot_dimension_numbers<[1], [0], [0], [1], [0, 0, 1, 1], [], []>} : vector<32x64xbf16>, vector<64x64xbf16>, vector<32x64xf32> -> vector<32x64xf32>
    %126 = arith.addf %120, %125 : vector<32x64xf32>
    %c0_140 = arith.constant 0 : index
    %c2_141 = arith.constant 2 : index
    %c1_142 = arith.constant 1 : index
    %c0_143 = arith.constant 0 : index
    %127 = vector.load %arg12[%c0_140, %c2_141, %c1_142, %c0_143] : memref<2x6x6x64xbf16, #tpu.memory_space<vmem>>, vector<2x4x4x64xbf16>
    %128 = vector.shape_cast %127 : vector<2x4x4x64xbf16> to vector<32x64xbf16>
    %c7_144 = arith.constant 7 : index
    %c0_145 = arith.constant 0 : index
    %c0_146 = arith.constant 0 : index
    %129 = vector.load %arg4[%c7_144, %c0_145, %c0_146] : memref<9x64x64xbf16, #tpu.memory_space<vmem>>, vector<1x64x64xbf16>
    %130 = vector.shape_cast %129 : vector<1x64x64xbf16> to vector<64x64xbf16>
    %cst_147 = arith.constant dense<0.000000e+00> : vector<32x64xf32>
    %131 = tpu.matmul %128, %130, %cst_147 {dimension_numbers = #tpu.dot_dimension_numbers<[1], [0], [0], [1], [0, 0, 1, 1], [], []>} : vector<32x64xbf16>, vector<64x64xbf16>, vector<32x64xf32> -> vector<32x64xf32>
    %132 = arith.addf %126, %131 : vector<32x64xf32>
    %c0_148 = arith.constant 0 : index
    %c2_149 = arith.constant 2 : index
    %c2_150 = arith.constant 2 : index
    %c0_151 = arith.constant 0 : index
    %133 = vector.load %arg12[%c0_148, %c2_149, %c2_150, %c0_151] : memref<2x6x6x64xbf16, #tpu.memory_space<vmem>>, vector<2x4x4x64xbf16>
    %134 = vector.shape_cast %133 : vector<2x4x4x64xbf16> to vector<32x64xbf16>
    %c8_152 = arith.constant 8 : index
    %c0_153 = arith.constant 0 : index
    %c0_154 = arith.constant 0 : index
    %135 = vector.load %arg4[%c8_152, %c0_153, %c0_154] : memref<9x64x64xbf16, #tpu.memory_space<vmem>>, vector<1x64x64xbf16>
    %136 = vector.shape_cast %135 : vector<1x64x64xbf16> to vector<64x64xbf16>
    %cst_155 = arith.constant dense<0.000000e+00> : vector<32x64xf32>
    %137 = tpu.matmul %134, %136, %cst_155 {dimension_numbers = #tpu.dot_dimension_numbers<[1], [0], [0], [1], [0, 0, 1, 1], [], []>} : vector<32x64xbf16>, vector<64x64xbf16>, vector<32x64xf32> -> vector<32x64xf32>
    %138 = arith.addf %132, %137 : vector<32x64xf32>
    %cst_156 = arith.constant 1.000000e+00 : f32
    %139 = vector.broadcast %cst_156 : f32 to vector<1x32xf32>
    %cst_157 = arith.constant dense<0.000000e+00> : vector<1x64xf32>
    %140 = tpu.matmul %139, %138, %cst_157 {dimension_numbers = #tpu.dot_dimension_numbers<[1], [0], [0], [1], [0, 0, 1, 1], [], []>} : vector<1x32xf32>, vector<32x64xf32>, vector<1x64xf32> -> vector<1x64xf32>
    %141 = arith.mulf %138, %138 : vector<32x64xf32>
    %cst_158 = arith.constant dense<0.000000e+00> : vector<1x64xf32>
    %142 = tpu.matmul %139, %141, %cst_158 {dimension_numbers = #tpu.dot_dimension_numbers<[1], [0], [0], [1], [0, 0, 1, 1], [], []>} : vector<1x32xf32>, vector<32x64xf32>, vector<1x64xf32> -> vector<1x64xf32>
    %cst_159 = arith.constant 3.125000e-02 : f32
    %143 = vector.broadcast %cst_159 : f32 to vector<1x64xf32>
    %144 = arith.mulf %140, %143 : vector<1x64xf32>
    %cst_160 = arith.constant 3.125000e-02 : f32
    %145 = vector.broadcast %cst_160 : f32 to vector<1x64xf32>
    %146 = arith.mulf %142, %145 : vector<1x64xf32>
    %147 = arith.mulf %144, %144 : vector<1x64xf32>
    %148 = arith.subf %146, %147 : vector<1x64xf32>
    %c0_161 = arith.constant 0 : index
    %c0_162 = arith.constant 0 : index
    %149 = vector.load %arg5[%c0_161, %c0_162] : memref<1x64xf32, #tpu.memory_space<vmem>>, vector<1x64xf32>
    %cst_163 = arith.constant 9.99999974E-6 : f32
    %150 = vector.broadcast %cst_163 : f32 to vector<1x64xf32>
    %151 = arith.addf %148, %150 : vector<1x64xf32>
    %152 = math.rsqrt %151 : vector<1x64xf32>
    %153 = arith.mulf %149, %152 : vector<1x64xf32>
    %c0_164 = arith.constant 0 : index
    %c0_165 = arith.constant 0 : index
    %154 = vector.load %arg6[%c0_164, %c0_165] : memref<1x64xf32, #tpu.memory_space<vmem>>, vector<1x64xf32>
    %155 = arith.mulf %144, %153 : vector<1x64xf32>
    %156 = arith.subf %154, %155 : vector<1x64xf32>
    %157 = vector.broadcast %153 : vector<1x64xf32> to vector<32x64xf32>
    %158 = arith.mulf %138, %157 : vector<32x64xf32>
    %159 = vector.broadcast %156 : vector<1x64xf32> to vector<32x64xf32>
    %160 = arith.addf %158, %159 : vector<32x64xf32>
    %cst_166 = arith.constant 0.000000e+00 : f32
    %161 = vector.broadcast %cst_166 : f32 to vector<32x64xf32>
    %162 = arith.maximumf %160, %161 : vector<32x64xf32>
    %163 = vector.shape_cast %162 : vector<32x64xf32> to vector<2x4x4x64xf32>
    %164 = vector.shape_cast %163 : vector<2x4x4x64xf32> to vector<2x4x2x2x64xf32>
    %cst_167 = arith.constant dense<0xFF800000> : vector<2x4x2x64xf32>
    %165 = vector.multi_reduction <maximumf>, %164, %cst_167 [3] : vector<2x4x2x2x64xf32> to vector<2x4x2x64xf32>
    %166 = vector.shape_cast %165 : vector<2x4x2x64xf32> to vector<2x2x2x2x64xf32>
    %cst_168 = arith.constant dense<0xFF800000> : vector<2x2x2x64xf32>
    %167 = vector.multi_reduction <maximumf>, %166, %cst_168 [2] : vector<2x2x2x2x64xf32> to vector<2x2x2x64xf32>
    %168 = vector.extract_strided_slice %167 {offsets = [0, 0, 0, 0], sizes = [2, 1, 1, 64], strides = [1, 1, 1, 1]} : vector<2x2x2x64xf32> to vector<2x1x1x64xf32>
    %169 = vector.shape_cast %168 : vector<2x1x1x64xf32> to vector<2x64xf32>
    %c0_169 = arith.constant 0 : index
    %c0_170 = arith.constant 0 : index
    %c0_171 = arith.constant 0 : index
    %170 = vector.load %arg7[%c0_169, %c0_170, %c0_171] : memref<4x64x8xf32, #tpu.memory_space<vmem>>, vector<1x64x8xf32>
    %171 = vector.shape_cast %170 : vector<1x64x8xf32> to vector<64x8xf32>
    %cst_172 = arith.constant dense<0.000000e+00> : vector<2x8xf32>
    %172 = tpu.matmul %169, %171, %cst_172 {dimension_numbers = #tpu.dot_dimension_numbers<[1], [0], [0], [1], [0, 0, 1, 1], [], []>} : vector<2x64xf32>, vector<64x8xf32>, vector<2x8xf32> -> vector<2x8xf32>
    %173 = vector.extract_strided_slice %167 {offsets = [0, 0, 1, 0], sizes = [2, 1, 1, 64], strides = [1, 1, 1, 1]} : vector<2x2x2x64xf32> to vector<2x1x1x64xf32>
    %174 = vector.shape_cast %173 : vector<2x1x1x64xf32> to vector<2x64xf32>
    %c1_173 = arith.constant 1 : index
    %c0_174 = arith.constant 0 : index
    %c0_175 = arith.constant 0 : index
    %175 = vector.load %arg7[%c1_173, %c0_174, %c0_175] : memref<4x64x8xf32, #tpu.memory_space<vmem>>, vector<1x64x8xf32>
    %176 = vector.shape_cast %175 : vector<1x64x8xf32> to vector<64x8xf32>
    %cst_176 = arith.constant dense<0.000000e+00> : vector<2x8xf32>
    %177 = tpu.matmul %174, %176, %cst_176 {dimension_numbers = #tpu.dot_dimension_numbers<[1], [0], [0], [1], [0, 0, 1, 1], [], []>} : vector<2x64xf32>, vector<64x8xf32>, vector<2x8xf32> -> vector<2x8xf32>
    %178 = arith.addf %172, %177 : vector<2x8xf32>
    %179 = vector.extract_strided_slice %167 {offsets = [0, 1, 0, 0], sizes = [2, 1, 1, 64], strides = [1, 1, 1, 1]} : vector<2x2x2x64xf32> to vector<2x1x1x64xf32>
    %180 = vector.shape_cast %179 : vector<2x1x1x64xf32> to vector<2x64xf32>
    %c2_177 = arith.constant 2 : index
    %c0_178 = arith.constant 0 : index
    %c0_179 = arith.constant 0 : index
    %181 = vector.load %arg7[%c2_177, %c0_178, %c0_179] : memref<4x64x8xf32, #tpu.memory_space<vmem>>, vector<1x64x8xf32>
    %182 = vector.shape_cast %181 : vector<1x64x8xf32> to vector<64x8xf32>
    %cst_180 = arith.constant dense<0.000000e+00> : vector<2x8xf32>
    %183 = tpu.matmul %180, %182, %cst_180 {dimension_numbers = #tpu.dot_dimension_numbers<[1], [0], [0], [1], [0, 0, 1, 1], [], []>} : vector<2x64xf32>, vector<64x8xf32>, vector<2x8xf32> -> vector<2x8xf32>
    %184 = arith.addf %178, %183 : vector<2x8xf32>
    %185 = vector.extract_strided_slice %167 {offsets = [0, 1, 1, 0], sizes = [2, 1, 1, 64], strides = [1, 1, 1, 1]} : vector<2x2x2x64xf32> to vector<2x1x1x64xf32>
    %186 = vector.shape_cast %185 : vector<2x1x1x64xf32> to vector<2x64xf32>
    %c3_181 = arith.constant 3 : index
    %c0_182 = arith.constant 0 : index
    %c0_183 = arith.constant 0 : index
    %187 = vector.load %arg7[%c3_181, %c0_182, %c0_183] : memref<4x64x8xf32, #tpu.memory_space<vmem>>, vector<1x64x8xf32>
    %188 = vector.shape_cast %187 : vector<1x64x8xf32> to vector<64x8xf32>
    %cst_184 = arith.constant dense<0.000000e+00> : vector<2x8xf32>
    %189 = tpu.matmul %186, %188, %cst_184 {dimension_numbers = #tpu.dot_dimension_numbers<[1], [0], [0], [1], [0, 0, 1, 1], [], []>} : vector<2x64xf32>, vector<64x8xf32>, vector<2x8xf32> -> vector<2x8xf32>
    %190 = arith.addf %184, %189 : vector<2x8xf32>
    %c0_185 = arith.constant 0 : index
    %c0_186 = arith.constant 0 : index
    %191 = vector.load %arg8[%c0_185, %c0_186] : memref<1x8xf32, #tpu.memory_space<vmem>>, vector<1x8xf32>
    %192 = vector.broadcast %191 : vector<1x8xf32> to vector<2x8xf32>
    %193 = arith.addf %190, %192 : vector<2x8xf32>
    %cst_187 = arith.constant 0.000000e+00 : f32
    %194 = vector.broadcast %cst_187 : f32 to vector<2x8xf32>
    %195 = arith.maximumf %193, %194 : vector<2x8xf32>
    %c0_188 = arith.constant 0 : index
    %c0_189 = arith.constant 0 : index
    %196 = vector.load %arg9[%c0_188, %c0_189] : memref<1x8xf32, #tpu.memory_space<vmem>>, vector<1x8xf32>
    %197 = vector.broadcast %196 : vector<1x8xf32> to vector<2x8xf32>
    %198 = arith.mulf %195, %197 : vector<2x8xf32>
    %cst_190 = arith.constant dense<0.000000e+00> : vector<2xf32>
    %199 = vector.multi_reduction <add>, %198, %cst_190 [1] : vector<2x8xf32> to vector<2xf32>
    %200 = vector.shape_cast %199 : vector<2xf32> to vector<2x1xf32>
    %c0_191 = arith.constant 0 : index
    %c0_192 = arith.constant 0 : index
    %201 = vector.load %arg10[%c0_191, %c0_192] : memref<1x1xf32, #tpu.memory_space<vmem>>, vector<1x1xf32>
    %202 = vector.broadcast %201 : vector<1x1xf32> to vector<2x1xf32>
    %203 = arith.addf %200, %202 : vector<2x1xf32>
    %cst_193 = arith.constant 0.000000e+00 : f32
    %204 = vector.broadcast %cst_193 : f32 to vector<2x1xf32>
    %205 = arith.subf %204, %203 : vector<2x1xf32>
    %206 = math.exp %205 : vector<2x1xf32>
    %cst_194 = arith.constant 1.000000e+00 : f32
    %207 = vector.broadcast %cst_194 : f32 to vector<2x1xf32>
    %208 = arith.addf %207, %206 : vector<2x1xf32>
    %209 = tpu.reciprocal %208 {approx = true} : vector<2x1xf32> -> vector<2x1xf32>
    %c0_195 = arith.constant 0 : index
    %c0_196 = arith.constant 0 : index
    %210 = vector.load %arg11[%c0_195, %c0_196] : memref<2x1xf32, #tpu.memory_space<vmem>>, vector<2x1xf32>
    tpu.vector_store %arg11[%c0_195, %c0_196], %209 {strides = array<i32>} : memref<2x1xf32, #tpu.memory_space<vmem>>, vector<2x1xf32>,
    return
  }
}

</mosaic_0001>

<llo_original>
// kernel: relation_network_forward.1
$region0: #{relation_network_forward.1}
  #allocation0 [shape = 'u32[]', space=smem, size = 0x4, offset = 0x4, fixed_abs, tag = 'smem constant byte address 0x4 - core index']
  #allocation1 [shape = 'u32[72,128]{1,0:T(1,128)}', space=vmem, size = 0x9000, scoped, tag = 'internal scratch']
  #allocation2 [shape = 'bf16[2,6,6,64]{3,2,1,0:T(8,128)(2,1)}', space=vmem, size = 0x6000, scoped, tag = 'scratch operand']
  #allocation3 [shape = 'f32[1,1]{1,0:T(1,128)S(1)}', space=vmem, size = 0x200, scoped, tag = 'scoped memory for relation_network_forward.1']
  %s0 = inlined_call_operand.vmem [shape: bf16[2,10,10,128], index: 0, kind: input, shape index: {}]
  %s1 = inlined_call_operand.vmem [shape: bf16[9,128,64], index: 1, kind: input, shape index: {}]
  %s2 = inlined_call_operand.vmem [shape: f32[1,64], index: 2, kind: input, shape index: {}]
  %s3 = inlined_call_operand.vmem [shape: f32[1,64], index: 3, kind: input, shape index: {}]
  %s4 = inlined_call_operand.vmem [shape: bf16[9,64,64], index: 4, kind: input, shape index: {}]
  %s5 = inlined_call_operand.vmem [shape: f32[1,64], index: 5, kind: input, shape index: {}]
  %s6 = inlined_call_operand.vmem [shape: f32[1,64], index: 6, kind: input, shape index: {}]
  %s7 = inlined_call_operand.vmem [shape: f32[4,64,8], index: 7, kind: input, shape index: {}]
  %s8 = inlined_call_operand.vmem [shape: f32[1,8], index: 8, kind: input, shape index: {}]
  %s9 = inlined_call_operand.vmem [shape: f32[1,8], index: 9, kind: input, shape index: {}]
  %s10 = inlined_call_operand.<no memory space> [shape: f32[1,1], index: 10, kind: input, shape index: {}]
  %s11 = inlined_call_operand.vmem [shape: f32[2,1], index: 11, kind: output, shape index: {}]
  %s12 = sld [smem:[#allocation0]]
  $region54: #{relation_network_forward.1} parent=0
    _
  %s14 = ssub.s32 1, %s12
  %s15 = scalar_select 0, %s14, %s12
  %v16 = vstv %s10
  %17 = vst [vmem:[#allocation3] sm:$0x1] %v16
  // Predicated region
  $region2: #{relation_network_forward.1} parent=0 // pred_check
    _
  $region3: #{relation_network_forward.1} parent=0 // pred_check_branch
    %19 = sbr.rel (0) target = $region5
  $region4: #{relation_network_forward.1} parent=0 // pred_region
    _
  $region5: #{relation_network_forward.1} parent=0 // pred_fallthru
    _
  // Predicated region
  $region6: #{relation_network_forward.1} parent=0 // pred_check
    _
  $region7: #{relation_network_forward.1} parent=0 // pred_check_branch
    %21 = sbr.rel (0) target = $region9
  $region8: #{relation_network_forward.1} parent=0 // pred_region
    _
  $region9: #{relation_network_forward.1} parent=0 // pred_fallthru
    _
  // Predicated region
  $region10: #{relation_network_forward.1} parent=0 // pred_check
    _
  $region11: #{relation_network_forward.1} parent=0 // pred_check_branch
    %23 = sbr.rel (0) target = $region13
  $region12: #{relation_network_forward.1} parent=0 // pred_region
    _
  $region13: #{relation_network_forward.1} parent=0 // pred_fallthru
    _
  // Predicated region
  $region14: #{relation_network_forward.1} parent=0 // pred_check
    _
  $region15: #{relation_network_forward.1} parent=0 // pred_check_branch
    %25 = sbr.rel (0) target = $region17
  $region16: #{relation_network_forward.1} parent=0 // pred_region
    _
  $region17: #{relation_network_forward.1} parent=0 // pred_fallthru
    _
  // Predicated region
  $region18: #{relation_network_forward.1} parent=0 // pred_check
    _
  $region19: #{relation_network_forward.1} parent=0 // pred_check_branch
    %27 = sbr.rel (0) target = $region21
  $region20: #{relation_network_forward.1} parent=0 // pred_region
    _
  $region21: #{relation_network_forward.1} parent=0 // pred_fallthru
    _
  // Predicated region
  $region22: #{relation_network_forward.1} parent=0 // pred_check
    _
  $region23: #{relation_network_forward.1} parent=0 // pred_check_branch
    %29 = sbr.rel (0) target = $region25
  $region24: #{relation_network_forward.1} parent=0 // pred_region
    _
  $region25: #{relation_network_forward.1} parent=0 // pred_fallthru
    _
  // Predicated region
  $region26: #{relation_network_forward.1} parent=0 // pred_check
    _
  $region27: #{relation_network_forward.1} parent=0 // pred_check_branch
    %31 = sbr.rel (0) target = $region29
  $region28: #{relation_network_forward.1} parent=0 // pred_region
    _
  $region29: #{relation_network_forward.1} parent=0 // pred_fallthru
    _
  // Predicated region
  $region30: #{relation_network_forward.1} parent=0 // pred_check
    _
  $region31: #{relation_network_forward.1} parent=0 // pred_check_branch
    %33 = sbr.rel (0) target = $region33
  $region32: #{relation_network_forward.1} parent=0 // pred_region
    _
  $region33: #{relation_network_forward.1} parent=0 // pred_fallthru
    _
  // Predicated region
  $region34: #{relation_network_forward.1} parent=0 // pred_check
    _
  $region35: #{relation_network_forward.1} parent=0 // pred_check_branch
    %35 = sbr.rel (0) target = $region37
  $region36: #{relation_network_forward.1} parent=0 // pred_region
    _
  $region37: #{relation_network_forward.1} parent=0 // pred_fallthru
    _
  // Predicated region
  $region38: #{relation_network_forward.1} parent=0 // pred_check
    _
  $region39: #{relation_network_forward.1} parent=0 // pred_check_branch
    %37 = sbr.rel (0) target = $region41
  $region40: #{relation_network_forward.1} parent=0 // pred_region
    _
  $region41: #{relation_network_forward.1} parent=0 // pred_fallthru
    _
  // Predicated region
  $region42: #{relation_network_forward.1} parent=0 // pred_check
    _
  $region43: #{relation_network_forward.1} parent=0 // pred_check_branch
    %39 = sbr.rel (0) target = $region45
  $region44: #{relation_network_forward.1} parent=0 // pred_region
    _
  $region45: #{relation_network_forward.1} parent=0 // pred_fallthru
    _
  %v41 = vld [vmem:[%s0] sm:$0xf]
  %v42 = vld [vmem:[%s0 + $0x8] sm:$0xf]
  %v43 = vld [vmem:[%s0 + $0x10] sm:$0xf]
  %v44 = vld [vmem:[%s0 + $0x18] sm:$0xf]
  %v45 = vld [vmem:[%s0 + $0x20] sm:$0xf]
  %v46 = vld [vmem:[%s0 + $0x28] sm:$0xf]
  %v47 = vld [vmem:[%s0 + $0x30] sm:$0xf]
  %v48 = vld [vmem:[%s0 + $0x38] sm:$0xf]
  %v49 = vld [vmem:[%s0 + $0x50] sm:$0xf]
  %v50 = vld [vmem:[%s0 + $0x58] sm:$0xf]
  %v51 = vld [vmem:[%s0 + $0x60] sm:$0xf]
  %v52 = vld [vmem:[%s0 + $0x68] sm:$0xf]
  %v53 = vld [vmem:[%s0 + $0x70] sm:$0xf]
  %v54 = vld [vmem:[%s0 + $0x78] sm:$0xf]
  %v55 = vld [vmem:[%s0 + $0x80] sm:$0xf]
  %v56 = vld [vmem:[%s0 + $0x88] sm:$0xf]
  %v57 = vld [vmem:[%s1] sm:$0xf]
  %v58 = vld [vmem:[%s1 + $0x4] sm:$0xf]
  %v59 = vld [vmem:[%s1 + $0x8] sm:$0xf]
  %v60 = vld [vmem:[%s1 + $0xc] sm:$0xf]
  %v61 = vld [vmem:[%s1 + $0x10] sm:$0xf]
  %v62 = vld [vmem:[%s1 + $0x14] sm:$0xf]
  %v63 = vld [vmem:[%s1 + $0x18] sm:$0xf]
  %v64 = vld [vmem:[%s1 + $0x1c] sm:$0xf]
  %v65 = vld [vmem:[%s1 + $0x20] sm:$0xf]
  %v66 = vld [vmem:[%s1 + $0x24] sm:$0xf]
  %v67 = vld [vmem:[%s1 + $0x28] sm:$0xf]
  %v68 = vld [vmem:[%s1 + $0x2c] sm:$0xf]
  %v69 = vld [vmem:[%s1 + $0x30] sm:$0xf]
  %v70 = vld [vmem:[%s1 + $0x34] sm:$0xf]
  %v71 = vld [vmem:[%s1 + $0x38] sm:$0xf]
  %v72 = vld [vmem:[%s1 + $0x3c] sm:$0xf]
  %v73 = vld [vmem:[%s0 + $0x4] sm:$0x1]
  %v74 = vld [vmem:[%s0 + $0xc] sm:$0x1]
  %v75 = vld [vmem:[%s0 + $0x14] sm:$0x1]
  %v76 = vld [vmem:[%s0 + $0x1c] sm:$0x1]
  %v77 = vld [vmem:[%s0 + $0x24] sm:$0x1]
  %v78 = vld [vmem:[%s0 + $0x2c] sm:$0x1]
  %v79 = vld [vmem:[%s0 + $0x34] sm:$0x1]
  %v80 = vld [vmem:[%s0 + $0x3c] sm:$0x1]
  %v81 = vld [vmem:[%s0 + $0x54] sm:$0x1]
  %v82 = vld [vmem:[%s0 + $0x5c] sm:$0x1]
  %v83 = vld [vmem:[%s0 + $0x64] sm:$0x1]
  %v84 = vld [vmem:[%s0 + $0x6c] sm:$0x1]
  %v85 = vld [vmem:[%s0 + $0x74] sm:$0x1]
  %v86 = vld [vmem:[%s0 + $0x7c] sm:$0x1]
  %v87 = vld [vmem:[%s0 + $0x84] sm:$0x1]
  %v88 = vld [vmem:[%s0 + $0x8c] sm:$0x1]
  %vm89 = vsmask.f32 3328
  %vm90 = vsmask.f32 7440
  %vm91 = vmor %vm89, %vm90
  %v93 = vshrl.u32 %v41, 16
  %v95 = vrot.slane %v93, 4
  %v96 = vshll.u32 %v41, 16
  %v98 = vrot.slane %v96, 5
  %v99 = vor.u32 %v95, %v98
  %v100 = vrot.slane %v99, 4
  %v102 = vshll.u32 %v73, 16
  %v104 = vrot.slane %v102, 5
  %v105 = vsel %vm91, %v100, %v104
  %v107 = vshrl.u32 %v42, 16
  %v109 = vrot.slane %v107, 4
  %v110 = vshll.u32 %v42, 16
  %v112 = vrot.slane %v110, 5
  %v113 = vor.u32 %v109, %v112
  %v114 = vrot.slane %v113, 4
  %v116 = vshll.u32 %v74, 16
  %v118 = vrot.slane %v116, 5
  %v119 = vsel %vm91, %v114, %v118
  %v121 = vshrl.u32 %v43, 16
  %v123 = vrot.slane %v121, 4
  %v124 = vshll.u32 %v43, 16
  %v126 = vrot.slane %v124, 5
  %v127 = vor.u32 %v123, %v126
  %v128 = vrot.slane %v127, 4
  %v130 = vshll.u32 %v75, 16
  %v132 = vrot.slane %v130, 5
  %v133 = vsel %vm91, %v128, %v132
  %v135 = vshrl.u32 %v44, 16
  %v137 = vrot.slane %v135, 4
  %v138 = vshll.u32 %v44, 16
  %v140 = vrot.slane %v138, 5
  %v141 = vor.u32 %v137, %v140
  %v142 = vrot.slane %v141, 4
  %v144 = vshll.u32 %v76, 16
  %v146 = vrot.slane %v144, 5
  %v147 = vsel %vm91, %v142, %v146
  %v149 = vshrl.u32 %v45, 16
  %v151 = vrot.slane %v149, 4
  %v152 = vshll.u32 %v45, 16
  %v154 = vrot.slane %v152, 5
  %v155 = vor.u32 %v151, %v154
  %v156 = vrot.slane %v155, 4
  %v158 = vshll.u32 %v77, 16
  %v160 = vrot.slane %v158, 5
  %v161 = vsel %vm91, %v156, %v160
  %v163 = vshrl.u32 %v46, 16
  %v165 = vrot.slane %v163, 4
  %v166 = vshll.u32 %v46, 16
  %v168 = vrot.slane %v166, 5
  %v169 = vor.u32 %v165, %v168
  %v170 = vrot.slane %v169, 4
  %v172 = vshll.u32 %v78, 16
  %v174 = vrot.slane %v172, 5
  %v175 = vsel %vm91, %v170, %v174
  %v177 = vshrl.u32 %v47, 16
  %v179 = vrot.slane %v177, 4
  %v180 = vshll.u32 %v47, 16
  %v182 = vrot.slane %v180, 5
  %v183 = vor.u32 %v179, %v182
  %v184 = vrot.slane %v183, 4
  %v186 = vshll.u32 %v79, 16
  %v188 = vrot.slane %v186, 5
  %v189 = vsel %vm91, %v184, %v188
  %v191 = vshrl.u32 %v48, 16
  %v193 = vrot.slane %v191, 4
  %v194 = vshll.u32 %v48, 16
  %v196 = vrot.slane %v194, 5
  %v197 = vor.u32 %v193, %v196
  %v198 = vrot.slane %v197, 4
  %v200 = vshll.u32 %v80, 16
  %v202 = vrot.slane %v200, 5
  %v203 = vsel %vm91, %v198, %v202
  %v205 = vshrl.u32 %v49, 16
  %v207 = vrot.slane %v205, 4
  %v208 = vshll.u32 %v49, 16
  %v210 = vrot.slane %v208, 5
  %v211 = vor.u32 %v207, %v210
  %v212 = vrot.slane %v211, 4
  %v214 = vshll.u32 %v81, 16
  %v216 = vrot.slane %v214, 5
  %v217 = vsel %vm91, %v212, %v216
  %v219 = vshrl.u32 %v50, 16
  %v221 = vrot.slane %v219, 4
  %v222 = vshll.u32 %v50, 16
  %v224 = vrot.slane %v222, 5
  %v225 = vor.u32 %v221, %v224
  %v226 = vrot.slane %v225, 4
  %v228 = vshll.u32 %v82, 16
  %v230 = vrot.slane %v228, 5
  %v231 = vsel %vm91, %v226, %v230
  %v233 = vshrl.u32 %v51, 16
  %v235 = vrot.slane %v233, 4
  %v236 = vshll.u32 %v51, 16
  %v238 = vrot.slane %v236, 5
  %v239 = vor.u32 %v235, %v238
  %v240 = vrot.slane %v239, 4
  %v242 = vshll.u32 %v83, 16
  %v244 = vrot.slane %v242, 5
  %v245 = vsel %vm91, %v240, %v244
  %v247 = vshrl.u32 %v52, 16
  %v249 = vrot.slane %v247, 4
  %v250 = vshll.u32 %v52, 16
  %v252 = vrot.slane %v250, 5
  %v253 = vor.u32 %v249, %v252
  %v254 = vrot.slane %v253, 4
  %v256 = vshll.u32 %v84, 16
  %v258 = vrot.slane %v256, 5
  %v259 = vsel %vm91, %v254, %v258
  %v261 = vshrl.u32 %v53, 16
  %v263 = vrot.slane %v261, 4
  %v264 = vshll.u32 %v53, 16
  %v266 = vrot.slane %v264, 5
  %v267 = vor.u32 %v263, %v266
  %v268 = vrot.slane %v267, 4
  %v270 = vshll.u32 %v85, 16
  %v272 = vrot.slane %v270, 5
  %v273 = vsel %vm91, %v268, %v272
  %v275 = vshrl.u32 %v54, 16
  %v277 = vrot.slane %v275, 4
  %v278 = vshll.u32 %v54, 16
  %v280 = vrot.slane %v278, 5
  %v281 = vor.u32 %v277, %v280
  %v282 = vrot.slane %v281, 4
  %v284 = vshll.u32 %v86, 16
  %v286 = vrot.slane %v284, 5
  %v287 = vsel %vm91, %v282, %v286
  %v289 = vshrl.u32 %v55, 16
  %v291 = vrot.slane %v289, 4
  %v292 = vshll.u32 %v55, 16
  %v294 = vrot.slane %v292, 5
  %v295 = vor.u32 %v291, %v294
  %v296 = vrot.slane %v295, 4
  %v298 = vshll.u32 %v87, 16
  %v300 = vrot.slane %v298, 5
  %v301 = vsel %vm91, %v296, %v300
  %v303 = vshrl.u32 %v56, 16
  %v305 = vrot.slane %v303, 4
  %v306 = vshll.u32 %v56, 16
  %v308 = vrot.slane %v306, 5
  %v309 = vor.u32 %v305, %v308
  %v310 = vrot.slane %v309, 4
  %v312 = vshll.u32 %v88, 16
  %v314 = vrot.slane %v312, 5
  %v315 = vsel %vm91, %v310, %v314
  %s316 = scalar_lea.vmem %s1, 64
  %v317 = vld [vmem:[%s316] sm:$0xf]
  %v318 = vld [vmem:[%s316 + $0x4] sm:$0xf]
  %v319 = vld [vmem:[%s316 + $0x8] sm:$0xf]
  %v320 = vld [vmem:[%s316 + $0xc] sm:$0xf]
  %v321 = vld [vmem:[%s316 + $0x10] sm:$0xf]
  %v322 = vld [vmem:[%s316 + $0x14] sm:$0xf]
  %v323 = vld [vmem:[%s316 + $0x18] sm:$0xf]
  %v324 = vld [vmem:[%s316 + $0x1c] sm:$0xf]
  %v325 = vld [vmem:[%s316 + $0x20] sm:$0xf]
  %v326 = vld [vmem:[%s316 + $0x24] sm:$0xf]
  %v327 = vld [vmem:[%s316 + $0x28] sm:$0xf]
  %v328 = vld [vmem:[%s316 + $0x2c] sm:$0xf]
  %v329 = vld [vmem:[%s316 + $0x30] sm:$0xf]
  %v330 = vld [vmem:[%s316 + $0x34] sm:$0xf]
  %v331 = vld [vmem:[%s316 + $0x38] sm:$0xf]
  %v332 = vld [vmem:[%s316 + $0x3c] sm:$0xf]
  %v333 = vunpack.c.l.b16 %v105
  %v334 = vunpack.c.l.b16 %v119
  %v335 = vunpack.c.l.b16 %v133
  %v336 = vunpack.c.l.b16 %v147
  %v337 = vunpack.c.l.b16 %v161
  %v338 = vunpack.c.l.b16 %v175
  %v339 = vunpack.c.l.b16 %v189
  %v340 = vunpack.c.l.b16 %v203
  %v341 = vunpack.c.l.b16 %v217
  %v342 = vunpack.c.l.b16 %v231
  %v343 = vunpack.c.l.b16 %v245
  %v344 = vunpack.c.l.b16 %v259
  %v345 = vunpack.c.l.b16 %v273
  %v346 = vunpack.c.l.b16 %v287
  %v347 = vunpack.c.l.b16 %v301
  %v348 = vunpack.c.l.b16 %v315
  %v349 = vpack.c.b16 %v334, %v333
  %v350 = vpack.c.b16 %v336, %v335
  %v351 = vpack.c.b16 %v338, %v337
  %v352 = vpack.c.b16 %v340, %v339
  %v353 = vpack.c.b16 %v342, %v341
  %v354 = vpack.c.b16 %v344, %v343
  %v355 = vpack.c.b16 %v346, %v345
  %v356 = vpack.c.b16 %v348, %v347
  %v381 = vunpack.c.l.b16 %v317
  %v382 = vunpack.c.l.b16 %v318
  %v383 = vunpack.c.l.b16 %v319
  %v384 = vunpack.c.l.b16 %v320
  %v385 = vunpack.c.l.b16 %v321
  %v386 = vunpack.c.l.b16 %v322
  %v387 = vunpack.c.l.b16 %v323
  %v388 = vunpack.c.l.b16 %v324
  %v389 = vunpack.c.l.b16 %v325
  %v390 = vunpack.c.l.b16 %v326
  %v391 = vunpack.c.l.b16 %v327
  %v392 = vunpack.c.l.b16 %v328
  %v393 = vunpack.c.l.b16 %v329
  %v394 = vunpack.c.l.b16 %v330
  %v395 = vunpack.c.l.b16 %v331
  %v396 = vunpack.c.l.b16 %v332
  %v397 = vpack.c.b16 %v382, %v381
  %v398 = vpack.c.b16 %v384, %v383
  %v399 = vpack.c.b16 %v386, %v385
  %v400 = vpack.c.b16 %v388, %v387
  %v401 = vpack.c.b16 %v390, %v389
  %v402 = vpack.c.b16 %v392, %v391
  %v403 = vpack.c.b16 %v394, %v393
  %v404 = vpack.c.b16 %v396, %v395
  %413 = vmatpush.bf16.msra.mxu0 %v404
  %414 = vmatpush.bf16.msra.mxu0 %v403
  %415 = vmatpush.bf16.msra.mxu0 %v402
  %416 = vmatpush.bf16.msra.mxu0 %v401
  %417 = vmatpush.bf16.msra.mxu0 %v400
  %418 = vmatpush.bf16.msra.mxu0 %v399
  %419 = vmatpush.bf16.msra.mxu0 %v398
  %420 = vmatpush.bf16.msra.mxu0 %v397
  %421 = vmatmul.bf16.gmra.mxu0 %v349
  %v422 = vpop.f32.mrf.mxu0
  %v423 = vadd.f32 0.0, %v422
  %v424 = vpop.f32.mrf.mxu0
  %v425 = vadd.f32 0.0, %v424
  %426 = vmatmul.bf16.gmra.mxu0 %v350
  %v427 = vpop.f32.mrf.mxu0
  %v428 = vadd.f32 0.0, %v427
  %v429 = vpop.f32.mrf.mxu0
  %v430 = vadd.f32 0.0, %v429
  %431 = vmatmul.bf16.gmra.mxu0 %v351
  %v432 = vpop.f32.mrf.mxu0
  %v433 = vadd.f32 0.0, %v432
  %v434 = vpop.f32.mrf.mxu0
  %v435 = vadd.f32 0.0, %v434
  %436 = vmatmul.bf16.gmra.mxu0 %v352
  %v437 = vpop.f32.mrf.mxu0
  %v438 = vadd.f32 0.0, %v437
  %v439 = vpop.f32.mrf.mxu0
  %v440 = vadd.f32 0.0, %v439
  %441 = vmatmul.bf16.gmra.mxu0 %v353
  %v442 = vpop.f32.mrf.mxu0
  %v443 = vadd.f32 0.0, %v442
  %v444 = vpop.f32.mrf.mxu0
  %v445 = vadd.f32 0.0, %v444
  %446 = vmatmul.bf16.gmra.mxu0 %v354
  %v447 = vpop.f32.mrf.mxu0
  %v448 = vadd.f32 0.0, %v447
  %v449 = vpop.f32.mrf.mxu0
  %v450 = vadd.f32 0.0, %v449
  %451 = vmatmul.bf16.gmra.mxu0 %v355
  %v452 = vpop.f32.mrf.mxu0
  %v453 = vadd.f32 0.0, %v452
  %v454 = vpop.f32.mrf.mxu0
  %v455 = vadd.f32 0.0, %v454
  %456 = vmatmul.bf16.gmra.mxu0 %v356
  %v457 = vpop.f32.mrf.mxu0
  %v458 = vadd.f32 0.0, %v457
  %v459 = vpop.f32.mrf.mxu0
  %v460 = vadd.f32 0.0, %v459
  %461 = vdwg.mxu0
  %v478 = vunpack.c.l.b16 %v41
  %v479 = vunpack.c.l.b16 %v42
  %v480 = vunpack.c.l.b16 %v43
  %v481 = vunpack.c.l.b16 %v44
  %v482 = vunpack.c.l.b16 %v45
  %v483 = vunpack.c.l.b16 %v46
  %v484 = vunpack.c.l.b16 %v47
  %v485 = vunpack.c.l.b16 %v48
  %v486 = vunpack.c.l.b16 %v49
  %v487 = vunpack.c.l.b16 %v50
  %v488 = vunpack.c.l.b16 %v51
  %v489 = vunpack.c.l.b16 %v52
  %v490 = vunpack.c.l.b16 %v53
  %v491 = vunpack.c.l.b16 %v54
  %v492 = vunpack.c.l.b16 %v55
  %v493 = vunpack.c.l.b16 %v56
  %v494 = vpack.c.b16 %v479, %v478
  %v495 = vpack.c.b16 %v481, %v480
  %v496 = vpack.c.b16 %v483, %v482
  %v497 = vpack.c.b16 %v485, %v484
  %v498 = vpack.c.b16 %v487, %v486
  %v499 = vpack.c.b16 %v489, %v488
  %v500 = vpack.c.b16 %v491, %v490
  %v501 = vpack.c.b16 %v493, %v492
  %v526 = vunpack.c.l.b16 %v57
  %v527 = vunpack.c.l.b16 %v58
  %v528 = vunpack.c.l.b16 %v59
  %v529 = vunpack.c.l.b16 %v60
  %v530 = vunpack.c.l.b16 %v61
  %v531 = vunpack.c.l.b16 %v62
  %v532 = vunpack.c.l.b16 %v63
  %v533 = vunpack.c.l.b16 %v64
  %v534 = vunpack.c.l.b16 %v65
  %v535 = vunpack.c.l.b16 %v66
  %v536 = vunpack.c.l.b16 %v67
  %v537 = vunpack.c.l.b16 %v68
  %v538 = vunpack.c.l.b16 %v69
  %v539 = vunpack.c.l.b16 %v70
  %v540 = vunpack.c.l.b16 %v71
  %v541 = vunpack.c.l.b16 %v72
  %v542 = vpack.c.b16 %v527, %v526
  %v543 = vpack.c.b16 %v529, %v528
  %v544 = vpack.c.b16 %v531, %v530
  %v545 = vpack.c.b16 %v533, %v532
  %v546 = vpack.c.b16 %v535, %v534
  %v547 = vpack.c.b16 %v537, %v536
  %v548 = vpack.c.b16 %v539, %v538
  %v549 = vpack.c.b16 %v541, %v540
  %558 = vmatpush.bf16.msra.mxu0 %v549
  %559 = vmatpush.bf16.msra.mxu0 %v548
  %560 = vmatpush.bf16.msra.mxu0 %v547
  %561 = vmatpush.bf16.msra.mxu0 %v546
  %562 = vmatpush.bf16.msra.mxu0 %v545
  %563 = vmatpush.bf16.msra.mxu0 %v544
  %564 = vmatpush.bf16.msra.mxu0 %v543
  %565 = vmatpush.bf16.msra.mxu0 %v542
  %566 = vmatmul.bf16.gmra.mxu0 %v494
  %v567 = vpop.f32.mrf.mxu0
  %v568 = vadd.f32 %v423, %v567
  %v569 = vpop.f32.mrf.mxu0
  %v570 = vadd.f32 %v425, %v569
  %571 = vmatmul.bf16.gmra.mxu0 %v495
  %v572 = vpop.f32.mrf.mxu0
  %v573 = vadd.f32 %v428, %v572
  %v574 = vpop.f32.mrf.mxu0
  %v575 = vadd.f32 %v430, %v574
  %576 = vmatmul.bf16.gmra.mxu0 %v496
  %v577 = vpop.f32.mrf.mxu0
  %v578 = vadd.f32 %v433, %v577
  %v579 = vpop.f32.mrf.mxu0
  %v580 = vadd.f32 %v435, %v579
  %581 = vmatmul.bf16.gmra.mxu0 %v497
  %v582 = vpop.f32.mrf.mxu0
  %v583 = vadd.f32 %v438, %v582
  %v584 = vpop.f32.mrf.mxu0
  %v585 = vadd.f32 %v440, %v584
  %586 = vmatmul.bf16.gmra.mxu0 %v498
  %v587 = vpop.f32.mrf.mxu0
  %v588 = vadd.f32 %v443, %v587
  %v589 = vpop.f32.mrf.mxu0
  %v590 = vadd.f32 %v445, %v589
  %591 = vmatmul.bf16.gmra.mxu0 %v499
  %v592 = vpop.f32.mrf.mxu0
  %v593 = vadd.f32 %v448, %v592
  %v594 = vpop.f32.mrf.mxu0
  %v595 = vadd.f32 %v450, %v594
  %596 = vmatmul.bf16.gmra.mxu0 %v500
  %v597 = vpop.f32.mrf.mxu0
  %v598 = vadd.f32 %v453, %v597
  %v599 = vpop.f32.mrf.mxu0
  %v600 = vadd.f32 %v455, %v599
  %601 = vmatmul.bf16.gmra.mxu0 %v501
  %v602 = vpop.f32.mrf.mxu0
  %v603 = vadd.f32 %v458, %v602
  %v604 = vpop.f32.mrf.mxu0
  %v605 = vadd.f32 %v460, %v604
  %606 = vdwg.mxu0
  %v607 = vld [vmem:[%s0] sm:$0xe]
  %v608 = vld [vmem:[%s0 + $0x8] sm:$0xe]
  %v609 = vld [vmem:[%s0 + $0x10] sm:$0xe]
  %v610 = vld [vmem:[%s0 + $0x18] sm:$0xe]
  %v611 = vld [vmem:[%s0 + $0x20] sm:$0xe]
  %v612 = vld [vmem:[%s0 + $0x28] sm:$0xe]
  %v613 = vld [vmem:[%s0 + $0x30] sm:$0xe]
  %v614 = vld [vmem:[%s0 + $0x38] sm:$0xe]
  %v615 = vld [vmem:[%s0 + $0x50] sm:$0xe]
  %v616 = vld [vmem:[%s0 + $0x58] sm:$0xe]
  %v617 = vld [vmem:[%s0 + $0x60] sm:$0xe]
  %v618 = vld [vmem:[%s0 + $0x68] sm:$0xe]
  %v619 = vld [vmem:[%s0 + $0x70] sm:$0xe]
  %v620 = vld [vmem:[%s0 + $0x78] sm:$0xe]
  %v621 = vld [vmem:[%s0 + $0x80] sm:$0xe]
  %v622 = vld [vmem:[%s0 + $0x88] sm:$0xe]
  %vm655 = vcmask 1042432
  %vm656 = vcmask 1046532
  %vm657 = vmor %vm655, %vm656
  %v658 = vrot.slane %v607, 5
  %v659 = vrot.slane %v658, 4
  %v660 = vrot.slane %v73, 5
  %v661 = vsel %vm657, %v659, %v660
  %v662 = vrot.slane %v608, 5
  %v663 = vrot.slane %v662, 4
  %v664 = vrot.slane %v74, 5
  %v665 = vsel %vm657, %v663, %v664
  %v666 = vrot.slane %v609, 5
  %v667 = vrot.slane %v666, 4
  %v668 = vrot.slane %v75, 5
  %v669 = vsel %vm657, %v667, %v668
  %v670 = vrot.slane %v610, 5
  %v671 = vrot.slane %v670, 4
  %v672 = vrot.slane %v76, 5
  %v673 = vsel %vm657, %v671, %v672
  %v674 = vrot.slane %v611, 5
  %v675 = vrot.slane %v674, 4
  %v676 = vrot.slane %v77, 5
  %v677 = vsel %vm657, %v675, %v676
  %v678 = vrot.slane %v612, 5
  %v679 = vrot.slane %v678, 4
  %v680 = vrot.slane %v78, 5
  %v681 = vsel %vm657, %v679, %v680
  %v682 = vrot.slane %v613, 5
  %v683 = vrot.slane %v682, 4
  %v684 = vrot.slane %v79, 5
  %v685 = vsel %vm657, %v683, %v684
  %v686 = vrot.slane %v614, 5
  %v687 = vrot.slane %v686, 4
  %v688 = vrot.slane %v80, 5
  %v689 = vsel %vm657, %v687, %v688
  %v690 = vrot.slane %v615, 5
  %v691 = vrot.slane %v690, 4
  %v692 = vrot.slane %v81, 5
  %v693 = vsel %vm657, %v691, %v692
  %v694 = vrot.slane %v616, 5
  %v695 = vrot.slane %v694, 4
  %v696 = vrot.slane %v82, 5
  %v697 = vsel %vm657, %v695, %v696
  %v698 = vrot.slane %v617, 5
  %v699 = vrot.slane %v698, 4
  %v700 = vrot.slane %v83, 5
  %v701 = vsel %vm657, %v699, %v700
  %v702 = vrot.slane %v618, 5
  %v703 = vrot.slane %v702, 4
  %v704 = vrot.slane %v84, 5
  %v705 = vsel %vm657, %v703, %v704
  %v706 = vrot.slane %v619, 5
  %v707 = vrot.slane %v706, 4
  %v708 = vrot.slane %v85, 5
  %v709 = vsel %vm657, %v707, %v708
  %v710 = vrot.slane %v620, 5
  %v711 = vrot.slane %v710, 4
  %v712 = vrot.slane %v86, 5
  %v713 = vsel %vm657, %v711, %v712
  %v714 = vrot.slane %v621, 5
  %v715 = vrot.slane %v714, 4
  %v716 = vrot.slane %v87, 5
  %v717 = vsel %vm657, %v715, %v716
  %v718 = vrot.slane %v622, 5
  %v719 = vrot.slane %v718, 4
  %v720 = vrot.slane %v88, 5
  %v721 = vsel %vm657, %v719, %v720
  %s722 = scalar_lea.vmem %s1, 128
  %v723 = vld [vmem:[%s722] sm:$0xf]
  %v724 = vld [vmem:[%s722 + $0x4] sm:$0xf]
  %v725 = vld [vmem:[%s722 + $0x8] sm:$0xf]
  %v726 = vld [vmem:[%s722 + $0xc] sm:$0xf]
  %v727 = vld [vmem:[%s722 + $0x10] sm:$0xf]
  %v728 = vld [vmem:[%s722 + $0x14] sm:$0xf]
  %v729 = vld [vmem:[%s722 + $0x18] sm:$0xf]
  %v730 = vld [vmem:[%s722 + $0x1c] sm:$0xf]
  %v731 = vld [vmem:[%s722 + $0x20] sm:$0xf]
  %v732 = vld [vmem:[%s722 + $0x24] sm:$0xf]
  %v733 = vld [vmem:[%s722 + $0x28] sm:$0xf]
  %v734 = vld [vmem:[%s722 + $0x2c] sm:$0xf]
  %v735 = vld [vmem:[%s722 + $0x30] sm:$0xf]
  %v736 = vld [vmem:[%s722 + $0x34] sm:$0xf]
  %v737 = vld [vmem:[%s722 + $0x38] sm:$0xf]
  %v738 = vld [vmem:[%s722 + $0x3c] sm:$0xf]
  %v739 = vunpack.c.l.b16 %v661
  %v740 = vunpack.c.l.b16 %v665
  %v741 = vunpack.c.l.b16 %v669
  %v742 = vunpack.c.l.b16 %v673
  %v743 = vunpack.c.l.b16 %v677
  %v744 = vunpack.c.l.b16 %v681
  %v745 = vunpack.c.l.b16 %v685
  %v746 = vunpack.c.l.b16 %v689
  %v747 = vunpack.c.l.b16 %v693
  %v748 = vunpack.c.l.b16 %v697
  %v749 = vunpack.c.l.b16 %v701
  %v750 = vunpack.c.l.b16 %v705
  %v751 = vunpack.c.l.b16 %v709
  %v752 = vunpack.c.l.b16 %v713
  %v753 = vunpack.c.l.b16 %v717
  %v754 = vunpack.c.l.b16 %v721
  %v755 = vpack.c.b16 %v740, %v739
  %v756 = vpack.c.b16 %v742, %v741
  %v757 = vpack.c.b16 %v744, %v743
  %v758 = vpack.c.b16 %v746, %v745
  %v759 = vpack.c.b16 %v748, %v747
  %v760 = vpack.c.b16 %v750, %v749
  %v761 = vpack.c.b16 %v752, %v751
  %v762 = vpack.c.b16 %v754, %v753
  %v787 = vunpack.c.l.b16 %v723
  %v788 = vunpack.c.l.b16 %v724
  %v789 = vunpack.c.l.b16 %v725
  %v790 = vunpack.c.l.b16 %v726
  %v791 = vunpack.c.l.b16 %v727
  %v792 = vunpack.c.l.b16 %v728
  %v793 = vunpack.c.l.b16 %v729
  %v794 = vunpack.c.l.b16 %v730
  %v795 = vunpack.c.l.b16 %v731
  %v796 = vunpack.c.l.b16 %v732
  %v797 = vunpack.c.l.b16 %v733
  %v798 = vunpack.c.l.b16 %v734
  %v799 = vunpack.c.l.b16 %v735
  %v800 = vunpack.c.l.b16 %v736
  %v801 = vunpack.c.l.b16 %v737
  %v802 = vunpack.c.l.b16 %v738
  %v803 = vpack.c.b16 %v788, %v787
  %v804 = vpack.c.b16 %v790, %v789
  %v805 = vpack.c.b16 %v792, %v791
  %v806 = vpack.c.b16 %v794, %v793
  %v807 = vpack.c.b16 %v796, %v795
  %v808 = vpack.c.b16 %v798, %v797
  %v809 = vpack.c.b16 %v800, %v799
  %v810 = vpack.c.b16 %v802, %v801
  %819 = vmatpush.bf16.msra.mxu0 %v810
  %820 = vmatpush.bf16.msra.mxu0 %v809
  %821 = vmatpush.bf16.msra.mxu0 %v808
  %822 = vmatpush.bf16.msra.mxu0 %v807
  %823 = vmatpush.bf16.msra.mxu0 %v806
  %824 = vmatpush.bf16.msra.mxu0 %v805
  %825 = vmatpush.bf16.msra.mxu0 %v804
  %826 = vmatpush.bf16.msra.mxu0 %v803
  %827 = vmatmul.bf16.gmra.mxu0 %v755
  %v828 = vpop.f32.mrf.mxu0
  %v829 = vadd.f32 0.0, %v828
  %v830 = vpop.f32.mrf.mxu0
  %v831 = vadd.f32 0.0, %v830
  %832 = vmatmul.bf16.gmra.mxu0 %v756
  %v833 = vpop.f32.mrf.mxu0
  %v834 = vadd.f32 0.0, %v833
  %v835 = vpop.f32.mrf.mxu0
  %v836 = vadd.f32 0.0, %v835
  %837 = vmatmul.bf16.gmra.mxu0 %v757
  %v838 = vpop.f32.mrf.mxu0
  %v839 = vadd.f32 0.0, %v838
  %v840 = vpop.f32.mrf.mxu0
  %v841 = vadd.f32 0.0, %v840
  %842 = vmatmul.bf16.gmra.mxu0 %v758
  %v843 = vpop.f32.mrf.mxu0
  %v844 = vadd.f32 0.0, %v843
  %v845 = vpop.f32.mrf.mxu0
  %v846 = vadd.f32 0.0, %v845
  %847 = vmatmul.bf16.gmra.mxu0 %v759
  %v848 = vpop.f32.mrf.mxu0
  %v849 = vadd.f32 0.0, %v848
  %v850 = vpop.f32.mrf.mxu0
  %v851 = vadd.f32 0.0, %v850
  %852 = vmatmul.bf16.gmra.mxu0 %v760
  %v853 = vpop.f32.mrf.mxu0
  %v854 = vadd.f32 0.0, %v853
  %v855 = vpop.f32.mrf.mxu0
  %v856 = vadd.f32 0.0, %v855
  %857 = vmatmul.bf16.gmra.mxu0 %v761
  %v858 = vpop.f32.mrf.mxu0
  %v859 = vadd.f32 0.0, %v858
  %v860 = vpop.f32.mrf.mxu0
  %v861 = vadd.f32 0.0, %v860
  %862 = vmatmul.bf16.gmra.mxu0 %v762
  %v863 = vpop.f32.mrf.mxu0
  %v864 = vadd.f32 0.0, %v863
  %v865 = vpop.f32.mrf.mxu0
  %v866 = vadd.f32 0.0, %v865
  %867 = vdwg.mxu0
  %v868 = vadd.f32 %v568, %v829
  %v869 = vadd.f32 %v570, %v831
  %v870 = vadd.f32 %v573, %v834
  %v871 = vadd.f32 %v575, %v836
  %v872 = vadd.f32 %v578, %v839
  %v873 = vadd.f32 %v580, %v841
  %v874 = vadd.f32 %v583, %v844
  %v875 = vadd.f32 %v585, %v846
  %v876 = vadd.f32 %v588, %v849
  %v877 = vadd.f32 %v590, %v851
  %v878 = vadd.f32 %v593, %v854
  %v879 = vadd.f32 %v595, %v856
  %v880 = vadd.f32 %v598, %v859
  %v881 = vadd.f32 %v600, %v861
  %v882 = vadd.f32 %v603, %v864
  %v883 = vadd.f32 %v605, %v866
  %s884 = scalar_lea.vmem %s0, 8
  %v885 = vld [vmem:[%s884] sm:$0xf]
  %v886 = vld [vmem:[%s884 + $0x8] sm:$0xf]
  %v887 = vld [vmem:[%s884 + $0x10] sm:$0xf]
  %v888 = vld [vmem:[%s884 + $0x18] sm:$0xf]
  %v889 = vld [vmem:[%s884 + $0x20] sm:$0xf]
  %v890 = vld [vmem:[%s884 + $0x28] sm:$0xf]
  %v891 = vld [vmem:[%s884 + $0x30] sm:$0xf]
  %v892 = vld [vmem:[%s884 + $0x38] sm:$0xf]
  %v893 = vld [vmem:[%s884 + $0x50] sm:$0xf]
  %v894 = vld [vmem:[%s884 + $0x58] sm:$0xf]
  %v895 = vld [vmem:[%s884 + $0x60] sm:$0xf]
  %v896 = vld [vmem:[%s884 + $0x68] sm:$0xf]
  %v897 = vld [vmem:[%s884 + $0x70] sm:$0xf]
  %v898 = vld [vmem:[%s884 + $0x78] sm:$0xf]
  %v899 = vld [vmem:[%s884 + $0x80] sm:$0xf]
  %v900 = vld [vmem:[%s884 + $0x88] sm:$0xf]
  %s901 = scalar_lea.vmem %s1, 192
  %v902 = vld [vmem:[%s901] sm:$0xf]
  %v903 = vld [vmem:[%s901 + $0x4] sm:$0xf]
  %v904 = vld [vmem:[%s901 + $0x8] sm:$0xf]
  %v905 = vld [vmem:[%s901 + $0xc] sm:$0xf]
  %v906 = vld [vmem:[%s901 + $0x10] sm:$0xf]
  %v907 = vld [vmem:[%s901 + $0x14] sm:$0xf]
  %v908 = vld [vmem:[%s901 + $0x18] sm:$0xf]
  %v909 = vld [vmem:[%s901 + $0x1c] sm:$0xf]
  %v910 = vld [vmem:[%s901 + $0x20] sm:$0xf]
  %v911 = vld [vmem:[%s901 + $0x24] sm:$0xf]
  %v912 = vld [vmem:[%s901 + $0x28] sm:$0xf]
  %v913 = vld [vmem:[%s901 + $0x2c] sm:$0xf]
  %v914 = vld [vmem:[%s901 + $0x30] sm:$0xf]
  %v915 = vld [vmem:[%s901 + $0x34] sm:$0xf]
  %v916 = vld [vmem:[%s901 + $0x38] sm:$0xf]
  %v917 = vld [vmem:[%s901 + $0x3c] sm:$0xf]
  %v934 = vunpack.c.l.b16 %v885
  %v935 = vunpack.c.l.b16 %v886
  %v936 = vunpack.c.l.b16 %v887
  %v937 = vunpack.c.l.b16 %v888
  %v938 = vunpack.c.l.b16 %v889
  %v939 = vunpack.c.l.b16 %v890
  %v940 = vunpack.c.l.b16 %v891
  %v941 = vunpack.c.l.b16 %v892
  %v942 = vunpack.c.l.b16 %v893
  %v943 = vunpack.c.l.b16 %v894
  %v944 = vunpack.c.l.b16 %v895
  %v945 = vunpack.c.l.b16 %v896
  %v946 = vunpack.c.l.b16 %v897
  %v947 = vunpack.c.l.b16 %v898
  %v948 = vunpack.c.l.b16 %v899
  %v949 = vunpack.c.l.b16 %v900
  %v950 = vpack.c.b16 %v935, %v934
  %v951 = vpack.c.b16 %v937, %v936
  %v952 = vpack.c.b16 %v939, %v938
  %v953 = vpack.c.b16 %v941, %v940
  %v954 = vpack.c.b16 %v943, %v942
  %v955 = vpack.c.b16 %v945, %v944
  %v956 = vpack.c.b16 %v947, %v946
  %v957 = vpack.c.b16 %v949, %v948
  %v982 = vunpack.c.l.b16 %v902
  %v983 = vunpack.c.l.b16 %v903
  %v984 = vunpack.c.l.b16 %v904
  %v985 = vunpack.c.l.b16 %v905
  %v986 = vunpack.c.l.b16 %v906
  %v987 = vunpack.c.l.b16 %v907
  %v988 = vunpack.c.l.b16 %v908
  %v989 = vunpack.c.l.b16 %v909
  %v990 = vunpack.c.l.b16 %v910
  %v991 = vunpack.c.l.b16 %v911
  %v992 = vunpack.c.l.b16 %v912
  %v993 = vunpack.c.l.b16 %v913
  %v994 = vunpack.c.l.b16 %v914
  %v995 = vunpack.c.l.b16 %v915
  %v996 = vunpack.c.l.b16 %v916
  %v997 = vunpack.c.l.b16 %v917
  %v998 = vpack.c.b16 %v983, %v982
  %v999 = vpack.c.b16 %v985, %v984
  %v1000 = vpack.c.b16 %v987, %v986
  %v1001 = vpack.c.b16 %v989, %v988
  %v1002 = vpack.c.b16 %v991, %v990
  %v1003 = vpack.c.b16 %v993, %v992
  %v1004 = vpack.c.b16 %v995, %v994
  %v1005 = vpack.c.b16 %v997, %v996
  %1014 = vmatpush.bf16.msra.mxu0 %v1005
  %1015 = vmatpush.bf16.msra.mxu0 %v1004
  %1016 = vmatpush.bf16.msra.mxu0 %v1003
  %1017 = vmatpush.bf16.msra.mxu0 %v1002
  %1018 = vmatpush.bf16.msra.mxu0 %v1001
  %1019 = vmatpush.bf16.msra.mxu0 %v1000
  %1020 = vmatpush.bf16.msra.mxu0 %v999
  %1021 = vmatpush.bf16.msra.mxu0 %v998
  %1022 = vmatmul.bf16.gmra.mxu0 %v950
  %v1023 = vpop.f32.mrf.mxu0
  %v1024 = vadd.f32 0.0, %v1023
  %v1025 = vpop.f32.mrf.mxu0
  %v1026 = vadd.f32 0.0, %v1025
  %1027 = vmatmul.bf16.gmra.mxu0 %v951
  %v1028 = vpop.f32.mrf.mxu0
  %v1029 = vadd.f32 0.0, %v1028
  %v1030 = vpop.f32.mrf.mxu0
  %v1031 = vadd.f32 0.0, %v1030
  %1032 = vmatmul.bf16.gmra.mxu0 %v952
  %v1033 = vpop.f32.mrf.mxu0
  %v1034 = vadd.f32 0.0, %v1033
  %v1035 = vpop.f32.mrf.mxu0
  %v1036 = vadd.f32 0.0, %v1035
  %1037 = vmatmul.bf16.gmra.mxu0 %v953
  %v1038 = vpop.f32.mrf.mxu0
  %v1039 = vadd.f32 0.0, %v1038
  %v1040 = vpop.f32.mrf.mxu0
  %v1041 = vadd.f32 0.0, %v1040
  %1042 = vmatmul.bf16.gmra.mxu0 %v954
  %v1043 = vpop.f32.mrf.mxu0
  %v1044 = vadd.f32 0.0, %v1043
  %v1045 = vpop.f32.mrf.mxu0
  %v1046 = vadd.f32 0.0, %v1045
  %1047 = vmatmul.bf16.gmra.mxu0 %v955
  %v1048 = vpop.f32.mrf.mxu0
  %v1049 = vadd.f32 0.0, %v1048
  %v1050 = vpop.f32.mrf.mxu0
  %v1051 = vadd.f32 0.0, %v1050
  %1052 = vmatmul.bf16.gmra.mxu0 %v956
  %v1053 = vpop.f32.mrf.mxu0
  %v1054 = vadd.f32 0.0, %v1053
  %v1055 = vpop.f32.mrf.mxu0
  %v1056 = vadd.f32 0.0, %v1055
  %1057 = vmatmul.bf16.gmra.mxu0 %v957
  %v1058 = vpop.f32.mrf.mxu0
  %v1059 = vadd.f32 0.0, %v1058
  %v1060 = vpop.f32.mrf.mxu0
  %v1061 = vadd.f32 0.0, %v1060
  %1062 = vdwg.mxu0
  %v1063 = vadd.f32 %v868, %v1024
  %v1064 = vadd.f32 %v869, %v1026
  %v1065 = vadd.f32 %v870, %v1029
  %v1066 = vadd.f32 %v871, %v1031
  %v1067 = vadd.f32 %v872, %v1034
  %v1068 = vadd.f32 %v873, %v1036
  %v1069 = vadd.f32 %v874, %v1039
  %v1070 = vadd.f32 %v875, %v1041
  %v1071 = vadd.f32 %v876, %v1044
  %v1072 = vadd.f32 %v877, %v1046
  %v1073 = vadd.f32 %v878, %v1049
  %v1074 = vadd.f32 %v879, %v1051
  %v1075 = vadd.f32 %v880, %v1054
  %v1076 = vadd.f32 %v881, %v1056
  %v1077 = vadd.f32 %v882, %v1059
  %v1078 = vadd.f32 %v883, %v1061
  %v1079 = vld [vmem:[%s884] sm:$0xf]
  %v1080 = vld [vmem:[%s884 + $0x4] sm:$0x1]
  %v1081 = vld [vmem:[%s884 + $0x8] sm:$0xf]
  %v1082 = vld [vmem:[%s884 + $0xc] sm:$0x1]
  %v1083 = vld [vmem:[%s884 + $0x10] sm:$0xf]
  %v1084 = vld [vmem:[%s884 + $0x14] sm:$0x1]
  %v1085 = vld [vmem:[%s884 + $0x18] sm:$0xf]
  %v1086 = vld [vmem:[%s884 + $0x1c] sm:$0x1]
  %v1087 = vld [vmem:[%s884 + $0x20] sm:$0xf]
  %v1088 = vld [vmem:[%s884 + $0x24] sm:$0x1]
  %v1089 = vld [vmem:[%s884 + $0x28] sm:$0xf]
  %v1090 = vld [vmem:[%s884 + $0x2c] sm:$0x1]
  %v1091 = vld [vmem:[%s884 + $0x30] sm:$0xf]
  %v1092 = vld [vmem:[%s884 + $0x34] sm:$0x1]
  %v1093 = vld [vmem:[%s884 + $0x38] sm:$0xf]
  %v1094 = vld [vmem:[%s884 + $0x3c] sm:$0x1]
  %v1095 = vld [vmem:[%s884 + $0x50] sm:$0xf]
  %v1096 = vld [vmem:[%s884 + $0x54] sm:$0x1]
  %v1097 = vld [vmem:[%s884 + $0x58] sm:$0xf]
  %v1098 = vld [vmem:[%s884 + $0x5c] sm:$0x1]
  %v1099 = vld [vmem:[%s884 + $0x60] sm:$0xf]
  %v1100 = vld [vmem:[%s884 + $0x64] sm:$0x1]
  %v1101 = vld [vmem:[%s884 + $0x68] sm:$0xf]
  %v1102 = vld [vmem:[%s884 + $0x6c] sm:$0x1]
  %v1103 = vld [vmem:[%s884 + $0x70] sm:$0xf]
  %v1104 = vld [vmem:[%s884 + $0x74] sm:$0x1]
  %v1105 = vld [vmem:[%s884 + $0x78] sm:$0xf]
  %v1106 = vld [vmem:[%s884 + $0x7c] sm:$0x1]
  %v1107 = vld [vmem:[%s884 + $0x80] sm:$0xf]
  %v1108 = vld [vmem:[%s884 + $0x84] sm:$0x1]
  %v1109 = vld [vmem:[%s884 + $0x88] sm:$0xf]
  %v1110 = vld [vmem:[%s884 + $0x8c] sm:$0x1]
  %v1112 = vshrl.u32 %v1079, 16
  %v1114 = vrot.slane %v1112, 4
  %v1115 = vshll.u32 %v1079, 16
  %v1117 = vrot.slane %v1115, 5
  %v1118 = vor.u32 %v1114, %v1117
  %v1119 = vrot.slane %v1118, 4
  %v1121 = vshll.u32 %v1080, 16
  %v1123 = vrot.slane %v1121, 5
  %v1124 = vsel %vm91, %v1119, %v1123
  %v1126 = vshrl.u32 %v1081, 16
  %v1128 = vrot.slane %v1126, 4
  %v1129 = vshll.u32 %v1081, 16
  %v1131 = vrot.slane %v1129, 5
  %v1132 = vor.u32 %v1128, %v1131
  %v1133 = vrot.slane %v1132, 4
  %v1135 = vshll.u32 %v1082, 16
  %v1137 = vrot.slane %v1135, 5
  %v1138 = vsel %vm91, %v1133, %v1137
  %v1140 = vshrl.u32 %v1083, 16
  %v1142 = vrot.slane %v1140, 4
  %v1143 = vshll.u32 %v1083, 16
  %v1145 = vrot.slane %v1143, 5
  %v1146 = vor.u32 %v1142, %v1145
  %v1147 = vrot.slane %v1146, 4
  %v1149 = vshll.u32 %v1084, 16
  %v1151 = vrot.slane %v1149, 5
  %v1152 = vsel %vm91, %v1147, %v1151
  %v1154 = vshrl.u32 %v1085, 16
  %v1156 = vrot.slane %v1154, 4
  %v1157 = vshll.u32 %v1085, 16
  %v1159 = vrot.slane %v1157, 5
  %v1160 = vor.u32 %v1156, %v1159
  %v1161 = vrot.slane %v1160, 4
  %v1163 = vshll.u32 %v1086, 16
  %v1165 = vrot.slane %v1163, 5
  %v1166 = vsel %vm91, %v1161, %v1165
  %v1168 = vshrl.u32 %v1087, 16
  %v1170 = vrot.slane %v1168, 4
  %v1171 = vshll.u32 %v1087, 16
  %v1173 = vrot.slane %v1171, 5
  %v1174 = vor.u32 %v1170, %v1173
  %v1175 = vrot.slane %v1174, 4
  %v1177 = vshll.u32 %v1088, 16
  %v1179 = vrot.slane %v1177, 5
  %v1180 = vsel %vm91, %v1175, %v1179
  %v1182 = vshrl.u32 %v1089, 16
  %v1184 = vrot.slane %v1182, 4
  %v1185 = vshll.u32 %v1089, 16
  %v1187 = vrot.slane %v1185, 5
  %v1188 = vor.u32 %v1184, %v1187
  %v1189 = vrot.slane %v1188, 4
  %v1191 = vshll.u32 %v1090, 16
  %v1193 = vrot.slane %v1191, 5
  %v1194 = vsel %vm91, %v1189, %v1193
  %v1196 = vshrl.u32 %v1091, 16
  %v1198 = vrot.slane %v1196, 4
  %v1199 = vshll.u32 %v1091, 16
  %v1201 = vrot.slane %v1199, 5
  %v1202 = vor.u32 %v1198, %v1201
  %v1203 = vrot.slane %v1202, 4
  %v1205 = vshll.u32 %v1092, 16
  %v1207 = vrot.slane %v1205, 5
  %v1208 = vsel %vm91, %v1203, %v1207
  %v1210 = vshrl.u32 %v1093, 16
  %v1212 = vrot.slane %v1210, 4
  %v1213 = vshll.u32 %v1093, 16
  %v1215 = vrot.slane %v1213, 5
  %v1216 = vor.u32 %v1212, %v1215
  %v1217 = vrot.slane %v1216, 4
  %v1219 = vshll.u32 %v1094, 16
  %v1221 = vrot.slane %v1219, 5
  %v1222 = vsel %vm91, %v1217, %v1221
  %v1224 = vshrl.u32 %v1095, 16
  %v1226 = vrot.slane %v1224, 4
  %v1227 = vshll.u32 %v1095, 16
  %v1229 = vrot.slane %v1227, 5
  %v1230 = vor.u32 %v1226, %v1229
  %v1231 = vrot.slane %v1230, 4
  %v1233 = vshll.u32 %v1096, 16
  %v1235 = vrot.slane %v1233, 5
  %v1236 = vsel %vm91, %v1231, %v1235
  %v1238 = vshrl.u32 %v1097, 16
  %v1240 = vrot.slane %v1238, 4
  %v1241 = vshll.u32 %v1097, 16
  %v1243 = vrot.slane %v1241, 5
  %v1244 = vor.u32 %v1240, %v1243
  %v1245 = vrot.slane %v1244, 4
  %v1247 = vshll.u32 %v1098, 16
  %v1249 = vrot.slane %v1247, 5
  %v1250 = vsel %vm91, %v1245, %v1249
  %v1252 = vshrl.u32 %v1099, 16
  %v1254 = vrot.slane %v1252, 4
  %v1255 = vshll.u32 %v1099, 16
  %v1257 = vrot.slane %v1255, 5
  %v1258 = vor.u32 %v1254, %v1257
  %v1259 = vrot.slane %v1258, 4
  %v1261 = vshll.u32 %v1100, 16
  %v1263 = vrot.slane %v1261, 5
  %v1264 = vsel %vm91, %v1259, %v1263
  %v1266 = vshrl.u32 %v1101, 16
  %v1268 = vrot.slane %v1266, 4
  %v1269 = vshll.u32 %v1101, 16
  %v1271 = vrot.slane %v1269, 5
  %v1272 = vor.u32 %v1268, %v1271
  %v1273 = vrot.slane %v1272, 4
  %v1275 = vshll.u32 %v1102, 16
  %v1277 = vrot.slane %v1275, 5
  %v1278 = vsel %vm91, %v1273, %v1277
  %v1280 = vshrl.u32 %v1103, 16
  %v1282 = vrot.slane %v1280, 4
  %v1283 = vshll.u32 %v1103, 16
  %v1285 = vrot.slane %v1283, 5
  %v1286 = vor.u32 %v1282, %v1285
  %v1287 = vrot.slane %v1286, 4
  %v1289 = vshll.u32 %v1104, 16
  %v1291 = vrot.slane %v1289, 5
  %v1292 = vsel %vm91, %v1287, %v1291
  %v1294 = vshrl.u32 %v1105, 16
  %v1296 = vrot.slane %v1294, 4
  %v1297 = vshll.u32 %v1105, 16
  %v1299 = vrot.slane %v1297, 5
  %v1300 = vor.u32 %v1296, %v1299
  %v1301 = vrot.slane %v1300, 4
  %v1303 = vshll.u32 %v1106, 16
  %v1305 = vrot.slane %v1303, 5
  %v1306 = vsel %vm91, %v1301, %v1305
  %v1308 = vshrl.u32 %v1107, 16
  %v1310 = vrot.slane %v1308, 4
  %v1311 = vshll.u32 %v1107, 16
  %v1313 = vrot.slane %v1311, 5
  %v1314 = vor.u32 %v1310, %v1313
  %v1315 = vrot.slane %v1314, 4
  %v1317 = vshll.u32 %v1108, 16
  %v1319 = vrot.slane %v1317, 5
  %v1320 = vsel %vm91, %v1315, %v1319
  %v1322 = vshrl.u32 %v1109, 16
  %v1324 = vrot.slane %v1322, 4
  %v1325 = vshll.u32 %v1109, 16
  %v1327 = vrot.slane %v1325, 5
  %v1328 = vor.u32 %v1324, %v1327
  %v1329 = vrot.slane %v1328, 4
  %v1331 = vshll.u32 %v1110, 16
  %v1333 = vrot.slane %v1331, 5
  %v1334 = vsel %vm91, %v1329, %v1333
  %s1335 = scalar_lea.vmem %s1, 256
  %v1336 = vld [vmem:[%s1335] sm:$0xf]
  %v1337 = vld [vmem:[%s1335 + $0x4] sm:$0xf]
  %v1338 = vld [vmem:[%s1335 + $0x8] sm:$0xf]
  %v1339 = vld [vmem:[%s1335 + $0xc] sm:$0xf]
  %v1340 = vld [vmem:[%s1335 + $0x10] sm:$0xf]
  %v1341 = vld [vmem:[%s1335 + $0x14] sm:$0xf]
  %v1342 = vld [vmem:[%s1335 + $0x18] sm:$0xf]
  %v1343 = vld [vmem:[%s1335 + $0x1c] sm:$0xf]
  %v1344 = vld [vmem:[%s1335 + $0x20] sm:$0xf]
  %v1345 = vld [vmem:[%s1335 + $0x24] sm:$0xf]
  %v1346 = vld [vmem:[%s1335 + $0x28] sm:$0xf]
  %v1347 = vld [vmem:[%s1335 + $0x2c] sm:$0xf]
  %v1348 = vld [vmem:[%s1335 + $0x30] sm:$0xf]
  %v1349 = vld [vmem:[%s1335 + $0x34] sm:$0xf]
  %v1350 = vld [vmem:[%s1335 + $0x38] sm:$0xf]
  %v1351 = vld [vmem:[%s1335 + $0x3c] sm:$0xf]
  %v1352 = vunpack.c.l.b16 %v1124
  %v1353 = vunpack.c.l.b16 %v1138
  %v1354 = vunpack.c.l.b16 %v1152
  %v1355 = vunpack.c.l.b16 %v1166
  %v1356 = vunpack.c.l.b16 %v1180
  %v1357 = vunpack.c.l.b16 %v1194
  %v1358 = vunpack.c.l.b16 %v1208
  %v1359 = vunpack.c.l.b16 %v1222
  %v1360 = vunpack.c.l.b16 %v1236
  %v1361 = vunpack.c.l.b16 %v1250
  %v1362 = vunpack.c.l.b16 %v1264
  %v1363 = vunpack.c.l.b16 %v1278
  %v1364 = vunpack.c.l.b16 %v1292
  %v1365 = vunpack.c.l.b16 %v1306
  %v1366 = vunpack.c.l.b16 %v1320
  %v1367 = vunpack.c.l.b16 %v1334
  %v1368 = vpack.c.b16 %v1353, %v1352
  %v1369 = vpack.c.b16 %v1355, %v1354
  %v1370 = vpack.c.b16 %v1357, %v1356
  %v1371 = vpack.c.b16 %v1359, %v1358
  %v1372 = vpack.c.b16 %v1361, %v1360
  %v1373 = vpack.c.b16 %v1363, %v1362
  %v1374 = vpack.c.b16 %v1365, %v1364
  %v1375 = vpack.c.b16 %v1367, %v1366
  %v1400 = vunpack.c.l.b16 %v1336
  %v1401 = vunpack.c.l.b16 %v1337
  %v1402 = vunpack.c.l.b16 %v1338
  %v1403 = vunpack.c.l.b16 %v1339
  %v1404 = vunpack.c.l.b16 %v1340
  %v1405 = vunpack.c.l.b16 %v1341
  %v1406 = vunpack.c.l.b16 %v1342
  %v1407 = vunpack.c.l.b16 %v1343
  %v1408 = vunpack.c.l.b16 %v1344
  %v1409 = vunpack.c.l.b16 %v1345
  %v1410 = vunpack.c.l.b16 %v1346
  %v1411 = vunpack.c.l.b16 %v1347
  %v1412 = vunpack.c.l.b16 %v1348
  %v1413 = vunpack.c.l.b16 %v1349
  %v1414 = vunpack.c.l.b16 %v1350
  %v1415 = vunpack.c.l.b16 %v1351
  %v1416 = vpack.c.b16 %v1401, %v1400
  %v1417 = vpack.c.b16 %v1403, %v1402
  %v1418 = vpack.c.b16 %v1405, %v1404
  %v1419 = vpack.c.b16 %v1407, %v1406
  %v1420 = vpack.c.b16 %v1409, %v1408
  %v1421 = vpack.c.b16 %v1411, %v1410
  %v1422 = vpack.c.b16 %v1413, %v1412
  %v1423 = vpack.c.b16 %v1415, %v1414
  %1432 = vmatpush.bf16.msra.mxu0 %v1423
  %1433 = vmatpush.bf16.msra.mxu0 %v1422
  %1434 = vmatpush.bf16.msra.mxu0 %v1421
  %1435 = vmatpush.bf16.msra.mxu0 %v1420
  %1436 = vmatpush.bf16.msra.mxu0 %v1419
  %1437 = vmatpush.bf16.msra.mxu0 %v1418
  %1438 = vmatpush.bf16.msra.mxu0 %v1417
  %1439 = vmatpush.bf16.msra.mxu0 %v1416
  %1440 = vmatmul.bf16.gmra.mxu0 %v1368
  %v1441 = vpop.f32.mrf.mxu0
  %v1442 = vadd.f32 0.0, %v1441
  %v1443 = vpop.f32.mrf.mxu0
  %v1444 = vadd.f32 0.0, %v1443
  %1445 = vmatmul.bf16.gmra.mxu0 %v1369
  %v1446 = vpop.f32.mrf.mxu0
  %v1447 = vadd.f32 0.0, %v1446
  %v1448 = vpop.f32.mrf.mxu0
  %v1449 = vadd.f32 0.0, %v1448
  %1450 = vmatmul.bf16.gmra.mxu0 %v1370
  %v1451 = vpop.f32.mrf.mxu0
  %v1452 = vadd.f32 0.0, %v1451
  %v1453 = vpop.f32.mrf.mxu0
  %v1454 = vadd.f32 0.0, %v1453
  %1455 = vmatmul.bf16.gmra.mxu0 %v1371
  %v1456 = vpop.f32.mrf.mxu0
  %v1457 = vadd.f32 0.0, %v1456
  %v1458 = vpop.f32.mrf.mxu0
  %v1459 = vadd.f32 0.0, %v1458
  %1460 = vmatmul.bf16.gmra.mxu0 %v1372
  %v1461 = vpop.f32.mrf.mxu0
  %v1462 = vadd.f32 0.0, %v1461
  %v1463 = vpop.f32.mrf.mxu0
  %v1464 = vadd.f32 0.0, %v1463
  %1465 = vmatmul.bf16.gmra.mxu0 %v1373
  %v1466 = vpop.f32.mrf.mxu0
  %v1467 = vadd.f32 0.0, %v1466
  %v1468 = vpop.f32.mrf.mxu0
  %v1469 = vadd.f32 0.0, %v1468
  %1470 = vmatmul.bf16.gmra.mxu0 %v1374
  %v1471 = vpop.f32.mrf.mxu0
  %v1472 = vadd.f32 0.0, %v1471
  %v1473 = vpop.f32.mrf.mxu0
  %v1474 = vadd.f32 0.0, %v1473
  %1475 = vmatmul.bf16.gmra.mxu0 %v1375
  %v1476 = vpop.f32.mrf.mxu0
  %v1477 = vadd.f32 0.0, %v1476
  %v1478 = vpop.f32.mrf.mxu0
  %v1479 = vadd.f32 0.0, %v1478
  %1480 = vdwg.mxu0
  %v1481 = vadd.f32 %v1063, %v1442
  %v1482 = vadd.f32 %v1064, %v1444
  %v1483 = vadd.f32 %v1065, %v1447
  %v1484 = vadd.f32 %v1066, %v1449
  %v1485 = vadd.f32 %v1067, %v1452
  %v1486 = vadd.f32 %v1068, %v1454
  %v1487 = vadd.f32 %v1069, %v1457
  %v1488 = vadd.f32 %v1070, %v1459
  %v1489 = vadd.f32 %v1071, %v1462
  %v1490 = vadd.f32 %v1072, %v1464
  %v1491 = vadd.f32 %v1073, %v1467
  %v1492 = vadd.f32 %v1074, %v1469
  %v1493 = vadd.f32 %v1075, %v1472
  %v1494 = vadd.f32 %v1076, %v1474
  %v1495 = vadd.f32 %v1077, %v1477
  %v1496 = vadd.f32 %v1078, %v1479
  %v1497 = vld [vmem:[%s884] sm:$0xe]
  %v1498 = vld [vmem:[%s884 + $0x8] sm:$0xe]
  %v1499 = vld [vmem:[%s884 + $0x10] sm:$0xe]
  %v1500 = vld [vmem:[%s884 + $0x18] sm:$0xe]
  %v1501 = vld [vmem:[%s884 + $0x20] sm:$0xe]
  %v1502 = vld [vmem:[%s884 + $0x28] sm:$0xe]
  %v1503 = vld [vmem:[%s884 + $0x30] sm:$0xe]
  %v1504 = vld [vmem:[%s884 + $0x38] sm:$0xe]
  %v1505 = vld [vmem:[%s884 + $0x50] sm:$0xe]
  %v1506 = vld [vmem:[%s884 + $0x58] sm:$0xe]
  %v1507 = vld [vmem:[%s884 + $0x60] sm:$0xe]
  %v1508 = vld [vmem:[%s884 + $0x68] sm:$0xe]
  %v1509 = vld [vmem:[%s884 + $0x70] sm:$0xe]
  %v1510 = vld [vmem:[%s884 + $0x78] sm:$0xe]
  %v1511 = vld [vmem:[%s884 + $0x80] sm:$0xe]
  %v1512 = vld [vmem:[%s884 + $0x88] sm:$0xe]
  %v1545 = vrot.slane %v1497, 5
  %v1546 = vrot.slane %v1545, 4
  %v1547 = vrot.slane %v1080, 5
  %v1548 = vsel %vm657, %v1546, %v1547
  %v1549 = vrot.slane %v1498, 5
  %v1550 = vrot.slane %v1549, 4
  %v1551 = vrot.slane %v1082, 5
  %v1552 = vsel %vm657, %v1550, %v1551
  %v1553 = vrot.slane %v1499, 5
  %v1554 = vrot.slane %v1553, 4
  %v1555 = vrot.slane %v1084, 5
  %v1556 = vsel %vm657, %v1554, %v1555
  %v1557 = vrot.slane %v1500, 5
  %v1558 = vrot.slane %v1557, 4
  %v1559 = vrot.slane %v1086, 5
  %v1560 = vsel %vm657, %v1558, %v1559
  %v1561 = vrot.slane %v1501, 5
  %v1562 = vrot.slane %v1561, 4
  %v1563 = vrot.slane %v1088, 5
  %v1564 = vsel %vm657, %v1562, %v1563
  %v1565 = vrot.slane %v1502, 5
  %v1566 = vrot.slane %v1565, 4
  %v1567 = vrot.slane %v1090, 5
  %v1568 = vsel %vm657, %v1566, %v1567
  %v1569 = vrot.slane %v1503, 5
  %v1570 = vrot.slane %v1569, 4
  %v1571 = vrot.slane %v1092, 5
  %v1572 = vsel %vm657, %v1570, %v1571
  %v1573 = vrot.slane %v1504, 5
  %v1574 = vrot.slane %v1573, 4
  %v1575 = vrot.slane %v1094, 5
  %v1576 = vsel %vm657, %v1574, %v1575
  %v1577 = vrot.slane %v1505, 5
  %v1578 = vrot.slane %v1577, 4
  %v1579 = vrot.slane %v1096, 5
  %v1580 = vsel %vm657, %v1578, %v1579
  %v1581 = vrot.slane %v1506, 5
  %v1582 = vrot.slane %v1581, 4
  %v1583 = vrot.slane %v1098, 5
  %v1584 = vsel %vm657, %v1582, %v1583
  %v1585 = vrot.slane %v1507, 5
  %v1586 = vrot.slane %v1585, 4
  %v1587 = vrot.slane %v1100, 5
  %v1588 = vsel %vm657, %v1586, %v1587
  %v1589 = vrot.slane %v1508, 5
  %v1590 = vrot.slane %v1589, 4
  %v1591 = vrot.slane %v1102, 5
  %v1592 = vsel %vm657, %v1590, %v1591
  %v1593 = vrot.slane %v1509, 5
  %v1594 = vrot.slane %v1593, 4
  %v1595 = vrot.slane %v1104, 5
  %v1596 = vsel %vm657, %v1594, %v1595
  %v1597 = vrot.slane %v1510, 5
  %v1598 = vrot.slane %v1597, 4
  %v1599 = vrot.slane %v1106, 5
  %v1600 = vsel %vm657, %v1598, %v1599
  %v1601 = vrot.slane %v1511, 5
  %v1602 = vrot.slane %v1601, 4
  %v1603 = vrot.slane %v1108, 5
  %v1604 = vsel %vm657, %v1602, %v1603
  %v1605 = vrot.slane %v1512, 5
  %v1606 = vrot.slane %v1605, 4
  %v1607 = vrot.slane %v1110, 5
  %v1608 = vsel %vm657, %v1606, %v1607
  %s1609 = scalar_lea.vmem %s1, 320
  %v1610 = vld [vmem:[%s1609] sm:$0xf]
  %v1611 = vld [vmem:[%s1609 + $0x4] sm:$0xf]
  %v1612 = vld [vmem:[%s1609 + $0x8] sm:$0xf]
  %v1613 = vld [vmem:[%s1609 + $0xc] sm:$0xf]
  %v1614 = vld [vmem:[%s1609 + $0x10] sm:$0xf]
  %v1615 = vld [vmem:[%s1609 + $0x14] sm:$0xf]
  %v1616 = vld [vmem:[%s1609 + $0x18] sm:$0xf]
  %v1617 = vld [vmem:[%s1609 + $0x1c] sm:$0xf]
  %v1618 = vld [vmem:[%s1609 + $0x20] sm:$0xf]
  %v1619 = vld [vmem:[%s1609 + $0x24] sm:$0xf]
  %v1620 = vld [vmem:[%s1609 + $0x28] sm:$0xf]
  %v1621 = vld [vmem:[%s1609 + $0x2c] sm:$0xf]
  %v1622 = vld [vmem:[%s1609 + $0x30] sm:$0xf]
  %v1623 = vld [vmem:[%s1609 + $0x34] sm:$0xf]
  %v1624 = vld [vmem:[%s1609 + $0x38] sm:$0xf]
  %v1625 = vld [vmem:[%s1609 + $0x3c] sm:$0xf]
  %v1626 = vunpack.c.l.b16 %v1548
  %v1627 = vunpack.c.l.b16 %v1552
  %v1628 = vunpack.c.l.b16 %v1556
  %v1629 = vunpack.c.l.b16 %v1560
  %v1630 = vunpack.c.l.b16 %v1564
  %v1631 = vunpack.c.l.b16 %v1568
  %v1632 = vunpack.c.l.b16 %v1572
  %v1633 = vunpack.c.l.b16 %v1576
  %v1634 = vunpack.c.l.b16 %v1580
  %v1635 = vunpack.c.l.b16 %v1584
  %v1636 = vunpack.c.l.b16 %v1588
  %v1637 = vunpack.c.l.b16 %v1592
  %v1638 = vunpack.c.l.b16 %v1596
  %v1639 = vunpack.c.l.b16 %v1600
  %v1640 = vunpack.c.l.b16 %v1604
  %v1641 = vunpack.c.l.b16 %v1608
  %v1642 = vpack.c.b16 %v1627, %v1626
  %v1643 = vpack.c.b16 %v1629, %v1628
  %v1644 = vpack.c.b16 %v1631, %v1630
  %v1645 = vpack.c.b16 %v1633, %v1632
  %v1646 = vpack.c.b16 %v1635, %v1634
  %v1647 = vpack.c.b16 %v1637, %v1636
  %v1648 = vpack.c.b16 %v1639, %v1638
  %v1649 = vpack.c.b16 %v1641, %v1640
  %v1674 = vunpack.c.l.b16 %v1610
  %v1675 = vunpack.c.l.b16 %v1611
  %v1676 = vunpack.c.l.b16 %v1612
  %v1677 = vunpack.c.l.b16 %v1613
  %v1678 = vunpack.c.l.b16 %v1614
  %v1679 = vunpack.c.l.b16 %v1615
  %v1680 = vunpack.c.l.b16 %v1616
  %v1681 = vunpack.c.l.b16 %v1617
  %v1682 = vunpack.c.l.b16 %v1618
  %v1683 = vunpack.c.l.b16 %v1619
  %v1684 = vunpack.c.l.b16 %v1620
  %v1685 = vunpack.c.l.b16 %v1621
  %v1686 = vunpack.c.l.b16 %v1622
  %v1687 = vunpack.c.l.b16 %v1623
  %v1688 = vunpack.c.l.b16 %v1624
  %v1689 = vunpack.c.l.b16 %v1625
  %v1690 = vpack.c.b16 %v1675, %v1674
  %v1691 = vpack.c.b16 %v1677, %v1676
  %v1692 = vpack.c.b16 %v1679, %v1678
  %v1693 = vpack.c.b16 %v1681, %v1680
  %v1694 = vpack.c.b16 %v1683, %v1682
  %v1695 = vpack.c.b16 %v1685, %v1684
  %v1696 = vpack.c.b16 %v1687, %v1686
  %v1697 = vpack.c.b16 %v1689, %v1688
  %1706 = vmatpush.bf16.msra.mxu0 %v1697
  %1707 = vmatpush.bf16.msra.mxu0 %v1696
  %1708 = vmatpush.bf16.msra.mxu0 %v1695
  %1709 = vmatpush.bf16.msra.mxu0 %v1694
  %1710 = vmatpush.bf16.msra.mxu0 %v1693
  %1711 = vmatpush.bf16.msra.mxu0 %v1692
  %1712 = vmatpush.bf16.msra.mxu0 %v1691
  %1713 = vmatpush.bf16.msra.mxu0 %v1690
  %1714 = vmatmul.bf16.gmra.mxu0 %v1642
  %v1715 = vpop.f32.mrf.mxu0
  %v1716 = vadd.f32 0.0, %v1715
  %v1717 = vpop.f32.mrf.mxu0
  %v1718 = vadd.f32 0.0, %v1717
  %1719 = vmatmul.bf16.gmra.mxu0 %v1643
  %v1720 = vpop.f32.mrf.mxu0
  %v1721 = vadd.f32 0.0, %v1720
  %v1722 = vpop.f32.mrf.mxu0
  %v1723 = vadd.f32 0.0, %v1722
  %1724 = vmatmul.bf16.gmra.mxu0 %v1644
  %v1725 = vpop.f32.mrf.mxu0
  %v1726 = vadd.f32 0.0, %v1725
  %v1727 = vpop.f32.mrf.mxu0
  %v1728 = vadd.f32 0.0, %v1727
  %1729 = vmatmul.bf16.gmra.mxu0 %v1645
  %v1730 = vpop.f32.mrf.mxu0
  %v1731 = vadd.f32 0.0, %v1730
  %v1732 = vpop.f32.mrf.mxu0
  %v1733 = vadd.f32 0.0, %v1732
  %1734 = vmatmul.bf16.gmra.mxu0 %v1646
  %v1735 = vpop.f32.mrf.mxu0
  %v1736 = vadd.f32 0.0, %v1735
  %v1737 = vpop.f32.mrf.mxu0
  %v1738 = vadd.f32 0.0, %v1737
  %1739 = vmatmul.bf16.gmra.mxu0 %v1647
  %v1740 = vpop.f32.mrf.mxu0
  %v1741 = vadd.f32 0.0, %v1740
  %v1742 = vpop.f32.mrf.mxu0
  %v1743 = vadd.f32 0.0, %v1742
  %1744 = vmatmul.bf16.gmra.mxu0 %v1648
  %v1745 = vpop.f32.mrf.mxu0
  %v1746 = vadd.f32 0.0, %v1745
  %v1747 = vpop.f32.mrf.mxu0
  %v1748 = vadd.f32 0.0, %v1747
  %1749 = vmatmul.bf16.gmra.mxu0 %v1649
  %v1750 = vpop.f32.mrf.mxu0
  %v1751 = vadd.f32 0.0, %v1750
  %v1752 = vpop.f32.mrf.mxu0
  %v1753 = vadd.f32 0.0, %v1752
  %1754 = vdwg.mxu0
  %v1755 = vadd.f32 %v1481, %v1716
  %v1756 = vadd.f32 %v1482, %v1718
  %v1757 = vadd.f32 %v1483, %v1721
  %v1758 = vadd.f32 %v1484, %v1723
  %v1759 = vadd.f32 %v1485, %v1726
  %v1760 = vadd.f32 %v1486, %v1728
  %v1761 = vadd.f32 %v1487, %v1731
  %v1762 = vadd.f32 %v1488, %v1733
  %v1763 = vadd.f32 %v1489, %v1736
  %v1764 = vadd.f32 %v1490, %v1738
  %v1765 = vadd.f32 %v1491, %v1741
  %v1766 = vadd.f32 %v1492, %v1743
  %v1767 = vadd.f32 %v1493, %v1746
  %v1768 = vadd.f32 %v1494, %v1748
  %v1769 = vadd.f32 %v1495, %v1751
  %v1770 = vadd.f32 %v1496, %v1753
  %s1771 = scalar_lea.vmem %s0, 16
  %v1772 = vld [vmem:[%s1771] sm:$0xf]
  %v1773 = vld [vmem:[%s1771 + $0x8] sm:$0xf]
  %v1774 = vld [vmem:[%s1771 + $0x10] sm:$0xf]
  %v1775 = vld [vmem:[%s1771 + $0x18] sm:$0xf]
  %v1776 = vld [vmem:[%s1771 + $0x20] sm:$0xf]
  %v1777 = vld [vmem:[%s1771 + $0x28] sm:$0xf]
  %v1778 = vld [vmem:[%s1771 + $0x30] sm:$0xf]
  %v1779 = vld [vmem:[%s1771 + $0x38] sm:$0xf]
  %v1780 = vld [vmem:[%s1771 + $0x50] sm:$0xf]
  %v1781 = vld [vmem:[%s1771 + $0x58] sm:$0xf]
  %v1782 = vld [vmem:[%s1771 + $0x60] sm:$0xf]
  %v1783 = vld [vmem:[%s1771 + $0x68] sm:$0xf]
  %v1784 = vld [vmem:[%s1771 + $0x70] sm:$0xf]
  %v1785 = vld [vmem:[%s1771 + $0x78] sm:$0xf]
  %v1786 = vld [vmem:[%s1771 + $0x80] sm:$0xf]
  %v1787 = vld [vmem:[%s1771 + $0x88] sm:$0xf]
  %s1788 = scalar_lea.vmem %s1, 384
  %v1789 = vld [vmem:[%s1788] sm:$0xf]
  %v1790 = vld [vmem:[%s1788 + $0x4] sm:$0xf]
  %v1791 = vld [vmem:[%s1788 + $0x8] sm:$0xf]
  %v1792 = vld [vmem:[%s1788 + $0xc] sm:$0xf]
  %v1793 = vld [vmem:[%s1788 + $0x10] sm:$0xf]
  %v1794 = vld [vmem:[%s1788 + $0x14] sm:$0xf]
  %v1795 = vld [vmem:[%s1788 + $0x18] sm:$0xf]
  %v1796 = vld [vmem:[%s1788 + $0x1c] sm:$0xf]
  %v1797 = vld [vmem:[%s1788 + $0x20] sm:$0xf]
  %v1798 = vld [vmem:[%s1788 + $0x24] sm:$0xf]
  %v1799 = vld [vmem:[%s1788 + $0x28] sm:$0xf]
  %v1800 = vld [vmem:[%s1788 + $0x2c] sm:$0xf]
  %v1801 = vld [vmem:[%s1788 + $0x30] sm:$0xf]
  %v1802 = vld [vmem:[%s1788 + $0x34] sm:$0xf]
  %v1803 = vld [vmem:[%s1788 + $0x38] sm:$0xf]
  %v1804 = vld [vmem:[%s1788 + $0x3c] sm:$0xf]
  %v1821 = vunpack.c.l.b16 %v1772
  %v1822 = vunpack.c.l.b16 %v1773
  %v1823 = vunpack.c.l.b16 %v1774
  %v1824 = vunpack.c.l.b16 %v1775
  %v1825 = vunpack.c.l.b16 %v1776
  %v1826 = vunpack.c.l.b16 %v1777
  %v1827 = vunpack.c.l.b16 %v1778
  %v1828 = vunpack.c.l.b16 %v1779
  %v1829 = vunpack.c.l.b16 %v1780
  %v1830 = vunpack.c.l.b16 %v1781
  %v1831 = vunpack.c.l.b16 %v1782
  %v1832 = vunpack.c.l.b16 %v1783
  %v1833 = vunpack.c.l.b16 %v1784
  %v1834 = vunpack.c.l.b16 %v1785
  %v1835 = vunpack.c.l.b16 %v1786
  %v1836 = vunpack.c.l.b16 %v1787
  %v1837 = vpack.c.b16 %v1822, %v1821
  %v1838 = vpack.c.b16 %v1824, %v1823
  %v1839 = vpack.c.b16 %v1826, %v1825
  %v1840 = vpack.c.b16 %v1828, %v1827
  %v1841 = vpack.c.b16 %v1830, %v1829
  %v1842 = vpack.c.b16 %v1832, %v1831
  %v1843 = vpack.c.b16 %v1834, %v1833
  %v1844 = vpack.c.b16 %v1836, %v1835
  %v1869 = vunpack.c.l.b16 %v1789
  %v1870 = vunpack.c.l.b16 %v1790
  %v1871 = vunpack.c.l.b16 %v1791
  %v1872 = vunpack.c.l.b16 %v1792
  %v1873 = vunpack.c.l.b16 %v1793
  %v1874 = vunpack.c.l.b16 %v1794
  %v1875 = vunpack.c.l.b16 %v1795
  %v1876 = vunpack.c.l.b16 %v1796
  %v1877 = vunpack.c.l.b16 %v1797
  %v1878 = vunpack.c.l.b16 %v1798
  %v1879 = vunpack.c.l.b16 %v1799
  %v1880 = vunpack.c.l.b16 %v1800
  %v1881 = vunpack.c.l.b16 %v1801
  %v1882 = vunpack.c.l.b16 %v1802
  %v1883 = vunpack.c.l.b16 %v1803
  %v1884 = vunpack.c.l.b16 %v1804
  %v1885 = vpack.c.b16 %v1870, %v1869
  %v1886 = vpack.c.b16 %v1872, %v1871
  %v1887 = vpack.c.b16 %v1874, %v1873
  %v1888 = vpack.c.b16 %v1876, %v1875
  %v1889 = vpack.c.b16 %v1878, %v1877
  %v1890 = vpack.c.b16 %v1880, %v1879
  %v1891 = vpack.c.b16 %v1882, %v1881
  %v1892 = vpack.c.b16 %v1884, %v1883
  %1901 = vmatpush.bf16.msra.mxu0 %v1892
  %1902 = vmatpush.bf16.msra.mxu0 %v1891
  %1903 = vmatpush.bf16.msra.mxu0 %v1890
  %1904 = vmatpush.bf16.msra.mxu0 %v1889
  %1905 = vmatpush.bf16.msra.mxu0 %v1888
  %1906 = vmatpush.bf16.msra.mxu0 %v1887
  %1907 = vmatpush.bf16.msra.mxu0 %v1886
  %1908 = vmatpush.bf16.msra.mxu0 %v1885
  %1909 = vmatmul.bf16.gmra.mxu0 %v1837
  %v1910 = vpop.f32.mrf.mxu0
  %v1911 = vadd.f32 0.0, %v1910
  %v1912 = vpop.f32.mrf.mxu0
  %v1913 = vadd.f32 0.0, %v1912
  %1914 = vmatmul.bf16.gmra.mxu0 %v1838
  %v1915 = vpop.f32.mrf.mxu0
  %v1916 = vadd.f32 0.0, %v1915
  %v1917 = vpop.f32.mrf.mxu0
  %v1918 = vadd.f32 0.0, %v1917
  %1919 = vmatmul.bf16.gmra.mxu0 %v1839
  %v1920 = vpop.f32.mrf.mxu0
  %v1921 = vadd.f32 0.0, %v1920
  %v1922 = vpop.f32.mrf.mxu0
  %v1923 = vadd.f32 0.0, %v1922
  %1924 = vmatmul.bf16.gmra.mxu0 %v1840
  %v1925 = vpop.f32.mrf.mxu0
  %v1926 = vadd.f32 0.0, %v1925
  %v1927 = vpop.f32.mrf.mxu0
  %v1928 = vadd.f32 0.0, %v1927
  %1929 = vmatmul.bf16.gmra.mxu0 %v1841
  %v1930 = vpop.f32.mrf.mxu0
  %v1931 = vadd.f32 0.0, %v1930
  %v1932 = vpop.f32.mrf.mxu0
  %v1933 = vadd.f32 0.0, %v1932
  %1934 = vmatmul.bf16.gmra.mxu0 %v1842
  %v1935 = vpop.f32.mrf.mxu0
  %v1936 = vadd.f32 0.0, %v1935
  %v1937 = vpop.f32.mrf.mxu0
  %v1938 = vadd.f32 0.0, %v1937
  %1939 = vmatmul.bf16.gmra.mxu0 %v1843
  %v1940 = vpop.f32.mrf.mxu0
  %v1941 = vadd.f32 0.0, %v1940
  %v1942 = vpop.f32.mrf.mxu0
  %v1943 = vadd.f32 0.0, %v1942
  %1944 = vmatmul.bf16.gmra.mxu0 %v1844
  %v1945 = vpop.f32.mrf.mxu0
  %v1946 = vadd.f32 0.0, %v1945
  %v1947 = vpop.f32.mrf.mxu0
  %v1948 = vadd.f32 0.0, %v1947
  %1949 = vdwg.mxu0
  %v1950 = vadd.f32 %v1755, %v1911
  %v1951 = vadd.f32 %v1756, %v1913
  %v1952 = vadd.f32 %v1757, %v1916
  %v1953 = vadd.f32 %v1758, %v1918
  %v1954 = vadd.f32 %v1759, %v1921
  %v1955 = vadd.f32 %v1760, %v1923
  %v1956 = vadd.f32 %v1761, %v1926
  %v1957 = vadd.f32 %v1762, %v1928
  %v1958 = vadd.f32 %v1763, %v1931
  %v1959 = vadd.f32 %v1764, %v1933
  %v1960 = vadd.f32 %v1765, %v1936
  %v1961 = vadd.f32 %v1766, %v1938
  %v1962 = vadd.f32 %v1767, %v1941
  %v1963 = vadd.f32 %v1768, %v1943
  %v1964 = vadd.f32 %v1769, %v1946
  %v1965 = vadd.f32 %v1770, %v1948
  %v1966 = vld [vmem:[%s1771] sm:$0xf]
  %v1967 = vld [vmem:[%s1771 + $0x4] sm:$0x1]
  %v1968 = vld [vmem:[%s1771 + $0x8] sm:$0xf]
  %v1969 = vld [vmem:[%s1771 + $0xc] sm:$0x1]
  %v1970 = vld [vmem:[%s1771 + $0x10] sm:$0xf]
  %v1971 = vld [vmem:[%s1771 + $0x14] sm:$0x1]
  %v1972 = vld [vmem:[%s1771 + $0x18] sm:$0xf]
  %v1973 = vld [vmem:[%s1771 + $0x1c] sm:$0x1]
  %v1974 = vld [vmem:[%s1771 + $0x20] sm:$0xf]
  %v1975 = vld [vmem:[%s1771 + $0x24] sm:$0x1]
  %v1976 = vld [vmem:[%s1771 + $0x28] sm:$0xf]
  %v1977 = vld [vmem:[%s1771 + $0x2c] sm:$0x1]
  %v1978 = vld [vmem:[%s1771 + $0x30] sm:$0xf]
  %v1979 = vld [vmem:[%s1771 + $0x34] sm:$0x1]
  %v1980 = vld [vmem:[%s1771 + $0x38] sm:$0xf]
  %v1981 = vld [vmem:[%s1771 + $0x3c] sm:$0x1]
  %v1982 = vld [vmem:[%s1771 + $0x50] sm:$0xf]
  %v1983 = vld [vmem:[%s1771 + $0x54] sm:$0x1]
  %v1984 = vld [vmem:[%s1771 + $0x58] sm:$0xf]
  %v1985 = vld [vmem:[%s1771 + $0x5c] sm:$0x1]
  %v1986 = vld [vmem:[%s1771 + $0x60] sm:$0xf]
  %v1987 = vld [vmem:[%s1771 + $0x64] sm:$0x1]
  %v1988 = vld [vmem:[%s1771 + $0x68] sm:$0xf]
  %v1989 = vld [vmem:[%s1771 + $0x6c] sm:$0x1]
  %v1990 = vld [vmem:[%s1771 + $0x70] sm:$0xf]
  %v1991 = vld [vmem:[%s1771 + $0x74] sm:$0x1]
  %v1992 = vld [vmem:[%s1771 + $0x78] sm:$0xf]
  %v1993 = vld [vmem:[%s1771 + $0x7c] sm:$0x1]
  %v1994 = vld [vmem:[%s1771 + $0x80] sm:$0xf]
  %v1995 = vld [vmem:[%s1771 + $0x84] sm:$0x1]
  %v1996 = vld [vmem:[%s1771 + $0x88] sm:$0xf]
  %v1997 = vld [vmem:[%s1771 + $0x8c] sm:$0x1]
  %v1999 = vshrl.u32 %v1966, 16
  %v2001 = vrot.slane %v1999, 4
  %v2002 = vshll.u32 %v1966, 16
  %v2004 = vrot.slane %v2002, 5
  %v2005 = vor.u32 %v2001, %v2004
  %v2006 = vrot.slane %v2005, 4
  %v2008 = vshll.u32 %v1967, 16
  %v2010 = vrot.slane %v2008, 5
  %v2011 = vsel %vm91, %v2006, %v2010
  %v2013 = vshrl.u32 %v1968, 16
  %v2015 = vrot.slane %v2013, 4
  %v2016 = vshll.u32 %v1968, 16
  %v2018 = vrot.slane %v2016, 5
  %v2019 = vor.u32 %v2015, %v2018
  %v2020 = vrot.slane %v2019, 4
  %v2022 = vshll.u32 %v1969, 16
  %v2024 = vrot.slane %v2022, 5
  %v2025 = vsel %vm91, %v2020, %v2024
  %v2027 = vshrl.u32 %v1970, 16
  %v2029 = vrot.slane %v2027, 4
  %v2030 = vshll.u32 %v1970, 16
  %v2032 = vrot.slane %v2030, 5
  %v2033 = vor.u32 %v2029, %v2032
  %v2034 = vrot.slane %v2033, 4
  %v2036 = vshll.u32 %v1971, 16
  %v2038 = vrot.slane %v2036, 5
  %v2039 = vsel %vm91, %v2034, %v2038
  %v2041 = vshrl.u32 %v1972, 16
  %v2043 = vrot.slane %v2041, 4
  %v2044 = vshll.u32 %v1972, 16
  %v2046 = vrot.slane %v2044, 5
  %v2047 = vor.u32 %v2043, %v2046
  %v2048 = vrot.slane %v2047, 4
  %v2050 = vshll.u32 %v1973, 16
  %v2052 = vrot.slane %v2050, 5
  %v2053 = vsel %vm91, %v2048, %v2052
  %v2055 = vshrl.u32 %v1974, 16
  %v2057 = vrot.slane %v2055, 4
  %v2058 = vshll.u32 %v1974, 16
  %v2060 = vrot.slane %v2058, 5
  %v2061 = vor.u32 %v2057, %v2060
  %v2062 = vrot.slane %v2061, 4
  %v2064 = vshll.u32 %v1975, 16
  %v2066 = vrot.slane %v2064, 5
  %v2067 = vsel %vm91, %v2062, %v2066
  %v2069 = vshrl.u32 %v1976, 16
  %v2071 = vrot.slane %v2069, 4
  %v2072 = vshll.u32 %v1976, 16
  %v2074 = vrot.slane %v2072, 5
  %v2075 = vor.u32 %v2071, %v2074
  %v2076 = vrot.slane %v2075, 4
  %v2078 = vshll.u32 %v1977, 16
  %v2080 = vrot.slane %v2078, 5
  %v2081 = vsel %vm91, %v2076, %v2080
  %v2083 = vshrl.u32 %v1978, 16
  %v2085 = vrot.slane %v2083, 4
  %v2086 = vshll.u32 %v1978, 16
  %v2088 = vrot.slane %v2086, 5
  %v2089 = vor.u32 %v2085, %v2088
  %v2090 = vrot.slane %v2089, 4
  %v2092 = vshll.u32 %v1979, 16
  %v2094 = vrot.slane %v2092, 5
  %v2095 = vsel %vm91, %v2090, %v2094
  %v2097 = vshrl.u32 %v1980, 16
  %v2099 = vrot.slane %v2097, 4
  %v2100 = vshll.u32 %v1980, 16
  %v2102 = vrot.slane %v2100, 5
  %v2103 = vor.u32 %v2099, %v2102
  %v2104 = vrot.slane %v2103, 4
  %v2106 = vshll.u32 %v1981, 16
  %v2108 = vrot.slane %v2106, 5
  %v2109 = vsel %vm91, %v2104, %v2108
  %v2111 = vshrl.u32 %v1982, 16
  %v2113 = vrot.slane %v2111, 4
  %v2114 = vshll.u32 %v1982, 16
  %v2116 = vrot.slane %v2114, 5
  %v2117 = vor.u32 %v2113, %v2116
  %v2118 = vrot.slane %v2117, 4
  %v2120 = vshll.u32 %v1983, 16
  %v2122 = vrot.slane %v2120, 5
  %v2123 = vsel %vm91, %v2118, %v2122
  %v2125 = vshrl.u32 %v1984, 16
  %v2127 = vrot.slane %v2125, 4
  %v2128 = vshll.u32 %v1984, 16
  %v2130 = vrot.slane %v2128, 5
  %v2131 = vor.u32 %v2127, %v2130
  %v2132 = vrot.slane %v2131, 4
  %v2134 = vshll.u32 %v1985, 16
  %v2136 = vrot.slane %v2134, 5
  %v2137 = vsel %vm91, %v2132, %v2136
  %v2139 = vshrl.u32 %v1986, 16
  %v2141 = vrot.slane %v2139, 4
  %v2142 = vshll.u32 %v1986, 16
  %v2144 = vrot.slane %v2142, 5
  %v2145 = vor.u32 %v2141, %v2144
  %v2146 = vrot.slane %v2145, 4
  %v2148 = vshll.u32 %v1987, 16
  %v2150 = vrot.slane %v2148, 5
  %v2151 = vsel %vm91, %v2146, %v2150
  %v2153 = vshrl.u32 %v1988, 16
  %v2155 = vrot.slane %v2153, 4
  %v2156 = vshll.u32 %v1988, 16
  %v2158 = vrot.slane %v2156, 5
  %v2159 = vor.u32 %v2155, %v2158
  %v2160 = vrot.slane %v2159, 4
  %v2162 = vshll.u32 %v1989, 16
  %v2164 = vrot.slane %v2162, 5
  %v2165 = vsel %vm91, %v2160, %v2164
  %v2167 = vshrl.u32 %v1990, 16
  %v2169 = vrot.slane %v2167, 4
  %v2170 = vshll.u32 %v1990, 16
  %v2172 = vrot.slane %v2170, 5
  %v2173 = vor.u32 %v2169, %v2172
  %v2174 = vrot.slane %v2173, 4
  %v2176 = vshll.u32 %v1991, 16
  %v2178 = vrot.slane %v2176, 5
  %v2179 = vsel %vm91, %v2174, %v2178
  %v2181 = vshrl.u32 %v1992, 16
  %v2183 = vrot.slane %v2181, 4
  %v2184 = vshll.u32 %v1992, 16
  %v2186 = vrot.slane %v2184, 5
  %v2187 = vor.u32 %v2183, %v2186
  %v2188 = vrot.slane %v2187, 4
  %v2190 = vshll.u32 %v1993, 16
  %v2192 = vrot.slane %v2190, 5
  %v2193 = vsel %vm91, %v2188, %v2192
  %v2195 = vshrl.u32 %v1994, 16
  %v2197 = vrot.slane %v2195, 4
  %v2198 = vshll.u32 %v1994, 16
  %v2200 = vrot.slane %v2198, 5
  %v2201 = vor.u32 %v2197, %v2200
  %v2202 = vrot.slane %v2201, 4
  %v2204 = vshll.u32 %v1995, 16
  %v2206 = vrot.slane %v2204, 5
  %v2207 = vsel %vm91, %v2202, %v2206
  %v2209 = vshrl.u32 %v1996, 16
  %v2211 = vrot.slane %v2209, 4
  %v2212 = vshll.u32 %v1996, 16
  %v2214 = vrot.slane %v2212, 5
  %v2215 = vor.u32 %v2211, %v2214
  %v2216 = vrot.slane %v2215, 4
  %v2218 = vshll.u32 %v1997, 16
  %v2220 = vrot.slane %v2218, 5
  %v2221 = vsel %vm91, %v2216, %v2220
  %s2222 = scalar_lea.vmem %s1, 448
  %v2223 = vld [vmem:[%s2222] sm:$0xf]
  %v2224 = vld [vmem:[%s2222 + $0x4] sm:$0xf]
  %v2225 = vld [vmem:[%s2222 + $0x8] sm:$0xf]
  %v2226 = vld [vmem:[%s2222 + $0xc] sm:$0xf]
  %v2227 = vld [vmem:[%s2222 + $0x10] sm:$0xf]
  %v2228 = vld [vmem:[%s2222 + $0x14] sm:$0xf]
  %v2229 = vld [vmem:[%s2222 + $0x18] sm:$0xf]
  %v2230 = vld [vmem:[%s2222 + $0x1c] sm:$0xf]
  %v2231 = vld [vmem:[%s2222 + $0x20] sm:$0xf]
  %v2232 = vld [vmem:[%s2222 + $0x24] sm:$0xf]
  %v2233 = vld [vmem:[%s2222 + $0x28] sm:$0xf]
  %v2234 = vld [vmem:[%s2222 + $0x2c] sm:$0xf]
  %v2235 = vld [vmem:[%s2222 + $0x30] sm:$0xf]
  %v2236 = vld [vmem:[%s2222 + $0x34] sm:$0xf]
  %v2237 = vld [vmem:[%s2222 + $0x38] sm:$0xf]
  %v2238 = vld [vmem:[%s2222 + $0x3c] sm:$0xf]
  %v2239 = vunpack.c.l.b16 %v2011
  %v2240 = vunpack.c.l.b16 %v2025
  %v2241 = vunpack.c.l.b16 %v2039
  %v2242 = vunpack.c.l.b16 %v2053
  %v2243 = vunpack.c.l.b16 %v2067
  %v2244 = vunpack.c.l.b16 %v2081
  %v2245 = vunpack.c.l.b16 %v2095
  %v2246 = vunpack.c.l.b16 %v2109
  %v2247 = vunpack.c.l.b16 %v2123
  %v2248 = vunpack.c.l.b16 %v2137
  %v2249 = vunpack.c.l.b16 %v2151
  %v2250 = vunpack.c.l.b16 %v2165
  %v2251 = vunpack.c.l.b16 %v2179
  %v2252 = vunpack.c.l.b16 %v2193
  %v2253 = vunpack.c.l.b16 %v2207
  %v2254 = vunpack.c.l.b16 %v2221
  %v2255 = vpack.c.b16 %v2240, %v2239
  %v2256 = vpack.c.b16 %v2242, %v2241
  %v2257 = vpack.c.b16 %v2244, %v2243
  %v2258 = vpack.c.b16 %v2246, %v2245
  %v2259 = vpack.c.b16 %v2248, %v2247
  %v2260 = vpack.c.b16 %v2250, %v2249
  %v2261 = vpack.c.b16 %v2252, %v2251
  %v2262 = vpack.c.b16 %v2254, %v2253
  %v2287 = vunpack.c.l.b16 %v2223
  %v2288 = vunpack.c.l.b16 %v2224
  %v2289 = vunpack.c.l.b16 %v2225
  %v2290 = vunpack.c.l.b16 %v2226
  %v2291 = vunpack.c.l.b16 %v2227
  %v2292 = vunpack.c.l.b16 %v2228
  %v2293 = vunpack.c.l.b16 %v2229
  %v2294 = vunpack.c.l.b16 %v2230
  %v2295 = vunpack.c.l.b16 %v2231
  %v2296 = vunpack.c.l.b16 %v2232
  %v2297 = vunpack.c.l.b16 %v2233
  %v2298 = vunpack.c.l.b16 %v2234
  %v2299 = vunpack.c.l.b16 %v2235
  %v2300 = vunpack.c.l.b16 %v2236
  %v2301 = vunpack.c.l.b16 %v2237
  %v2302 = vunpack.c.l.b16 %v2238
  %v2303 = vpack.c.b16 %v2288, %v2287
  %v2304 = vpack.c.b16 %v2290, %v2289
  %v2305 = vpack.c.b16 %v2292, %v2291
  %v2306 = vpack.c.b16 %v2294, %v2293
  %v2307 = vpack.c.b16 %v2296, %v2295
  %v2308 = vpack.c.b16 %v2298, %v2297
  %v2309 = vpack.c.b16 %v2300, %v2299
  %v2310 = vpack.c.b16 %v2302, %v2301
  %2319 = vmatpush.bf16.msra.mxu0 %v2310
  %2320 = vmatpush.bf16.msra.mxu0 %v2309
  %2321 = vmatpush.bf16.msra.mxu0 %v2308
  %2322 = vmatpush.bf16.msra.mxu0 %v2307
  %2323 = vmatpush.bf16.msra.mxu0 %v2306
  %2324 = vmatpush.bf16.msra.mxu0 %v2305
  %2325 = vmatpush.bf16.msra.mxu0 %v2304
  %2326 = vmatpush.bf16.msra.mxu0 %v2303
  %2327 = vmatmul.bf16.gmra.mxu0 %v2255
  %v2328 = vpop.f32.mrf.mxu0
  %v2329 = vadd.f32 0.0, %v2328
  %v2330 = vpop.f32.mrf.mxu0
  %v2331 = vadd.f32 0.0, %v2330
  %2332 = vmatmul.bf16.gmra.mxu0 %v2256
  %v2333 = vpop.f32.mrf.mxu0
  %v2334 = vadd.f32 0.0, %v2333
  %v2335 = vpop.f32.mrf.mxu0
  %v2336 = vadd.f32 0.0, %v2335
  %2337 = vmatmul.bf16.gmra.mxu0 %v2257
  %v2338 = vpop.f32.mrf.mxu0
  %v2339 = vadd.f32 0.0, %v2338
  %v2340 = vpop.f32.mrf.mxu0
  %v2341 = vadd.f32 0.0, %v2340
  %2342 = vmatmul.bf16.gmra.mxu0 %v2258
  %v2343 = vpop.f32.mrf.mxu0
  %v2344 = vadd.f32 0.0, %v2343
  %v2345 = vpop.f32.mrf.mxu0
  %v2346 = vadd.f32 0.0, %v2345
  %2347 = vmatmul.bf16.gmra.mxu0 %v2259
  %v2348 = vpop.f32.mrf.mxu0
  %v2349 = vadd.f32 0.0, %v2348
  %v2350 = vpop.f32.mrf.mxu0
  %v2351 = vadd.f32 0.0, %v2350
  %2352 = vmatmul.bf16.gmra.mxu0 %v2260
  %v2353 = vpop.f32.mrf.mxu0
  %v2354 = vadd.f32 0.0, %v2353
  %v2355 = vpop.f32.mrf.mxu0
  %v2356 = vadd.f32 0.0, %v2355
  %2357 = vmatmul.bf16.gmra.mxu0 %v2261
  %v2358 = vpop.f32.mrf.mxu0
  %v2359 = vadd.f32 0.0, %v2358
  %v2360 = vpop.f32.mrf.mxu0
  %v2361 = vadd.f32 0.0, %v2360
  %2362 = vmatmul.bf16.gmra.mxu0 %v2262
  %v2363 = vpop.f32.mrf.mxu0
  %v2364 = vadd.f32 0.0, %v2363
  %v2365 = vpop.f32.mrf.mxu0
  %v2366 = vadd.f32 0.0, %v2365
  %2367 = vdwg.mxu0
  %v2368 = vadd.f32 %v1950, %v2329
  %v2369 = vadd.f32 %v1951, %v2331
  %v2370 = vadd.f32 %v1952, %v2334
  %v2371 = vadd.f32 %v1953, %v2336
  %v2372 = vadd.f32 %v1954, %v2339
  %v2373 = vadd.f32 %v1955, %v2341
  %v2374 = vadd.f32 %v1956, %v2344
  %v2375 = vadd.f32 %v1957, %v2346
  %v2376 = vadd.f32 %v1958, %v2349
  %v2377 = vadd.f32 %v1959, %v2351
  %v2378 = vadd.f32 %v1960, %v2354
  %v2379 = vadd.f32 %v1961, %v2356
  %v2380 = vadd.f32 %v1962, %v2359
  %v2381 = vadd.f32 %v1963, %v2361
  %v2382 = vadd.f32 %v1964, %v2364
  %v2383 = vadd.f32 %v1965, %v2366
  %v2384 = vld [vmem:[%s1771] sm:$0xe]
  %v2385 = vld [vmem:[%s1771 + $0x8] sm:$0xe]
  %v2386 = vld [vmem:[%s1771 + $0x10] sm:$0xe]
  %v2387 = vld [vmem:[%s1771 + $0x18] sm:$0xe]
  %v2388 = vld [vmem:[%s1771 + $0x20] sm:$0xe]
  %v2389 = vld [vmem:[%s1771 + $0x28] sm:$0xe]
  %v2390 = vld [vmem:[%s1771 + $0x30] sm:$0xe]
  %v2391 = vld [vmem:[%s1771 + $0x38] sm:$0xe]
  %v2392 = vld [vmem:[%s1771 + $0x50] sm:$0xe]
  %v2393 = vld [vmem:[%s1771 + $0x58] sm:$0xe]
  %v2394 = vld [vmem:[%s1771 + $0x60] sm:$0xe]
  %v2395 = vld [vmem:[%s1771 + $0x68] sm:$0xe]
  %v2396 = vld [vmem:[%s1771 + $0x70] sm:$0xe]
  %v2397 = vld [vmem:[%s1771 + $0x78] sm:$0xe]
  %v2398 = vld [vmem:[%s1771 + $0x80] sm:$0xe]
  %v2399 = vld [vmem:[%s1771 + $0x88] sm:$0xe]
  %v2432 = vrot.slane %v2384, 5
  %v2433 = vrot.slane %v2432, 4
  %v2434 = vrot.slane %v1967, 5
  %v2435 = vsel %vm657, %v2433, %v2434
  %v2436 = vrot.slane %v2385, 5
  %v2437 = vrot.slane %v2436, 4
  %v2438 = vrot.slane %v1969, 5
  %v2439 = vsel %vm657, %v2437, %v2438
  %v2440 = vrot.slane %v2386, 5
  %v2441 = vrot.slane %v2440, 4
  %v2442 = vrot.slane %v1971, 5
  %v2443 = vsel %vm657, %v2441, %v2442
  %v2444 = vrot.slane %v2387, 5
  %v2445 = vrot.slane %v2444, 4
  %v2446 = vrot.slane %v1973, 5
  %v2447 = vsel %vm657, %v2445, %v2446
  %v2448 = vrot.slane %v2388, 5
  %v2449 = vrot.slane %v2448, 4
  %v2450 = vrot.slane %v1975, 5
  %v2451 = vsel %vm657, %v2449, %v2450
  %v2452 = vrot.slane %v2389, 5
  %v2453 = vrot.slane %v2452, 4
  %v2454 = vrot.slane %v1977, 5
  %v2455 = vsel %vm657, %v2453, %v2454
  %v2456 = vrot.slane %v2390, 5
  %v2457 = vrot.slane %v2456, 4
  %v2458 = vrot.slane %v1979, 5
  %v2459 = vsel %vm657, %v2457, %v2458
  %v2460 = vrot.slane %v2391, 5
  %v2461 = vrot.slane %v2460, 4
  %v2462 = vrot.slane %v1981, 5
  %v2463 = vsel %vm657, %v2461, %v2462
  %v2464 = vrot.slane %v2392, 5
  %v2465 = vrot.slane %v2464, 4
  %v2466 = vrot.slane %v1983, 5
  %v2467 = vsel %vm657, %v2465, %v2466
  %v2468 = vrot.slane %v2393, 5
  %v2469 = vrot.slane %v2468, 4
  %v2470 = vrot.slane %v1985, 5
  %v2471 = vsel %vm657, %v2469, %v2470
  %v2472 = vrot.slane %v2394, 5
  %v2473 = vrot.slane %v2472, 4
  %v2474 = vrot.slane %v1987, 5
  %v2475 = vsel %vm657, %v2473, %v2474
  %v2476 = vrot.slane %v2395, 5
  %v2477 = vrot.slane %v2476, 4
  %v2478 = vrot.slane %v1989, 5
  %v2479 = vsel %vm657, %v2477, %v2478
  %v2480 = vrot.slane %v2396, 5
  %v2481 = vrot.slane %v2480, 4
  %v2482 = vrot.slane %v1991, 5
  %v2483 = vsel %vm657, %v2481, %v2482
  %v2484 = vrot.slane %v2397, 5
  %v2485 = vrot.slane %v2484, 4
  %v2486 = vrot.slane %v1993, 5
  %v2487 = vsel %vm657, %v2485, %v2486
  %v2488 = vrot.slane %v2398, 5
  %v2489 = vrot.slane %v2488, 4
  %v2490 = vrot.slane %v1995, 5
  %v2491 = vsel %vm657, %v2489, %v2490
  %v2492 = vrot.slane %v2399, 5
  %v2493 = vrot.slane %v2492, 4
  %v2494 = vrot.slane %v1997, 5
  %v2495 = vsel %vm657, %v2493, %v2494
  %s2496 = scalar_lea.vmem %s1, 512
  %v2497 = vld [vmem:[%s2496] sm:$0xf]
  %v2498 = vld [vmem:[%s2496 + $0x4] sm:$0xf]
  %v2499 = vld [vmem:[%s2496 + $0x8] sm:$0xf]
  %v2500 = vld [vmem:[%s2496 + $0xc] sm:$0xf]
  %v2501 = vld [vmem:[%s2496 + $0x10] sm:$0xf]
  %v2502 = vld [vmem:[%s2496 + $0x14] sm:$0xf]
  %v2503 = vld [vmem:[%s2496 + $0x18] sm:$0xf]
  %v2504 = vld [vmem:[%s2496 + $0x1c] sm:$0xf]
  %v2505 = vld [vmem:[%s2496 + $0x20] sm:$0xf]
  %v2506 = vld [vmem:[%s2496 + $0x24] sm:$0xf]
  %v2507 = vld [vmem:[%s2496 + $0x28] sm:$0xf]
  %v2508 = vld [vmem:[%s2496 + $0x2c] sm:$0xf]
  %v2509 = vld [vmem:[%s2496 + $0x30] sm:$0xf]
  %v2510 = vld [vmem:[%s2496 + $0x34] sm:$0xf]
  %v2511 = vld [vmem:[%s2496 + $0x38] sm:$0xf]
  %v2512 = vld [vmem:[%s2496 + $0x3c] sm:$0xf]
  %v2513 = vunpack.c.l.b16 %v2435
  %v2514 = vunpack.c.l.b16 %v2439
  %v2515 = vunpack.c.l.b16 %v2443
  %v2516 = vunpack.c.l.b16 %v2447
  %v2517 = vunpack.c.l.b16 %v2451
  %v2518 = vunpack.c.l.b16 %v2455
  %v2519 = vunpack.c.l.b16 %v2459
  %v2520 = vunpack.c.l.b16 %v2463
  %v2521 = vunpack.c.l.b16 %v2467
  %v2522 = vunpack.c.l.b16 %v2471
  %v2523 = vunpack.c.l.b16 %v2475
  %v2524 = vunpack.c.l.b16 %v2479
  %v2525 = vunpack.c.l.b16 %v2483
  %v2526 = vunpack.c.l.b16 %v2487
  %v2527 = vunpack.c.l.b16 %v2491
  %v2528 = vunpack.c.l.b16 %v2495
  %v2529 = vpack.c.b16 %v2514, %v2513
  %v2530 = vpack.c.b16 %v2516, %v2515
  %v2531 = vpack.c.b16 %v2518, %v2517
  %v2532 = vpack.c.b16 %v2520, %v2519
  %v2533 = vpack.c.b16 %v2522, %v2521
  %v2534 = vpack.c.b16 %v2524, %v2523
  %v2535 = vpack.c.b16 %v2526, %v2525
  %v2536 = vpack.c.b16 %v2528, %v2527
  %v2561 = vunpack.c.l.b16 %v2497
  %v2562 = vunpack.c.l.b16 %v2498
  %v2563 = vunpack.c.l.b16 %v2499
  %v2564 = vunpack.c.l.b16 %v2500
  %v2565 = vunpack.c.l.b16 %v2501
  %v2566 = vunpack.c.l.b16 %v2502
  %v2567 = vunpack.c.l.b16 %v2503
  %v2568 = vunpack.c.l.b16 %v2504
  %v2569 = vunpack.c.l.b16 %v2505
  %v2570 = vunpack.c.l.b16 %v2506
  %v2571 = vunpack.c.l.b16 %v2507
  %v2572 = vunpack.c.l.b16 %v2508
  %v2573 = vunpack.c.l.b16 %v2509
  %v2574 = vunpack.c.l.b16 %v2510
  %v2575 = vunpack.c.l.b16 %v2511
  %v2576 = vunpack.c.l.b16 %v2512
  %v2577 = vpack.c.b16 %v2562, %v2561
  %v2578 = vpack.c.b16 %v2564, %v2563
  %v2579 = vpack.c.b16 %v2566, %v2565
  %v2580 = vpack.c.b16 %v2568, %v2567
  %v2581 = vpack.c.b16 %v2570, %v2569
  %v2582 = vpack.c.b16 %v2572, %v2571
  %v2583 = vpack.c.b16 %v2574, %v2573
  %v2584 = vpack.c.b16 %v2576, %v2575
  %2593 = vmatpush.bf16.msra.mxu0 %v2584
  %2594 = vmatpush.bf16.msra.mxu0 %v2583
  %2595 = vmatpush.bf16.msra.mxu0 %v2582
  %2596 = vmatpush.bf16.msra.mxu0 %v2581
  %2597 = vmatpush.bf16.msra.mxu0 %v2580
  %2598 = vmatpush.bf16.msra.mxu0 %v2579
  %2599 = vmatpush.bf16.msra.mxu0 %v2578
  %2600 = vmatpush.bf16.msra.mxu0 %v2577
  %2601 = vmatmul.bf16.gmra.mxu0 %v2529
  %v2602 = vpop.f32.mrf.mxu0
  %v2603 = vadd.f32 0.0, %v2602
  %v2604 = vpop.f32.mrf.mxu0
  %v2605 = vadd.f32 0.0, %v2604
  %2606 = vmatmul.bf16.gmra.mxu0 %v2530
  %v2607 = vpop.f32.mrf.mxu0
  %v2608 = vadd.f32 0.0, %v2607
  %v2609 = vpop.f32.mrf.mxu0
  %v2610 = vadd.f32 0.0, %v2609
  %2611 = vmatmul.bf16.gmra.mxu0 %v2531
  %v2612 = vpop.f32.mrf.mxu0
  %v2613 = vadd.f32 0.0, %v2612
  %v2614 = vpop.f32.mrf.mxu0
  %v2615 = vadd.f32 0.0, %v2614
  %2616 = vmatmul.bf16.gmra.mxu0 %v2532
  %v2617 = vpop.f32.mrf.mxu0
  %v2618 = vadd.f32 0.0, %v2617
  %v2619 = vpop.f32.mrf.mxu0
  %v2620 = vadd.f32 0.0, %v2619
  %2621 = vmatmul.bf16.gmra.mxu0 %v2533
  %v2622 = vpop.f32.mrf.mxu0
  %v2623 = vadd.f32 0.0, %v2622
  %v2624 = vpop.f32.mrf.mxu0
  %v2625 = vadd.f32 0.0, %v2624
  %2626 = vmatmul.bf16.gmra.mxu0 %v2534
  %v2627 = vpop.f32.mrf.mxu0
  %v2628 = vadd.f32 0.0, %v2627
  %v2629 = vpop.f32.mrf.mxu0
  %v2630 = vadd.f32 0.0, %v2629
  %2631 = vmatmul.bf16.gmra.mxu0 %v2535
  %v2632 = vpop.f32.mrf.mxu0
  %v2633 = vadd.f32 0.0, %v2632
  %v2634 = vpop.f32.mrf.mxu0
  %v2635 = vadd.f32 0.0, %v2634
  %2636 = vmatmul.bf16.gmra.mxu0 %v2536
  %v2637 = vpop.f32.mrf.mxu0
  %v2638 = vadd.f32 0.0, %v2637
  %v2639 = vpop.f32.mrf.mxu0
  %v2640 = vadd.f32 0.0, %v2639
  %2641 = vdwg.mxu0
  %v2642 = vadd.f32 %v2368, %v2603
  %v2643 = vadd.f32 %v2369, %v2605
  %v2644 = vadd.f32 %v2370, %v2608
  %v2645 = vadd.f32 %v2371, %v2610
  %v2646 = vadd.f32 %v2372, %v2613
  %v2647 = vadd.f32 %v2373, %v2615
  %v2648 = vadd.f32 %v2374, %v2618
  %v2649 = vadd.f32 %v2375, %v2620
  %v2650 = vadd.f32 %v2376, %v2623
  %v2651 = vadd.f32 %v2377, %v2625
  %v2652 = vadd.f32 %v2378, %v2628
  %v2653 = vadd.f32 %v2379, %v2630
  %v2654 = vadd.f32 %v2380, %v2633
  %v2655 = vadd.f32 %v2381, %v2635
  %v2656 = vadd.f32 %v2382, %v2638
  %v2657 = vadd.f32 %v2383, %v2640
  %2658 = vmatpush.msra.mxu0 %v2657
  %2659 = vmatpush.msra.mxu0 %v2656
  %2660 = vmatpush.msra.mxu0 %v2655
  %2661 = vmatpush.msra.mxu0 %v2654
  %2662 = vmatpush.msra.mxu0 %v2653
  %2663 = vmatpush.msra.mxu0 %v2652
  %2664 = vmatpush.msra.mxu0 %v2651
  %2665 = vmatpush.msra.mxu0 %v2650
  %2666 = vmatpush.msra.mxu0 %v2649
  %2667 = vmatpush.msra.mxu0 %v2648
  %2668 = vmatpush.msra.mxu0 %v2647
  %2669 = vmatpush.msra.mxu0 %v2646
  %2670 = vmatpush.msra.mxu0 %v2645
  %2671 = vmatpush.msra.mxu0 %v2644
  %2672 = vmatpush.msra.mxu0 %v2643
  %2673 = vmatpush.msra.mxu0 %v2642
  %2674 = vmatmul.f32.gmra.mxu0 1.0
  %v2675 = vpop.f32.mrf.mxu0
  %v2676 = vadd.f32 0.0, %v2675
  %2677 = vdwg.mxu0
  %v2678 = vmul.f32 %v2642, %v2642
  %v2679 = vmul.f32 %v2643, %v2643
  %v2680 = vmul.f32 %v2644, %v2644
  %v2681 = vmul.f32 %v2645, %v2645
  %v2682 = vmul.f32 %v2646, %v2646
  %v2683 = vmul.f32 %v2647, %v2647
  %v2684 = vmul.f32 %v2648, %v2648
  %v2685 = vmul.f32 %v2649, %v2649
  %v2686 = vmul.f32 %v2650, %v2650
  %v2687 = vmul.f32 %v2651, %v2651
  %v2688 = vmul.f32 %v2652, %v2652
  %v2689 = vmul.f32 %v2653, %v2653
  %v2690 = vmul.f32 %v2654, %v2654
  %v2691 = vmul.f32 %v2655, %v2655
  %v2692 = vmul.f32 %v2656, %v2656
  %v2693 = vmul.f32 %v2657, %v2657
  %2694 = vmatpush.msra.mxu0 %v2693
  %2695 = vmatpush.msra.mxu0 %v2692
  %2696 = vmatpush.msra.mxu0 %v2691
  %2697 = vmatpush.msra.mxu0 %v2690
  %2698 = vmatpush.msra.mxu0 %v2689
  %2699 = vmatpush.msra.mxu0 %v2688
  %2700 = vmatpush.msra.mxu0 %v2687
  %2701 = vmatpush.msra.mxu0 %v2686
  %2702 = vmatpush.msra.mxu0 %v2685
  %2703 = vmatpush.msra.mxu0 %v2684
  %2704 = vmatpush.msra.mxu0 %v2683
  %2705 = vmatpush.msra.mxu0 %v2682
  %2706 = vmatpush.msra.mxu0 %v2681
  %2707 = vmatpush.msra.mxu0 %v2680
  %2708 = vmatpush.msra.mxu0 %v2679
  %2709 = vmatpush.msra.mxu0 %v2678
  %2710 = vmatmul.f32.gmra.mxu0 1.0
  %v2711 = vpop.f32.mrf.mxu0
  %v2712 = vadd.f32 0.0, %v2711
  %2713 = vdwg.mxu0
  %v2714 = vmul.f32 %v2676, 0.0078125
  %v2715 = vmul.f32 %v2712, 0.0078125
  %v2716 = vmul.f32 %v2714, %v2714
  %v2717 = vsub.f32 %v2715, %v2716
  %v2718 = vld [vmem:[%s2] sm:$0x1]
  %v2719 = vadd.f32 %v2717, 1e-05
  %v2720 = vrsqrt.pop %v2719
  %v2721 = vmul.f32 %v2720, %v2719
  %v2722 = vmul.f32 %v2721, %v2720
  %v2723 = vmul.f32 0.5, %v2722
  %v2724 = vsub.f32 1.5, %v2723
  %v2725 = vmul.f32 %v2720, %v2724
  %vm2726 = vweird.f32 %v2719
  %vm2727 = vweird.f32 %v2720
  %vm2728 = vmor %vm2726, %vm2727
  %v2729 = vsel %vm2728, %v2720, %v2725
  %v2730 = vmul.f32 %v2718, %v2729
  %v2731 = vld [vmem:[%s3] sm:$0x1]
  %v2732 = vmul.f32 %v2714, %v2730
  %v2733 = vsub.f32 %v2731, %v2732
  %v2735 = vperm.slane %v2730, 0
  %v2737 = vmul.f32 %v2642, %v2735
  %v2738 = vmul.f32 %v2643, %v2735
  %v2739 = vmul.f32 %v2644, %v2735
  %v2740 = vmul.f32 %v2645, %v2735
  %v2741 = vmul.f32 %v2646, %v2735
  %v2742 = vmul.f32 %v2647, %v2735
  %v2743 = vmul.f32 %v2648, %v2735
  %v2744 = vmul.f32 %v2649, %v2735
  %v2745 = vmul.f32 %v2650, %v2735
  %v2746 = vmul.f32 %v2651, %v2735
  %v2747 = vmul.f32 %v2652, %v2735
  %v2748 = vmul.f32 %v2653, %v2735
  %v2749 = vmul.f32 %v2654, %v2735
  %v2750 = vmul.f32 %v2655, %v2735
  %v2751 = vmul.f32 %v2656, %v2735
  %v2752 = vmul.f32 %v2657, %v2735
  %v2754 = vperm.slane %v2733, 0
  %v2756 = vadd.f32 %v2737, %v2754
  %v2757 = vadd.f32 %v2738, %v2754
  %v2758 = vadd.f32 %v2739, %v2754
  %v2759 = vadd.f32 %v2740, %v2754
  %v2760 = vadd.f32 %v2741, %v2754
  %v2761 = vadd.f32 %v2742, %v2754
  %v2762 = vadd.f32 %v2743, %v2754
  %v2763 = vadd.f32 %v2744, %v2754
  %v2764 = vadd.f32 %v2745, %v2754
  %v2765 = vadd.f32 %v2746, %v2754
  %v2766 = vadd.f32 %v2747, %v2754
  %v2767 = vadd.f32 %v2748, %v2754
  %v2768 = vadd.f32 %v2749, %v2754
  %v2769 = vadd.f32 %v2750, %v2754
  %v2770 = vadd.f32 %v2751, %v2754
  %v2771 = vadd.f32 %v2752, %v2754
  %v2772 = vmax.f32 %v2756, 0.0
  %v2773 = vmax.f32 %v2757, 0.0
  %v2774 = vmax.f32 %v2758, 0.0
  %v2775 = vmax.f32 %v2759, 0.0
  %v2776 = vmax.f32 %v2760, 0.0
  %v2777 = vmax.f32 %v2761, 0.0
  %v2778 = vmax.f32 %v2762, 0.0
  %v2779 = vmax.f32 %v2763, 0.0
  %v2780 = vmax.f32 %v2764, 0.0
  %v2781 = vmax.f32 %v2765, 0.0
  %v2782 = vmax.f32 %v2766, 0.0
  %v2783 = vmax.f32 %v2767, 0.0
  %v2784 = vmax.f32 %v2768, 0.0
  %v2785 = vmax.f32 %v2769, 0.0
  %v2786 = vmax.f32 %v2770, 0.0
  %v2787 = vmax.f32 %v2771, 0.0
  %v2804 = vrot.slane %v2772, 2
  %v2805 = vrot.slane %v2772, 4
  %v2806 = vrot.slane %v2772, 6
  %v2807 = vrot.slane %v2773, 2
  %v2808 = vrot.slane %v2773, 4
  %v2809 = vrot.slane %v2773, 6
  %v2810 = vrot.slane %v2774, 2
  %v2811 = vrot.slane %v2774, 4
  %v2812 = vrot.slane %v2774, 6
  %v2813 = vrot.slane %v2775, 2
  %v2814 = vrot.slane %v2775, 4
  %v2815 = vrot.slane %v2775, 6
  %v2816 = vrot.slane %v2776, 2
  %v2817 = vrot.slane %v2776, 4
  %v2818 = vrot.slane %v2776, 6
  %v2819 = vrot.slane %v2777, 2
  %v2820 = vrot.slane %v2777, 4
  %v2821 = vrot.slane %v2777, 6
  %v2822 = vrot.slane %v2778, 2
  %v2823 = vrot.slane %v2778, 4
  %v2824 = vrot.slane %v2778, 6
  %v2825 = vrot.slane %v2779, 2
  %v2826 = vrot.slane %v2779, 4
  %v2827 = vrot.slane %v2779, 6
  %v2828 = vrot.slane %v2780, 2
  %v2829 = vrot.slane %v2780, 4
  %v2830 = vrot.slane %v2780, 6
  %v2831 = vrot.slane %v2781, 2
  %v2832 = vrot.slane %v2781, 4
  %v2833 = vrot.slane %v2781, 6
  %v2834 = vrot.slane %v2782, 2
  %v2835 = vrot.slane %v2782, 4
  %v2836 = vrot.slane %v2782, 6
  %v2837 = vrot.slane %v2783, 2
  %v2838 = vrot.slane %v2783, 4
  %v2839 = vrot.slane %v2783, 6
  %v2840 = vrot.slane %v2784, 2
  %v2841 = vrot.slane %v2784, 4
  %v2842 = vrot.slane %v2784, 6
  %v2843 = vrot.slane %v2785, 2
  %v2844 = vrot.slane %v2785, 4
  %v2845 = vrot.slane %v2785, 6
  %v2846 = vrot.slane %v2786, 2
  %v2847 = vrot.slane %v2786, 4
  %v2848 = vrot.slane %v2786, 6
  %v2849 = vrot.slane %v2787, 2
  %v2850 = vrot.slane %v2787, 4
  %v2851 = vrot.slane %v2787, 6
  %vm2900 = vcmask 517120
  %v2901 = vsel %vm2900, %v2772, -inf
  %v2902 = vrot.slane %v2901, 4
  %v2903 = vmax.f32 %v2901, %v2902
  %v2904 = vrot.slane %v2903, 2
  %v2905 = vmax.f32 %v2903, %v2904
  %v2906 = vrot.slane %v2905, 1
  %v2907 = vmax.f32 %v2905, %v2906
  %v2908 = vsel %vm2900, %v2804, -inf
  %v2909 = vrot.slane %v2908, 4
  %v2910 = vmax.f32 %v2908, %v2909
  %v2911 = vrot.slane %v2910, 2
  %v2912 = vmax.f32 %v2910, %v2911
  %v2913 = vrot.slane %v2912, 1
  %v2914 = vmax.f32 %v2912, %v2913
  %v2915 = vsel %vm2900, %v2805, -inf
  %v2916 = vrot.slane %v2915, 4
  %v2917 = vmax.f32 %v2915, %v2916
  %v2918 = vrot.slane %v2917, 2
  %v2919 = vmax.f32 %v2917, %v2918
  %v2920 = vrot.slane %v2919, 1
  %v2921 = vmax.f32 %v2919, %v2920
  %v2922 = vsel %vm2900, %v2806, -inf
  %v2923 = vrot.slane %v2922, 4
  %v2924 = vmax.f32 %v2922, %v2923
  %v2925 = vrot.slane %v2924, 2
  %v2926 = vmax.f32 %v2924, %v2925
  %v2927 = vrot.slane %v2926, 1
  %v2928 = vmax.f32 %v2926, %v2927
  %v2929 = vsel %vm2900, %v2773, -inf
  %v2930 = vrot.slane %v2929, 4
  %v2931 = vmax.f32 %v2929, %v2930
  %v2932 = vrot.slane %v2931, 2
  %v2933 = vmax.f32 %v2931, %v2932
  %v2934 = vrot.slane %v2933, 1
  %v2935 = vmax.f32 %v2933, %v2934
  %v2936 = vsel %vm2900, %v2807, -inf
  %v2937 = vrot.slane %v2936, 4
  %v2938 = vmax.f32 %v2936, %v2937
  %v2939 = vrot.slane %v2938, 2
  %v2940 = vmax.f32 %v2938, %v2939
  %v2941 = vrot.slane %v2940, 1
  %v2942 = vmax.f32 %v2940, %v2941
  %v2943 = vsel %vm2900, %v2808, -inf
  %v2944 = vrot.slane %v2943, 4
  %v2945 = vmax.f32 %v2943, %v2944
  %v2946 = vrot.slane %v2945, 2
  %v2947 = vmax.f32 %v2945, %v2946
  %v2948 = vrot.slane %v2947, 1
  %v2949 = vmax.f32 %v2947, %v2948
  %v2950 = vsel %vm2900, %v2809, -inf
  %v2951 = vrot.slane %v2950, 4
  %v2952 = vmax.f32 %v2950, %v2951
  %v2953 = vrot.slane %v2952, 2
  %v2954 = vmax.f32 %v2952, %v2953
  %v2955 = vrot.slane %v2954, 1
  %v2956 = vmax.f32 %v2954, %v2955
  %v2957 = vsel %vm2900, %v2774, -inf
  %v2958 = vrot.slane %v2957, 4
  %v2959 = vmax.f32 %v2957, %v2958
  %v2960 = vrot.slane %v2959, 2
  %v2961 = vmax.f32 %v2959, %v2960
  %v2962 = vrot.slane %v2961, 1
  %v2963 = vmax.f32 %v2961, %v2962
  %v2964 = vsel %vm2900, %v2810, -inf
  %v2965 = vrot.slane %v2964, 4
  %v2966 = vmax.f32 %v2964, %v2965
  %v2967 = vrot.slane %v2966, 2
  %v2968 = vmax.f32 %v2966, %v2967
  %v2969 = vrot.slane %v2968, 1
  %v2970 = vmax.f32 %v2968, %v2969
  %v2971 = vsel %vm2900, %v2811, -inf
  %v2972 = vrot.slane %v2971, 4
  %v2973 = vmax.f32 %v2971, %v2972
  %v2974 = vrot.slane %v2973, 2
  %v2975 = vmax.f32 %v2973, %v2974
  %v2976 = vrot.slane %v2975, 1
  %v2977 = vmax.f32 %v2975, %v2976
  %v2978 = vsel %vm2900, %v2812, -inf
  %v2979 = vrot.slane %v2978, 4
  %v2980 = vmax.f32 %v2978, %v2979
  %v2981 = vrot.slane %v2980, 2
  %v2982 = vmax.f32 %v2980, %v2981
  %v2983 = vrot.slane %v2982, 1
  %v2984 = vmax.f32 %v2982, %v2983
  %v2985 = vsel %vm2900, %v2775, -inf
  %v2986 = vrot.slane %v2985, 4
  %v2987 = vmax.f32 %v2985, %v2986
  %v2988 = vrot.slane %v2987, 2
  %v2989 = vmax.f32 %v2987, %v2988
  %v2990 = vrot.slane %v2989, 1
  %v2991 = vmax.f32 %v2989, %v2990
  %v2992 = vsel %vm2900, %v2813, -inf
  %v2993 = vrot.slane %v2992, 4
  %v2994 = vmax.f32 %v2992, %v2993
  %v2995 = vrot.slane %v2994, 2
  %v2996 = vmax.f32 %v2994, %v2995
  %v2997 = vrot.slane %v2996, 1
  %v2998 = vmax.f32 %v2996, %v2997
  %v2999 = vsel %vm2900, %v2814, -inf
  %v3000 = vrot.slane %v2999, 4
  %v3001 = vmax.f32 %v2999, %v3000
  %v3002 = vrot.slane %v3001, 2
  %v3003 = vmax.f32 %v3001, %v3002
  %v3004 = vrot.slane %v3003, 1
  %v3005 = vmax.f32 %v3003, %v3004
  %v3006 = vsel %vm2900, %v2815, -inf
  %v3007 = vrot.slane %v3006, 4
  %v3008 = vmax.f32 %v3006, %v3007
  %v3009 = vrot.slane %v3008, 2
  %v3010 = vmax.f32 %v3008, %v3009
  %v3011 = vrot.slane %v3010, 1
  %v3012 = vmax.f32 %v3010, %v3011
  %v3013 = vsel %vm2900, %v2776, -inf
  %v3014 = vrot.slane %v3013, 4
  %v3015 = vmax.f32 %v3013, %v3014
  %v3016 = vrot.slane %v3015, 2
  %v3017 = vmax.f32 %v3015, %v3016
  %v3018 = vrot.slane %v3017, 1
  %v3019 = vmax.f32 %v3017, %v3018
  %v3020 = vsel %vm2900, %v2816, -inf
  %v3021 = vrot.slane %v3020, 4
  %v3022 = vmax.f32 %v3020, %v3021
  %v3023 = vrot.slane %v3022, 2
  %v3024 = vmax.f32 %v3022, %v3023
  %v3025 = vrot.slane %v3024, 1
  %v3026 = vmax.f32 %v3024, %v3025
  %v3027 = vsel %vm2900, %v2817, -inf
  %v3028 = vrot.slane %v3027, 4
  %v3029 = vmax.f32 %v3027, %v3028
  %v3030 = vrot.slane %v3029, 2
  %v3031 = vmax.f32 %v3029, %v3030
  %v3032 = vrot.slane %v3031, 1
  %v3033 = vmax.f32 %v3031, %v3032
  %v3034 = vsel %vm2900, %v2818, -inf
  %v3035 = vrot.slane %v3034, 4
  %v3036 = vmax.f32 %v3034, %v3035
  %v3037 = vrot.slane %v3036, 2
  %v3038 = vmax.f32 %v3036, %v3037
  %v3039 = vrot.slane %v3038, 1
  %v3040 = vmax.f32 %v3038, %v3039
  %v3041 = vsel %vm2900, %v2777, -inf
  %v3042 = vrot.slane %v3041, 4
  %v3043 = vmax.f32 %v3041, %v3042
  %v3044 = vrot.slane %v3043, 2
  %v3045 = vmax.f32 %v3043, %v3044
  %v3046 = vrot.slane %v3045, 1
  %v3047 = vmax.f32 %v3045, %v3046
  %v3048 = vsel %vm2900, %v2819, -inf
  %v3049 = vrot.slane %v3048, 4
  %v3050 = vmax.f32 %v3048, %v3049
  %v3051 = vrot.slane %v3050, 2
  %v3052 = vmax.f32 %v3050, %v3051
  %v3053 = vrot.slane %v3052, 1
  %v3054 = vmax.f32 %v3052, %v3053
  %v3055 = vsel %vm2900, %v2820, -inf
  %v3056 = vrot.slane %v3055, 4
  %v3057 = vmax.f32 %v3055, %v3056
  %v3058 = vrot.slane %v3057, 2
  %v3059 = vmax.f32 %v3057, %v3058
  %v3060 = vrot.slane %v3059, 1
  %v3061 = vmax.f32 %v3059, %v3060
  %v3062 = vsel %vm2900, %v2821, -inf
  %v3063 = vrot.slane %v3062, 4
  %v3064 = vmax.f32 %v3062, %v3063
  %v3065 = vrot.slane %v3064, 2
  %v3066 = vmax.f32 %v3064, %v3065
  %v3067 = vrot.slane %v3066, 1
  %v3068 = vmax.f32 %v3066, %v3067
  %v3069 = vsel %vm2900, %v2778, -inf
  %v3070 = vrot.slane %v3069, 4
  %v3071 = vmax.f32 %v3069, %v3070
  %v3072 = vrot.slane %v3071, 2
  %v3073 = vmax.f32 %v3071, %v3072
  %v3074 = vrot.slane %v3073, 1
  %v3075 = vmax.f32 %v3073, %v3074
  %v3076 = vsel %vm2900, %v2822, -inf
  %v3077 = vrot.slane %v3076, 4
  %v3078 = vmax.f32 %v3076, %v3077
  %v3079 = vrot.slane %v3078, 2
  %v3080 = vmax.f32 %v3078, %v3079
  %v3081 = vrot.slane %v3080, 1
  %v3082 = vmax.f32 %v3080, %v3081
  %v3083 = vsel %vm2900, %v2823, -inf
  %v3084 = vrot.slane %v3083, 4
  %v3085 = vmax.f32 %v3083, %v3084
  %v3086 = vrot.slane %v3085, 2
  %v3087 = vmax.f32 %v3085, %v3086
  %v3088 = vrot.slane %v3087, 1
  %v3089 = vmax.f32 %v3087, %v3088
  %v3090 = vsel %vm2900, %v2824, -inf
  %v3091 = vrot.slane %v3090, 4
  %v3092 = vmax.f32 %v3090, %v3091
  %v3093 = vrot.slane %v3092, 2
  %v3094 = vmax.f32 %v3092, %v3093
  %v3095 = vrot.slane %v3094, 1
  %v3096 = vmax.f32 %v3094, %v3095
  %v3097 = vsel %vm2900, %v2779, -inf
  %v3098 = vrot.slane %v3097, 4
  %v3099 = vmax.f32 %v3097, %v3098
  %v3100 = vrot.slane %v3099, 2
  %v3101 = vmax.f32 %v3099, %v3100
  %v3102 = vrot.slane %v3101, 1
  %v3103 = vmax.f32 %v3101, %v3102
  %v3104 = vsel %vm2900, %v2825, -inf
  %v3105 = vrot.slane %v3104, 4
  %v3106 = vmax.f32 %v3104, %v3105
  %v3107 = vrot.slane %v3106, 2
  %v3108 = vmax.f32 %v3106, %v3107
  %v3109 = vrot.slane %v3108, 1
  %v3110 = vmax.f32 %v3108, %v3109
  %v3111 = vsel %vm2900, %v2826, -inf
  %v3112 = vrot.slane %v3111, 4
  %v3113 = vmax.f32 %v3111, %v3112
  %v3114 = vrot.slane %v3113, 2
  %v3115 = vmax.f32 %v3113, %v3114
  %v3116 = vrot.slane %v3115, 1
  %v3117 = vmax.f32 %v3115, %v3116
  %v3118 = vsel %vm2900, %v2827, -inf
  %v3119 = vrot.slane %v3118, 4
  %v3120 = vmax.f32 %v3118, %v3119
  %v3121 = vrot.slane %v3120, 2
  %v3122 = vmax.f32 %v3120, %v3121
  %v3123 = vrot.slane %v3122, 1
  %v3124 = vmax.f32 %v3122, %v3123
  %v3125 = vsel %vm2900, %v2780, -inf
  %v3126 = vrot.slane %v3125, 4
  %v3127 = vmax.f32 %v3125, %v3126
  %v3128 = vrot.slane %v3127, 2
  %v3129 = vmax.f32 %v3127, %v3128
  %v3130 = vrot.slane %v3129, 1
  %v3131 = vmax.f32 %v3129, %v3130
  %v3132 = vsel %vm2900, %v2828, -inf
  %v3133 = vrot.slane %v3132, 4
  %v3134 = vmax.f32 %v3132, %v3133
  %v3135 = vrot.slane %v3134, 2
  %v3136 = vmax.f32 %v3134, %v3135
  %v3137 = vrot.slane %v3136, 1
  %v3138 = vmax.f32 %v3136, %v3137
  %v3139 = vsel %vm2900, %v2829, -inf
  %v3140 = vrot.slane %v3139, 4
  %v3141 = vmax.f32 %v3139, %v3140
  %v3142 = vrot.slane %v3141, 2
  %v3143 = vmax.f32 %v3141, %v3142
  %v3144 = vrot.slane %v3143, 1
  %v3145 = vmax.f32 %v3143, %v3144
  %v3146 = vsel %vm2900, %v2830, -inf
  %v3147 = vrot.slane %v3146, 4
  %v3148 = vmax.f32 %v3146, %v3147
  %v3149 = vrot.slane %v3148, 2
  %v3150 = vmax.f32 %v3148, %v3149
  %v3151 = vrot.slane %v3150, 1
  %v3152 = vmax.f32 %v3150, %v3151
  %v3153 = vsel %vm2900, %v2781, -inf
  %v3154 = vrot.slane %v3153, 4
  %v3155 = vmax.f32 %v3153, %v3154
  %v3156 = vrot.slane %v3155, 2
  %v3157 = vmax.f32 %v3155, %v3156
  %v3158 = vrot.slane %v3157, 1
  %v3159 = vmax.f32 %v3157, %v3158
  %v3160 = vsel %vm2900, %v2831, -inf
  %v3161 = vrot.slane %v3160, 4
  %v3162 = vmax.f32 %v3160, %v3161
  %v3163 = vrot.slane %v3162, 2
  %v3164 = vmax.f32 %v3162, %v3163
  %v3165 = vrot.slane %v3164, 1
  %v3166 = vmax.f32 %v3164, %v3165
  %v3167 = vsel %vm2900, %v2832, -inf
  %v3168 = vrot.slane %v3167, 4
  %v3169 = vmax.f32 %v3167, %v3168
  %v3170 = vrot.slane %v3169, 2
  %v3171 = vmax.f32 %v3169, %v3170
  %v3172 = vrot.slane %v3171, 1
  %v3173 = vmax.f32 %v3171, %v3172
  %v3174 = vsel %vm2900, %v2833, -inf
  %v3175 = vrot.slane %v3174, 4
  %v3176 = vmax.f32 %v3174, %v3175
  %v3177 = vrot.slane %v3176, 2
  %v3178 = vmax.f32 %v3176, %v3177
  %v3179 = vrot.slane %v3178, 1
  %v3180 = vmax.f32 %v3178, %v3179
  %v3181 = vsel %vm2900, %v2782, -inf
  %v3182 = vrot.slane %v3181, 4
  %v3183 = vmax.f32 %v3181, %v3182
  %v3184 = vrot.slane %v3183, 2
  %v3185 = vmax.f32 %v3183, %v3184
  %v3186 = vrot.slane %v3185, 1
  %v3187 = vmax.f32 %v3185, %v3186
  %v3188 = vsel %vm2900, %v2834, -inf
  %v3189 = vrot.slane %v3188, 4
  %v3190 = vmax.f32 %v3188, %v3189
  %v3191 = vrot.slane %v3190, 2
  %v3192 = vmax.f32 %v3190, %v3191
  %v3193 = vrot.slane %v3192, 1
  %v3194 = vmax.f32 %v3192, %v3193
  %v3195 = vsel %vm2900, %v2835, -inf
  %v3196 = vrot.slane %v3195, 4
  %v3197 = vmax.f32 %v3195, %v3196
  %v3198 = vrot.slane %v3197, 2
  %v3199 = vmax.f32 %v3197, %v3198
  %v3200 = vrot.slane %v3199, 1
  %v3201 = vmax.f32 %v3199, %v3200
  %v3202 = vsel %vm2900, %v2836, -inf
  %v3203 = vrot.slane %v3202, 4
  %v3204 = vmax.f32 %v3202, %v3203
  %v3205 = vrot.slane %v3204, 2
  %v3206 = vmax.f32 %v3204, %v3205
  %v3207 = vrot.slane %v3206, 1
  %v3208 = vmax.f32 %v3206, %v3207
  %v3209 = vsel %vm2900, %v2783, -inf
  %v3210 = vrot.slane %v3209, 4
  %v3211 = vmax.f32 %v3209, %v3210
  %v3212 = vrot.slane %v3211, 2
  %v3213 = vmax.f32 %v3211, %v3212
  %v3214 = vrot.slane %v3213, 1
  %v3215 = vmax.f32 %v3213, %v3214
  %v3216 = vsel %vm2900, %v2837, -inf
  %v3217 = vrot.slane %v3216, 4
  %v3218 = vmax.f32 %v3216, %v3217
  %v3219 = vrot.slane %v3218, 2
  %v3220 = vmax.f32 %v3218, %v3219
  %v3221 = vrot.slane %v3220, 1
  %v3222 = vmax.f32 %v3220, %v3221
  %v3223 = vsel %vm2900, %v2838, -inf
  %v3224 = vrot.slane %v3223, 4
  %v3225 = vmax.f32 %v3223, %v3224
  %v3226 = vrot.slane %v3225, 2
  %v3227 = vmax.f32 %v3225, %v3226
  %v3228 = vrot.slane %v3227, 1
  %v3229 = vmax.f32 %v3227, %v3228
  %v3230 = vsel %vm2900, %v2839, -inf
  %v3231 = vrot.slane %v3230, 4
  %v3232 = vmax.f32 %v3230, %v3231
  %v3233 = vrot.slane %v3232, 2
  %v3234 = vmax.f32 %v3232, %v3233
  %v3235 = vrot.slane %v3234, 1
  %v3236 = vmax.f32 %v3234, %v3235
  %v3237 = vsel %vm2900, %v2784, -inf
  %v3238 = vrot.slane %v3237, 4
  %v3239 = vmax.f32 %v3237, %v3238
  %v3240 = vrot.slane %v3239, 2
  %v3241 = vmax.f32 %v3239, %v3240
  %v3242 = vrot.slane %v3241, 1
  %v3243 = vmax.f32 %v3241, %v3242
  %v3244 = vsel %vm2900, %v2840, -inf
  %v3245 = vrot.slane %v3244, 4
  %v3246 = vmax.f32 %v3244, %v3245
  %v3247 = vrot.slane %v3246, 2
  %v3248 = vmax.f32 %v3246, %v3247
  %v3249 = vrot.slane %v3248, 1
  %v3250 = vmax.f32 %v3248, %v3249
  %v3251 = vsel %vm2900, %v2841, -inf
  %v3252 = vrot.slane %v3251, 4
  %v3253 = vmax.f32 %v3251, %v3252
  %v3254 = vrot.slane %v3253, 2
  %v3255 = vmax.f32 %v3253, %v3254
  %v3256 = vrot.slane %v3255, 1
  %v3257 = vmax.f32 %v3255, %v3256
  %v3258 = vsel %vm2900, %v2842, -inf
  %v3259 = vrot.slane %v3258, 4
  %v3260 = vmax.f32 %v3258, %v3259
  %v3261 = vrot.slane %v3260, 2
  %v3262 = vmax.f32 %v3260, %v3261
  %v3263 = vrot.slane %v3262, 1
  %v3264 = vmax.f32 %v3262, %v3263
  %v3265 = vsel %vm2900, %v2785, -inf
  %v3266 = vrot.slane %v3265, 4
  %v3267 = vmax.f32 %v3265, %v3266
  %v3268 = vrot.slane %v3267, 2
  %v3269 = vmax.f32 %v3267, %v3268
  %v3270 = vrot.slane %v3269, 1
  %v3271 = vmax.f32 %v3269, %v3270
  %v3272 = vsel %vm2900, %v2843, -inf
  %v3273 = vrot.slane %v3272, 4
  %v3274 = vmax.f32 %v3272, %v3273
  %v3275 = vrot.slane %v3274, 2
  %v3276 = vmax.f32 %v3274, %v3275
  %v3277 = vrot.slane %v3276, 1
  %v3278 = vmax.f32 %v3276, %v3277
  %v3279 = vsel %vm2900, %v2844, -inf
  %v3280 = vrot.slane %v3279, 4
  %v3281 = vmax.f32 %v3279, %v3280
  %v3282 = vrot.slane %v3281, 2
  %v3283 = vmax.f32 %v3281, %v3282
  %v3284 = vrot.slane %v3283, 1
  %v3285 = vmax.f32 %v3283, %v3284
  %v3286 = vsel %vm2900, %v2845, -inf
  %v3287 = vrot.slane %v3286, 4
  %v3288 = vmax.f32 %v3286, %v3287
  %v3289 = vrot.slane %v3288, 2
  %v3290 = vmax.f32 %v3288, %v3289
  %v3291 = vrot.slane %v3290, 1
  %v3292 = vmax.f32 %v3290, %v3291
  %v3293 = vsel %vm2900, %v2786, -inf
  %v3294 = vrot.slane %v3293, 4
  %v3295 = vmax.f32 %v3293, %v3294
  %v3296 = vrot.slane %v3295, 2
  %v3297 = vmax.f32 %v3295, %v3296
  %v3298 = vrot.slane %v3297, 1
  %v3299 = vmax.f32 %v3297, %v3298
  %v3300 = vsel %vm2900, %v2846, -inf
  %v3301 = vrot.slane %v3300, 4
  %v3302 = vmax.f32 %v3300, %v3301
  %v3303 = vrot.slane %v3302, 2
  %v3304 = vmax.f32 %v3302, %v3303
  %v3305 = vrot.slane %v3304, 1
  %v3306 = vmax.f32 %v3304, %v3305
  %v3307 = vsel %vm2900, %v2847, -inf
  %v3308 = vrot.slane %v3307, 4
  %v3309 = vmax.f32 %v3307, %v3308
  %v3310 = vrot.slane %v3309, 2
  %v3311 = vmax.f32 %v3309, %v3310
  %v3312 = vrot.slane %v3311, 1
  %v3313 = vmax.f32 %v3311, %v3312
  %v3314 = vsel %vm2900, %v2848, -inf
  %v3315 = vrot.slane %v3314, 4
  %v3316 = vmax.f32 %v3314, %v3315
  %v3317 = vrot.slane %v3316, 2
  %v3318 = vmax.f32 %v3316, %v3317
  %v3319 = vrot.slane %v3318, 1
  %v3320 = vmax.f32 %v3318, %v3319
  %v3321 = vsel %vm2900, %v2787, -inf
  %v3322 = vrot.slane %v3321, 4
  %v3323 = vmax.f32 %v3321, %v3322
  %v3324 = vrot.slane %v3323, 2
  %v3325 = vmax.f32 %v3323, %v3324
  %v3326 = vrot.slane %v3325, 1
  %v3327 = vmax.f32 %v3325, %v3326
  %v3328 = vsel %vm2900, %v2849, -inf
  %v3329 = vrot.slane %v3328, 4
  %v3330 = vmax.f32 %v3328, %v3329
  %v3331 = vrot.slane %v3330, 2
  %v3332 = vmax.f32 %v3330, %v3331
  %v3333 = vrot.slane %v3332, 1
  %v3334 = vmax.f32 %v3332, %v3333
  %v3335 = vsel %vm2900, %v2850, -inf
  %v3336 = vrot.slane %v3335, 4
  %v3337 = vmax.f32 %v3335, %v3336
  %v3338 = vrot.slane %v3337, 2
  %v3339 = vmax.f32 %v3337, %v3338
  %v3340 = vrot.slane %v3339, 1
  %v3341 = vmax.f32 %v3339, %v3340
  %v3342 = vsel %vm2900, %v2851, -inf
  %v3343 = vrot.slane %v3342, 4
  %v3344 = vmax.f32 %v3342, %v3343
  %v3345 = vrot.slane %v3344, 2
  %v3346 = vmax.f32 %v3344, %v3345
  %v3347 = vrot.slane %v3346, 1
  %v3348 = vmax.f32 %v3346, %v3347
  %vm3349 = vcmask 523264
  %v3350 = vsel %vm3349, %v2907, -inf
  %v3351 = vsel %vm3349, %v2935, -inf
  %v3352 = vmax.f32 %v3350, %v3351
  %v3353 = vsel %vm3349, %v2914, -inf
  %v3354 = vsel %vm3349, %v2942, -inf
  %v3355 = vmax.f32 %v3353, %v3354
  %v3356 = vsel %vm3349, %v2921, -inf
  %v3357 = vsel %vm3349, %v2949, -inf
  %v3358 = vmax.f32 %v3356, %v3357
  %v3359 = vsel %vm3349, %v2928, -inf
  %v3360 = vsel %vm3349, %v2956, -inf
  %v3361 = vmax.f32 %v3359, %v3360
  %v3362 = vsel %vm3349, %v2963, -inf
  %v3363 = vsel %vm3349, %v2991, -inf
  %v3364 = vmax.f32 %v3362, %v3363
  %v3365 = vsel %vm3349, %v2970, -inf
  %v3366 = vsel %vm3349, %v2998, -inf
  %v3367 = vmax.f32 %v3365, %v3366
  %v3368 = vsel %vm3349, %v2977, -inf
  %v3369 = vsel %vm3349, %v3005, -inf
  %v3370 = vmax.f32 %v3368, %v3369
  %v3371 = vsel %vm3349, %v2984, -inf
  %v3372 = vsel %vm3349, %v3012, -inf
  %v3373 = vmax.f32 %v3371, %v3372
  %v3374 = vsel %vm3349, %v3019, -inf
  %v3375 = vsel %vm3349, %v3047, -inf
  %v3376 = vmax.f32 %v3374, %v3375
  %v3377 = vsel %vm3349, %v3026, -inf
  %v3378 = vsel %vm3349, %v3054, -inf
  %v3379 = vmax.f32 %v3377, %v3378
  %v3380 = vsel %vm3349, %v3033, -inf
  %v3381 = vsel %vm3349, %v3061, -inf
  %v3382 = vmax.f32 %v3380, %v3381
  %v3383 = vsel %vm3349, %v3040, -inf
  %v3384 = vsel %vm3349, %v3068, -inf
  %v3385 = vmax.f32 %v3383, %v3384
  %v3386 = vsel %vm3349, %v3075, -inf
  %v3387 = vsel %vm3349, %v3103, -inf
  %v3388 = vmax.f32 %v3386, %v3387
  %v3389 = vsel %vm3349, %v3082, -inf
  %v3390 = vsel %vm3349, %v3110, -inf
  %v3391 = vmax.f32 %v3389, %v3390
  %v3392 = vsel %vm3349, %v3089, -inf
  %v3393 = vsel %vm3349, %v3117, -inf
  %v3394 = vmax.f32 %v3392, %v3393
  %v3395 = vsel %vm3349, %v3096, -inf
  %v3396 = vsel %vm3349, %v3124, -inf
  %v3397 = vmax.f32 %v3395, %v3396
  %v3398 = vsel %vm3349, %v3131, -inf
  %v3399 = vsel %vm3349, %v3159, -inf
  %v3400 = vmax.f32 %v3398, %v3399
  %v3401 = vsel %vm3349, %v3138, -inf
  %v3402 = vsel %vm3349, %v3166, -inf
  %v3403 = vmax.f32 %v3401, %v3402
  %v3404 = vsel %vm3349, %v3145, -inf
  %v3405 = vsel %vm3349, %v3173, -inf
  %v3406 = vmax.f32 %v3404, %v3405
  %v3407 = vsel %vm3349, %v3152, -inf
  %v3408 = vsel %vm3349, %v3180, -inf
  %v3409 = vmax.f32 %v3407, %v3408
  %v3410 = vsel %vm3349, %v3187, -inf
  %v3411 = vsel %vm3349, %v3215, -inf
  %v3412 = vmax.f32 %v3410, %v3411
  %v3413 = vsel %vm3349, %v3194, -inf
  %v3414 = vsel %vm3349, %v3222, -inf
  %v3415 = vmax.f32 %v3413, %v3414
  %v3416 = vsel %vm3349, %v3201, -inf
  %v3417 = vsel %vm3349, %v3229, -inf
  %v3418 = vmax.f32 %v3416, %v3417
  %v3419 = vsel %vm3349, %v3208, -inf
  %v3420 = vsel %vm3349, %v3236, -inf
  %v3421 = vmax.f32 %v3419, %v3420
  %v3422 = vsel %vm3349, %v3243, -inf
  %v3423 = vsel %vm3349, %v3271, -inf
  %v3424 = vmax.f32 %v3422, %v3423
  %v3425 = vsel %vm3349, %v3250, -inf
  %v3426 = vsel %vm3349, %v3278, -inf
  %v3427 = vmax.f32 %v3425, %v3426
  %v3428 = vsel %vm3349, %v3257, -inf
  %v3429 = vsel %vm3349, %v3285, -inf
  %v3430 = vmax.f32 %v3428, %v3429
  %v3431 = vsel %vm3349, %v3264, -inf
  %v3432 = vsel %vm3349, %v3292, -inf
  %v3433 = vmax.f32 %v3431, %v3432
  %v3434 = vsel %vm3349, %v3299, -inf
  %v3435 = vsel %vm3349, %v3327, -inf
  %v3436 = vmax.f32 %v3434, %v3435
  %v3437 = vsel %vm3349, %v3306, -inf
  %v3438 = vsel %vm3349, %v3334, -inf
  %v3439 = vmax.f32 %v3437, %v3438
  %v3440 = vsel %vm3349, %v3313, -inf
  %v3441 = vsel %vm3349, %v3341, -inf
  %v3442 = vmax.f32 %v3440, %v3441
  %v3443 = vsel %vm3349, %v3320, -inf
  %v3444 = vsel %vm3349, %v3348, -inf
  %v3445 = vmax.f32 %v3443, %v3444
  %vm3446 = vcmask 518144
  %3447 = vst.msk [vmem:[#allocation2] sm:$0x7] %vm3446, 0
  %3448 = vst.msk [vmem:[#allocation2 + $0x4] sm:$0x7] %vm3446, 0
  %3449 = vst.msk [vmem:[#allocation2 + $0x8] sm:$0x7] %vm3446, 0
  %3450 = vst.msk [vmem:[#allocation2 + $0xc] sm:$0x7] %vm3446, 0
  %3451 = vst.msk [vmem:[#allocation2 + $0x10] sm:$0x7] %vm3446, 0
  %3452 = vst.msk [vmem:[#allocation2 + $0x14] sm:$0x7] %vm3446, 0
  %3453 = vst.msk [vmem:[#allocation2 + $0x18] sm:$0x7] %vm3446, 0
  %3454 = vst.msk [vmem:[#allocation2 + $0x1c] sm:$0x7] %vm3446, 0
  %3455 = vst.msk [vmem:[#allocation2 + $0x20] sm:$0x7] %vm3446, 0
  %3456 = vst.msk [vmem:[#allocation2 + $0x24] sm:$0x7] %vm3446, 0
  %3457 = vst.msk [vmem:[#allocation2 + $0x28] sm:$0x7] %vm3446, 0
  %3458 = vst.msk [vmem:[#allocation2 + $0x2c] sm:$0x7] %vm3446, 0
  %v3459 = vpack.c.bf16 %v3352, %v3352
  %v3460 = vpack.c.bf16 %v3355, %v3355
  %v3461 = vpack.c.bf16 %v3358, %v3358
  %v3462 = vpack.c.bf16 %v3361, %v3361
  %v3463 = vpack.c.bf16 %v3364, %v3364
  %v3464 = vpack.c.bf16 %v3367, %v3367
  %v3465 = vpack.c.bf16 %v3370, %v3370
  %v3466 = vpack.c.bf16 %v3373, %v3373
  %v3467 = vpack.c.bf16 %v3376, %v3376
  %v3468 = vpack.c.bf16 %v3379, %v3379
  %v3469 = vpack.c.bf16 %v3382, %v3382
  %v3470 = vpack.c.bf16 %v3385, %v3385
  %v3471 = vpack.c.bf16 %v3388, %v3388
  %v3472 = vpack.c.bf16 %v3391, %v3391
  %v3473 = vpack.c.bf16 %v3394, %v3394
  %v3474 = vpack.c.bf16 %v3397, %v3397
  %v3475 = vpack.c.bf16 %v3400, %v3400
  %v3476 = vpack.c.bf16 %v3403, %v3403
  %v3477 = vpack.c.bf16 %v3406, %v3406
  %v3478 = vpack.c.bf16 %v3409, %v3409
  %v3479 = vpack.c.bf16 %v3412, %v3412
  %v3480 = vpack.c.bf16 %v3415, %v3415
  %v3481 = vpack.c.bf16 %v3418, %v3418
  %v3482 = vpack.c.bf16 %v3421, %v3421
  %v3483 = vpack.c.bf16 %v3424, %v3424
  %v3484 = vpack.c.bf16 %v3427, %v3427
  %v3485 = vpack.c.bf16 %v3430, %v3430
  %v3486 = vpack.c.bf16 %v3433, %v3433
  %v3487 = vpack.c.bf16 %v3436, %v3436
  %v3488 = vpack.c.bf16 %v3439, %v3439
  %v3489 = vpack.c.bf16 %v3442, %v3442
  %v3490 = vpack.c.bf16 %v3445, %v3445
  %v3523 = vunpack.c.l.b16 %v3459
  %v3524 = vunpack.c.l.b16 %v3460
  %v3525 = vunpack.c.l.b16 %v3461
  %v3526 = vunpack.c.l.b16 %v3462
  %v3527 = vunpack.c.l.b16 %v3463
  %v3528 = vunpack.c.l.b16 %v3464
  %v3529 = vunpack.c.l.b16 %v3465
  %v3530 = vunpack.c.l.b16 %v3466
  %v3531 = vunpack.c.l.b16 %v3467
  %v3532 = vunpack.c.l.b16 %v3468
  %v3533 = vunpack.c.l.b16 %v3469
  %v3534 = vunpack.c.l.b16 %v3470
  %v3535 = vunpack.c.l.b16 %v3471
  %v3536 = vunpack.c.l.b16 %v3472
  %v3537 = vunpack.c.l.b16 %v3473
  %v3538 = vunpack.c.l.b16 %v3474
  %v3539 = vunpack.c.l.b16 %v3475
  %v3540 = vunpack.c.l.b16 %v3476
  %v3541 = vunpack.c.l.b16 %v3477
  %v3542 = vunpack.c.l.b16 %v3478
  %v3543 = vunpack.c.l.b16 %v3479
  %v3544 = vunpack.c.l.b16 %v3480
  %v3545 = vunpack.c.l.b16 %v3481
  %v3546 = vunpack.c.l.b16 %v3482
  %v3547 = vunpack.c.l.b16 %v3483
  %v3548 = vunpack.c.l.b16 %v3484
  %v3549 = vunpack.c.l.b16 %v3485
  %v3550 = vunpack.c.l.b16 %v3486
  %v3551 = vunpack.c.l.b16 %v3487
  %v3552 = vunpack.c.l.b16 %v3488
  %v3553 = vunpack.c.l.b16 %v3489
  %v3554 = vunpack.c.l.b16 %v3490
  %vm3555 = vcmask 1042434
  %v3556 = vsel %vm3555, %v3524, %v3523
  %vm3557 = vcmask 1043459
  %v3558 = vsel %vm3557, %v3525, %v3556
  %vm3559 = vcmask 1044484
  %v3560 = vsel %vm3559, %v3526, %v3558
  %v3561 = vsel %vm3555, %v3528, %v3527
  %v3562 = vsel %vm3557, %v3529, %v3561
  %v3563 = vsel %vm3559, %v3530, %v3562
  %v3564 = vsel %vm3555, %v3532, %v3531
  %v3565 = vsel %vm3557, %v3533, %v3564
  %v3566 = vsel %vm3559, %v3534, %v3565
  %v3567 = vsel %vm3555, %v3536, %v3535
  %v3568 = vsel %vm3557, %v3537, %v3567
  %v3569 = vsel %vm3559, %v3538, %v3568
  %v3570 = vsel %vm3555, %v3540, %v3539
  %v3571 = vsel %vm3557, %v3541, %v3570
  %v3572 = vsel %vm3559, %v3542, %v3571
  %v3573 = vsel %vm3555, %v3544, %v3543
  %v3574 = vsel %vm3557, %v3545, %v3573
  %v3575 = vsel %vm3559, %v3546, %v3574
  %v3576 = vsel %vm3555, %v3548, %v3547
  %v3577 = vsel %vm3557, %v3549, %v3576
  %v3578 = vsel %vm3559, %v3550, %v3577
  %v3579 = vsel %vm3555, %v3552, %v3551
  %v3580 = vsel %vm3557, %v3553, %v3579
  %v3581 = vsel %vm3559, %v3554, %v3580
  %v3582 = vpack.c.b16 %v3560, %v3560
  %v3583 = vpack.c.b16 %v3563, %v3563
  %v3584 = vpack.c.b16 %v3566, %v3566
  %v3585 = vpack.c.b16 %v3569, %v3569
  %v3586 = vpack.c.b16 %v3572, %v3572
  %v3587 = vpack.c.b16 %v3575, %v3575
  %v3588 = vpack.c.b16 %v3578, %v3578
  %v3589 = vpack.c.b16 %v3581, %v3581
  %s3598 = scalar_lea.vmem [#allocation2], 4
  %vm3599 = vcmask 518144
  %vm3600 = vsmask.f32 2306
  %vm3601 = vmand %vm3599, %vm3600
  %v3602 = vld [vmem:[%s3598] sm:$0x7]
  %v3603 = vsel %vm3601, %v3582, %v3602
  %3604 = vst [vmem:[%s3598] sm:$0x7] %v3603
  %v3605 = vld [vmem:[%s3598 + $0x4] sm:$0x7]
  %v3606 = vsel %vm3601, %v3583, %v3605
  %3607 = vst [vmem:[%s3598 + $0x4] sm:$0x7] %v3606
  %v3608 = vld [vmem:[%s3598 + $0x8] sm:$0x7]
  %v3609 = vsel %vm3601, %v3584, %v3608
  %3610 = vst [vmem:[%s3598 + $0x8] sm:$0x7] %v3609
  %v3611 = vld [vmem:[%s3598 + $0xc] sm:$0x7]
  %v3612 = vsel %vm3601, %v3585, %v3611
  %3613 = vst [vmem:[%s3598 + $0xc] sm:$0x7] %v3612
  %v3614 = vld [vmem:[%s3598 + $0x18] sm:$0x7]
  %v3615 = vsel %vm3601, %v3586, %v3614
  %3616 = vst [vmem:[%s3598 + $0x18] sm:$0x7] %v3615
  %v3617 = vld [vmem:[%s3598 + $0x1c] sm:$0x7]
  %v3618 = vsel %vm3601, %v3587, %v3617
  %3619 = vst [vmem:[%s3598 + $0x1c] sm:$0x7] %v3618
  %v3620 = vld [vmem:[%s3598 + $0x20] sm:$0x7]
  %v3621 = vsel %vm3601, %v3588, %v3620
  %3622 = vst [vmem:[%s3598 + $0x20] sm:$0x7] %v3621
  %v3623 = vld [vmem:[%s3598 + $0x24] sm:$0x7]
  %v3624 = vsel %vm3601, %v3589, %v3623
  %3625 = vst [vmem:[%s3598 + $0x24] sm:$0x7] %v3624
  %v3626 = vld [vmem:[#allocation2] sm:$0x3]
  %v3627 = vld [vmem:[#allocation2 + $0x4] sm:$0x3]
  %v3628 = vld [vmem:[#allocation2 + $0x8] sm:$0x3]
  %v3629 = vld [vmem:[#allocation2 + $0xc] sm:$0x3]
  %v3630 = vld [vmem:[#allocation2 + $0x18] sm:$0x3]
  %v3631 = vld [vmem:[#allocation2 + $0x1c] sm:$0x3]
  %v3632 = vld [vmem:[#allocation2 + $0x20] sm:$0x3]
  %v3633 = vld [vmem:[#allocation2 + $0x24] sm:$0x3]
  %v3634 = vld [vmem:[%s4] sm:$0xf]
  %v3635 = vld [vmem:[%s4 + $0x4] sm:$0xf]
  %v3636 = vld [vmem:[%s4 + $0x8] sm:$0xf]
  %v3637 = vld [vmem:[%s4 + $0xc] sm:$0xf]
  %v3638 = vld [vmem:[%s4 + $0x10] sm:$0xf]
  %v3639 = vld [vmem:[%s4 + $0x14] sm:$0xf]
  %v3640 = vld [vmem:[%s4 + $0x18] sm:$0xf]
  %v3641 = vld [vmem:[%s4 + $0x1c] sm:$0xf]
  %v3642 = vld [vmem:[#allocation2] sm:$0x7]
  %v3643 = vld [vmem:[#allocation2 + $0x4] sm:$0x7]
  %v3644 = vld [vmem:[#allocation2 + $0x8] sm:$0x7]
  %v3645 = vld [vmem:[#allocation2 + $0xc] sm:$0x7]
  %v3646 = vld [vmem:[#allocation2 + $0x18] sm:$0x7]
  %v3647 = vld [vmem:[#allocation2 + $0x1c] sm:$0x7]
  %v3648 = vld [vmem:[#allocation2 + $0x20] sm:$0x7]
  %v3649 = vld [vmem:[#allocation2 + $0x24] sm:$0x7]
  %v3658 = vrot.slane %v3642, 2
  %v3659 = vrot.slane %v3643, 2
  %v3660 = vrot.slane %v3644, 2
  %v3661 = vrot.slane %v3645, 2
  %v3662 = vrot.slane %v3646, 2
  %v3663 = vrot.slane %v3647, 2
  %v3664 = vrot.slane %v3648, 2
  %v3665 = vrot.slane %v3649, 2
  %vm3666 = vcmask 1041408
  %v3669 = vsel %vm3666, %v3642, %v3658
  %vm3670 = vcmask 1043458
  %v3671 = vsel %vm3670, %v3642, %v3658
  %v3673 = vrot.slane %v3671, 2
  %v3676 = vsel %vm3666, %v3643, %v3659
  %v3677 = vsel %vm3670, %v3643, %v3659
  %v3679 = vrot.slane %v3677, 2
  %v3682 = vsel %vm3666, %v3644, %v3660
  %v3683 = vsel %vm3670, %v3644, %v3660
  %v3685 = vrot.slane %v3683, 2
  %v3688 = vsel %vm3666, %v3645, %v3661
  %v3689 = vsel %vm3670, %v3645, %v3661
  %v3691 = vrot.slane %v3689, 2
  %v3694 = vsel %vm3666, %v3646, %v3662
  %v3695 = vsel %vm3670, %v3646, %v3662
  %v3697 = vrot.slane %v3695, 2
  %v3700 = vsel %vm3666, %v3647, %v3663
  %v3701 = vsel %vm3670, %v3647, %v3663
  %v3703 = vrot.slane %v3701, 2
  %v3706 = vsel %vm3666, %v3648, %v3664
  %v3707 = vsel %vm3670, %v3648, %v3664
  %v3709 = vrot.slane %v3707, 2
  %v3712 = vsel %vm3666, %v3649, %v3665
  %v3713 = vsel %vm3670, %v3649, %v3665
  %v3715 = vrot.slane %v3713, 2
  %vm3716 = vsmask.f32 1280
  %vm3717 = vsmask.f32 3336
  %vm3718 = vmor %vm3716, %vm3717
  %vm3719 = vsmask.f32 5392
  %vm3720 = vmor %vm3718, %vm3719
  %vm3721 = vsmask.f32 7448
  %vm3722 = vmor %vm3720, %vm3721
  %v3723 = vshrl.u32 %v3669, 16
  %v3725 = vrot.slane %v3723, 6
  %v3726 = vshll.u32 %v3669, 16
  %v3728 = vrot.slane %v3726, 7
  %v3729 = vor.u32 %v3725, %v3728
  %v3730 = vrot.slane %v3729, 2
  %v3732 = vshll.u32 %v3673, 16
  %v3734 = vrot.slane %v3732, 7
  %v3735 = vsel %vm3722, %v3730, %v3734
  %v3736 = vshrl.u32 %v3676, 16
  %v3738 = vrot.slane %v3736, 6
  %v3739 = vshll.u32 %v3676, 16
  %v3741 = vrot.slane %v3739, 7
  %v3742 = vor.u32 %v3738, %v3741
  %v3743 = vrot.slane %v3742, 2
  %v3745 = vshll.u32 %v3679, 16
  %v3747 = vrot.slane %v3745, 7
  %v3748 = vsel %vm3722, %v3743, %v3747
  %v3749 = vshrl.u32 %v3682, 16
  %v3751 = vrot.slane %v3749, 6
  %v3752 = vshll.u32 %v3682, 16
  %v3754 = vrot.slane %v3752, 7
  %v3755 = vor.u32 %v3751, %v3754
  %v3756 = vrot.slane %v3755, 2
  %v3758 = vshll.u32 %v3685, 16
  %v3760 = vrot.slane %v3758, 7
  %v3761 = vsel %vm3722, %v3756, %v3760
  %v3762 = vshrl.u32 %v3688, 16
  %v3764 = vrot.slane %v3762, 6
  %v3765 = vshll.u32 %v3688, 16
  %v3767 = vrot.slane %v3765, 7
  %v3768 = vor.u32 %v3764, %v3767
  %v3769 = vrot.slane %v3768, 2
  %v3771 = vshll.u32 %v3691, 16
  %v3773 = vrot.slane %v3771, 7
  %v3774 = vsel %vm3722, %v3769, %v3773
  %v3775 = vshrl.u32 %v3694, 16
  %v3777 = vrot.slane %v3775, 6
  %v3778 = vshll.u32 %v3694, 16
  %v3780 = vrot.slane %v3778, 7
  %v3781 = vor.u32 %v3777, %v3780
  %v3782 = vrot.slane %v3781, 2
  %v3784 = vshll.u32 %v3697, 16
  %v3786 = vrot.slane %v3784, 7
  %v3787 = vsel %vm3722, %v3782, %v3786
  %v3788 = vshrl.u32 %v3700, 16
  %v3790 = vrot.slane %v3788, 6
  %v3791 = vshll.u32 %v3700, 16
  %v3793 = vrot.slane %v3791, 7
  %v3794 = vor.u32 %v3790, %v3793
  %v3795 = vrot.slane %v3794, 2
  %v3797 = vshll.u32 %v3703, 16
  %v3799 = vrot.slane %v3797, 7
  %v3800 = vsel %vm3722, %v3795, %v3799
  %v3801 = vshrl.u32 %v3706, 16
  %v3803 = vrot.slane %v3801, 6
  %v3804 = vshll.u32 %v3706, 16
  %v3806 = vrot.slane %v3804, 7
  %v3807 = vor.u32 %v3803, %v3806
  %v3808 = vrot.slane %v3807, 2
  %v3810 = vshll.u32 %v3709, 16
  %v3812 = vrot.slane %v3810, 7
  %v3813 = vsel %vm3722, %v3808, %v3812
  %v3814 = vshrl.u32 %v3712, 16
  %v3816 = vrot.slane %v3814, 6
  %v3817 = vshll.u32 %v3712, 16
  %v3819 = vrot.slane %v3817, 7
  %v3820 = vor.u32 %v3816, %v3819
  %v3821 = vrot.slane %v3820, 2
  %v3823 = vshll.u32 %v3715, 16
  %v3825 = vrot.slane %v3823, 7
  %v3826 = vsel %vm3722, %v3821, %v3825
  %s3827 = scalar_lea.vmem %s4, 32
  %v3828 = vld [vmem:[%s3827] sm:$0xf]
  %v3829 = vld [vmem:[%s3827 + $0x4] sm:$0xf]
  %v3830 = vld [vmem:[%s3827 + $0x8] sm:$0xf]
  %v3831 = vld [vmem:[%s3827 + $0xc] sm:$0xf]
  %v3832 = vld [vmem:[%s3827 + $0x10] sm:$0xf]
  %v3833 = vld [vmem:[%s3827 + $0x14] sm:$0xf]
  %v3834 = vld [vmem:[%s3827 + $0x18] sm:$0xf]
  %v3835 = vld [vmem:[%s3827 + $0x1c] sm:$0xf]
  %3837 = vst [vmem:[#allocation1] ss:$4 sm:$0xff] %v3735
  %s3839 = scalar_lea.vmem [#allocation1], 1
  %3840 = vst [vmem:[%s3839] ss:$4 sm:$0xff] %v3748
  %s3842 = scalar_lea.vmem [#allocation1], 2
  %3843 = vst [vmem:[%s3842] ss:$4 sm:$0xff] %v3761
  %s3845 = scalar_lea.vmem [#allocation1], 3
  %3846 = vst [vmem:[%s3845] ss:$4 sm:$0xff] %v3774
  %s3848 = scalar_lea.vmem [#allocation1], 32
  %3849 = vst [vmem:[%s3848] ss:$4 sm:$0xff] %v3787
  %s3851 = scalar_lea.vmem [#allocation1], 33
  %3852 = vst [vmem:[%s3851] ss:$4 sm:$0xff] %v3800
  %s3854 = scalar_lea.vmem [#allocation1], 34
  %3855 = vst [vmem:[%s3854] ss:$4 sm:$0xff] %v3813
  %s3857 = scalar_lea.vmem [#allocation1], 35
  %3858 = vst [vmem:[%s3857] ss:$4 sm:$0xff] %v3826
  %v3859 = vld.sshfl [vmem:[#allocation1] sm:$0xff pattern:$0x73625140]
  %v3860 = vld.sshfl [vmem:[#allocation1 + $0x20] sm:$0xff pattern:$0x73625140]
  %v3869 = vunpack.c.l.b16 %v3828
  %v3870 = vunpack.c.l.b16 %v3829
  %v3871 = vunpack.c.l.b16 %v3830
  %v3872 = vunpack.c.l.b16 %v3831
  %v3873 = vunpack.c.l.b16 %v3832
  %v3874 = vunpack.c.l.b16 %v3833
  %v3875 = vunpack.c.l.b16 %v3834
  %v3876 = vunpack.c.l.b16 %v3835
  %v3877 = vpack.c.b16 %v3870, %v3869
  %v3878 = vpack.c.b16 %v3872, %v3871
  %v3879 = vpack.c.b16 %v3874, %v3873
  %v3880 = vpack.c.b16 %v3876, %v3875
  %v3885 = vsel %vm3349, %v3859, 0
  %v3887 = vsel %vm3349, %v3860, 0
  %3889 = vmatpush.bf16.msra.mxu0 0
  %3890 = vmatpush.bf16.msra.mxu0 0
  %3891 = vmatpush.bf16.msra.mxu0 0
  %3892 = vmatpush.bf16.msra.mxu0 0
  %3893 = vmatpush.bf16.msra.mxu0 %v3880
  %3894 = vmatpush.bf16.msra.mxu0 %v3879
  %3895 = vmatpush.bf16.msra.mxu0 %v3878
  %3896 = vmatpush.bf16.msra.mxu0 %v3877
  %3897 = vmatmul.bf16.gmra.mxu0 %v3885
  %v3898 = vpop.f32.mrf.mxu0
  %v3899 = vadd.f32 0.0, %v3898
  %v3900 = vpop.f32.mrf.mxu0
  %v3901 = vadd.f32 0.0, %v3900
  %3902 = vmatmul.bf16.gmra.mxu0 %v3887
  %v3903 = vpop.f32.mrf.mxu0
  %v3904 = vadd.f32 0.0, %v3903
  %v3905 = vpop.f32.mrf.mxu0
  %v3906 = vadd.f32 0.0, %v3905
  %3907 = vdwg.mxu0
  %3909 = vst [vmem:[#allocation1] ss:$4 sm:$0xff] %v3626
  %s3911 = scalar_lea.vmem [#allocation1], 1
  %3912 = vst [vmem:[%s3911] ss:$4 sm:$0xff] %v3627
  %s3914 = scalar_lea.vmem [#allocation1], 2
  %3915 = vst [vmem:[%s3914] ss:$4 sm:$0xff] %v3628
  %s3917 = scalar_lea.vmem [#allocation1], 3
  %3918 = vst [vmem:[%s3917] ss:$4 sm:$0xff] %v3629
  %s3920 = scalar_lea.vmem [#allocation1], 32
  %3921 = vst [vmem:[%s3920] ss:$4 sm:$0xff] %v3630
  %s3923 = scalar_lea.vmem [#allocation1], 33
  %3924 = vst [vmem:[%s3923] ss:$4 sm:$0xff] %v3631
  %s3926 = scalar_lea.vmem [#allocation1], 34
  %3927 = vst [vmem:[%s3926] ss:$4 sm:$0xff] %v3632
  %s3929 = scalar_lea.vmem [#allocation1], 35
  %3930 = vst [vmem:[%s3929] ss:$4 sm:$0xff] %v3633
  %v3931 = vld.sshfl [vmem:[#allocation1] sm:$0xff pattern:$0x73625140]
  %v3932 = vld.sshfl [vmem:[#allocation1 + $0x20] sm:$0xff pattern:$0x73625140]
  %v3941 = vunpack.c.l.b16 %v3634
  %v3942 = vunpack.c.l.b16 %v3635
  %v3943 = vunpack.c.l.b16 %v3636
  %v3944 = vunpack.c.l.b16 %v3637
  %v3945 = vunpack.c.l.b16 %v3638
  %v3946 = vunpack.c.l.b16 %v3639
  %v3947 = vunpack.c.l.b16 %v3640
  %v3948 = vunpack.c.l.b16 %v3641
  %v3949 = vpack.c.b16 %v3942, %v3941
  %v3950 = vpack.c.b16 %v3944, %v3943
  %v3951 = vpack.c.b16 %v3946, %v3945
  %v3952 = vpack.c.b16 %v3948, %v3947
  %v3957 = vsel %vm3349, %v3931, 0
  %v3959 = vsel %vm3349, %v3932, 0
  %3961 = vmatpush.bf16.msra.mxu0 0
  %3962 = vmatpush.bf16.msra.mxu0 0
  %3963 = vmatpush.bf16.msra.mxu0 0
  %3964 = vmatpush.bf16.msra.mxu0 0
  %3965 = vmatpush.bf16.msra.mxu0 %v3952
  %3966 = vmatpush.bf16.msra.mxu0 %v3951
  %3967 = vmatpush.bf16.msra.mxu0 %v3950
  %3968 = vmatpush.bf16.msra.mxu0 %v3949
  %3969 = vmatmul.bf16.gmra.mxu0 %v3957
  %v3970 = vpop.f32.mrf.mxu0
  %v3971 = vadd.f32 %v3899, %v3970
  %v3972 = vpop.f32.mrf.mxu0
  %v3973 = vadd.f32 %v3901, %v3972
  %3974 = vmatmul.bf16.gmra.mxu0 %v3959
  %v3975 = vpop.f32.mrf.mxu0
  %v3976 = vadd.f32 %v3904, %v3975
  %v3977 = vpop.f32.mrf.mxu0
  %v3978 = vadd.f32 %v3906, %v3977
  %3979 = vdwg.mxu0
  %v3980 = vld [vmem:[#allocation2] sm:$0x6]
  %v3981 = vld [vmem:[#allocation2 + $0x4] sm:$0x6]
  %v3982 = vld [vmem:[#allocation2 + $0x8] sm:$0x6]
  %v3983 = vld [vmem:[#allocation2 + $0xc] sm:$0x6]
  %v3984 = vld [vmem:[#allocation2 + $0x18] sm:$0x6]
  %v3985 = vld [vmem:[#allocation2 + $0x1c] sm:$0x6]
  %v3986 = vld [vmem:[#allocation2 + $0x20] sm:$0x6]
  %v3987 = vld [vmem:[#allocation2 + $0x24] sm:$0x6]
  %v3996 = vrot.slane %v3980, 2
  %v3997 = vrot.slane %v3981, 2
  %v3998 = vrot.slane %v3982, 2
  %v3999 = vrot.slane %v3983, 2
  %v4000 = vrot.slane %v3984, 2
  %v4001 = vrot.slane %v3985, 2
  %v4002 = vrot.slane %v3986, 2
  %v4003 = vrot.slane %v3987, 2
  %v4006 = vsel %vm3666, %v3980, %v3996
  %v4008 = vsel %vm3670, %v3980, %v3996
  %v4010 = vrot.slane %v4008, 2
  %v4013 = vsel %vm3666, %v3981, %v3997
  %v4015 = vsel %vm3670, %v3981, %v3997
  %v4017 = vrot.slane %v4015, 2
  %v4020 = vsel %vm3666, %v3982, %v3998
  %v4022 = vsel %vm3670, %v3982, %v3998
  %v4024 = vrot.slane %v4022, 2
  %v4027 = vsel %vm3666, %v3983, %v3999
  %v4029 = vsel %vm3670, %v3983, %v3999
  %v4031 = vrot.slane %v4029, 2
  %v4034 = vsel %vm3666, %v3984, %v4000
  %v4036 = vsel %vm3670, %v3984, %v4000
  %v4038 = vrot.slane %v4036, 2
  %v4041 = vsel %vm3666, %v3985, %v4001
  %v4043 = vsel %vm3670, %v3985, %v4001
  %v4045 = vrot.slane %v4043, 2
  %v4048 = vsel %vm3666, %v3986, %v4002
  %v4050 = vsel %vm3670, %v3986, %v4002
  %v4052 = vrot.slane %v4050, 2
  %v4055 = vsel %vm3666, %v3987, %v4003
  %v4057 = vsel %vm3670, %v3987, %v4003
  %v4059 = vrot.slane %v4057, 2
  %vm4060 = vcmask 1040384
  %vm4061 = vcmask 1042434
  %vm4062 = vmor %vm4060, %vm4061
  %vm4063 = vcmask 1044484
  %vm4064 = vmor %vm4062, %vm4063
  %vm4065 = vcmask 1046534
  %vm4066 = vmor %vm4064, %vm4065
  %v4067 = vrot.slane %v4006, 7
  %v4068 = vrot.slane %v4067, 2
  %v4069 = vrot.slane %v4010, 7
  %v4070 = vsel %vm4066, %v4068, %v4069
  %v4071 = vrot.slane %v4013, 7
  %v4072 = vrot.slane %v4071, 2
  %v4073 = vrot.slane %v4017, 7
  %v4074 = vsel %vm4066, %v4072, %v4073
  %v4075 = vrot.slane %v4020, 7
  %v4076 = vrot.slane %v4075, 2
  %v4077 = vrot.slane %v4024, 7
  %v4078 = vsel %vm4066, %v4076, %v4077
  %v4079 = vrot.slane %v4027, 7
  %v4080 = vrot.slane %v4079, 2
  %v4081 = vrot.slane %v4031, 7
  %v4082 = vsel %vm4066, %v4080, %v4081
  %v4083 = vrot.slane %v4034, 7
  %v4084 = vrot.slane %v4083, 2
  %v4085 = vrot.slane %v4038, 7
  %v4086 = vsel %vm4066, %v4084, %v4085
  %v4087 = vrot.slane %v4041, 7
  %v4088 = vrot.slane %v4087, 2
  %v4089 = vrot.slane %v4045, 7
  %v4090 = vsel %vm4066, %v4088, %v4089
  %v4091 = vrot.slane %v4048, 7
  %v4092 = vrot.slane %v4091, 2
  %v4093 = vrot.slane %v4052, 7
  %v4094 = vsel %vm4066, %v4092, %v4093
  %v4095 = vrot.slane %v4055, 7
  %v4096 = vrot.slane %v4095, 2
  %v4097 = vrot.slane %v4059, 7
  %v4098 = vsel %vm4066, %v4096, %v4097
  %s4099 = scalar_lea.vmem %s4, 64
  %v4100 = vld [vmem:[%s4099] sm:$0xf]
  %v4101 = vld [vmem:[%s4099 + $0x4] sm:$0xf]
  %v4102 = vld [vmem:[%s4099 + $0x8] sm:$0xf]
  %v4103 = vld [vmem:[%s4099 + $0xc] sm:$0xf]
  %v4104 = vld [vmem:[%s4099 + $0x10] sm:$0xf]
  %v4105 = vld [vmem:[%s4099 + $0x14] sm:$0xf]
  %v4106 = vld [vmem:[%s4099 + $0x18] sm:$0xf]
  %v4107 = vld [vmem:[%s4099 + $0x1c] sm:$0xf]
  %4109 = vst [vmem:[#allocation1] ss:$4 sm:$0xff] %v4070
  %s4111 = scalar_lea.vmem [#allocation1], 1
  %4112 = vst [vmem:[%s4111] ss:$4 sm:$0xff] %v4074
  %s4114 = scalar_lea.vmem [#allocation1], 2
  %4115 = vst [vmem:[%s4114] ss:$4 sm:$0xff] %v4078
  %s4117 = scalar_lea.vmem [#allocation1], 3
  %4118 = vst [vmem:[%s4117] ss:$4 sm:$0xff] %v4082
  %s4120 = scalar_lea.vmem [#allocation1], 32
  %4121 = vst [vmem:[%s4120] ss:$4 sm:$0xff] %v4086
  %s4123 = scalar_lea.vmem [#allocation1], 33
  %4124 = vst [vmem:[%s4123] ss:$4 sm:$0xff] %v4090
  %s4126 = scalar_lea.vmem [#allocation1], 34
  %4127 = vst [vmem:[%s4126] ss:$4 sm:$0xff] %v4094
  %s4129 = scalar_lea.vmem [#allocation1], 35
  %4130 = vst [vmem:[%s4129] ss:$4 sm:$0xff] %v4098
  %v4131 = vld.sshfl [vmem:[#allocation1] sm:$0xff pattern:$0x73625140]
  %v4132 = vld.sshfl [vmem:[#allocation1 + $0x20] sm:$0xff pattern:$0x73625140]
  %v4141 = vunpack.c.l.b16 %v4100
  %v4142 = vunpack.c.l.b16 %v4101
  %v4143 = vunpack.c.l.b16 %v4102
  %v4144 = vunpack.c.l.b16 %v4103
  %v4145 = vunpack.c.l.b16 %v4104
  %v4146 = vunpack.c.l.b16 %v4105
  %v4147 = vunpack.c.l.b16 %v4106
  %v4148 = vunpack.c.l.b16 %v4107
  %v4149 = vpack.c.b16 %v4142, %v4141
  %v4150 = vpack.c.b16 %v4144, %v4143
  %v4151 = vpack.c.b16 %v4146, %v4145
  %v4152 = vpack.c.b16 %v4148, %v4147
  %v4157 = vsel %vm3349, %v4131, 0
  %v4159 = vsel %vm3349, %v4132, 0
  %4161 = vmatpush.bf16.msra.mxu0 0
  %4162 = vmatpush.bf16.msra.mxu0 0
  %4163 = vmatpush.bf16.msra.mxu0 0
  %4164 = vmatpush.bf16.msra.mxu0 0
  %4165 = vmatpush.bf16.msra.mxu0 %v4152
  %4166 = vmatpush.bf16.msra.mxu0 %v4151
  %4167 = vmatpush.bf16.msra.mxu0 %v4150
  %4168 = vmatpush.bf16.msra.mxu0 %v4149
  %4169 = vmatmul.bf16.gmra.mxu0 %v4157
  %v4170 = vpop.f32.mrf.mxu0
  %v4171 = vadd.f32 0.0, %v4170
  %v4172 = vpop.f32.mrf.mxu0
  %v4173 = vadd.f32 0.0, %v4172
  %4174 = vmatmul.bf16.gmra.mxu0 %v4159
  %v4175 = vpop.f32.mrf.mxu0
  %v4176 = vadd.f32 0.0, %v4175
  %v4177 = vpop.f32.mrf.mxu0
  %v4178 = vadd.f32 0.0, %v4177
  %4179 = vdwg.mxu0
  %v4180 = vadd.f32 %v3971, %v4171
  %v4181 = vadd.f32 %v3973, %v4173
  %v4182 = vadd.f32 %v3976, %v4176
  %v4183 = vadd.f32 %v3978, %v4178
  %v4184 = vld [vmem:[%s3598] sm:$0x3]
  %v4185 = vld [vmem:[%s3598 + $0x4] sm:$0x3]
  %v4186 = vld [vmem:[%s3598 + $0x8] sm:$0x3]
  %v4187 = vld [vmem:[%s3598 + $0xc] sm:$0x3]
  %v4188 = vld [vmem:[%s3598 + $0x18] sm:$0x3]
  %v4189 = vld [vmem:[%s3598 + $0x1c] sm:$0x3]
  %v4190 = vld [vmem:[%s3598 + $0x20] sm:$0x3]
  %v4191 = vld [vmem:[%s3598 + $0x24] sm:$0x3]
  %s4192 = scalar_lea.vmem %s4, 96
  %v4193 = vld [vmem:[%s4192] sm:$0xf]
  %v4194 = vld [vmem:[%s4192 + $0x4] sm:$0xf]
  %v4195 = vld [vmem:[%s4192 + $0x8] sm:$0xf]
  %v4196 = vld [vmem:[%s4192 + $0xc] sm:$0xf]
  %v4197 = vld [vmem:[%s4192 + $0x10] sm:$0xf]
  %v4198 = vld [vmem:[%s4192 + $0x14] sm:$0xf]
  %v4199 = vld [vmem:[%s4192 + $0x18] sm:$0xf]
  %v4200 = vld [vmem:[%s4192 + $0x1c] sm:$0xf]
  %4202 = vst [vmem:[#allocation1] ss:$4 sm:$0xff] %v4184
  %s4204 = scalar_lea.vmem [#allocation1], 1
  %4205 = vst [vmem:[%s4204] ss:$4 sm:$0xff] %v4185
  %s4207 = scalar_lea.vmem [#allocation1], 2
  %4208 = vst [vmem:[%s4207] ss:$4 sm:$0xff] %v4186
  %s4210 = scalar_lea.vmem [#allocation1], 3
  %4211 = vst [vmem:[%s4210] ss:$4 sm:$0xff] %v4187
  %s4213 = scalar_lea.vmem [#allocation1], 32
  %4214 = vst [vmem:[%s4213] ss:$4 sm:$0xff] %v4188
  %s4216 = scalar_lea.vmem [#allocation1], 33
  %4217 = vst [vmem:[%s4216] ss:$4 sm:$0xff] %v4189
  %s4219 = scalar_lea.vmem [#allocation1], 34
  %4220 = vst [vmem:[%s4219] ss:$4 sm:$0xff] %v4190
  %s4222 = scalar_lea.vmem [#allocation1], 35
  %4223 = vst [vmem:[%s4222] ss:$4 sm:$0xff] %v4191
  %v4224 = vld.sshfl [vmem:[#allocation1] sm:$0xff pattern:$0x73625140]
  %v4225 = vld.sshfl [vmem:[#allocation1 + $0x20] sm:$0xff pattern:$0x73625140]
  %v4234 = vunpack.c.l.b16 %v4193
  %v4235 = vunpack.c.l.b16 %v4194
  %v4236 = vunpack.c.l.b16 %v4195
  %v4237 = vunpack.c.l.b16 %v4196
  %v4238 = vunpack.c.l.b16 %v4197
  %v4239 = vunpack.c.l.b16 %v4198
  %v4240 = vunpack.c.l.b16 %v4199
  %v4241 = vunpack.c.l.b16 %v4200
  %v4242 = vpack.c.b16 %v4235, %v4234
  %v4243 = vpack.c.b16 %v4237, %v4236
  %v4244 = vpack.c.b16 %v4239, %v4238
  %v4245 = vpack.c.b16 %v4241, %v4240
  %v4250 = vsel %vm3349, %v4224, 0
  %v4252 = vsel %vm3349, %v4225, 0
  %4254 = vmatpush.bf16.msra.mxu0 0
  %4255 = vmatpush.bf16.msra.mxu0 0
  %4256 = vmatpush.bf16.msra.mxu0 0
  %4257 = vmatpush.bf16.msra.mxu0 0
  %4258 = vmatpush.bf16.msra.mxu0 %v4245
  %4259 = vmatpush.bf16.msra.mxu0 %v4244
  %4260 = vmatpush.bf16.msra.mxu0 %v4243
  %4261 = vmatpush.bf16.msra.mxu0 %v4242
  %4262 = vmatmul.bf16.gmra.mxu0 %v4250
  %v4263 = vpop.f32.mrf.mxu0
  %v4264 = vadd.f32 0.0, %v4263
  %v4265 = vpop.f32.mrf.mxu0
  %v4266 = vadd.f32 0.0, %v4265
  %4267 = vmatmul.bf16.gmra.mxu0 %v4252
  %v4268 = vpop.f32.mrf.mxu0
  %v4269 = vadd.f32 0.0, %v4268
  %v4270 = vpop.f32.mrf.mxu0
  %v4271 = vadd.f32 0.0, %v4270
  %4272 = vdwg.mxu0
  %v4273 = vadd.f32 %v4180, %v4264
  %v4274 = vadd.f32 %v4181, %v4266
  %v4275 = vadd.f32 %v4182, %v4269
  %v4276 = vadd.f32 %v4183, %v4271
  %v4277 = vld [vmem:[%s3598] sm:$0x7]
  %v4278 = vld [vmem:[%s3598 + $0x4] sm:$0x7]
  %v4279 = vld [vmem:[%s3598 + $0x8] sm:$0x7]
  %v4280 = vld [vmem:[%s3598 + $0xc] sm:$0x7]
  %v4281 = vld [vmem:[%s3598 + $0x18] sm:$0x7]
  %v4282 = vld [vmem:[%s3598 + $0x1c] sm:$0x7]
  %v4283 = vld [vmem:[%s3598 + $0x20] sm:$0x7]
  %v4284 = vld [vmem:[%s3598 + $0x24] sm:$0x7]
  %v4293 = vrot.slane %v4277, 2
  %v4294 = vrot.slane %v4278, 2
  %v4295 = vrot.slane %v4279, 2
  %v4296 = vrot.slane %v4280, 2
  %v4297 = vrot.slane %v4281, 2
  %v4298 = vrot.slane %v4282, 2
  %v4299 = vrot.slane %v4283, 2
  %v4300 = vrot.slane %v4284, 2
  %v4303 = vsel %vm3666, %v4277, %v4293
  %v4304 = vsel %vm3670, %v4277, %v4293
  %v4306 = vrot.slane %v4304, 2
  %v4309 = vsel %vm3666, %v4278, %v4294
  %v4310 = vsel %vm3670, %v4278, %v4294
  %v4312 = vrot.slane %v4310, 2
  %v4315 = vsel %vm3666, %v4279, %v4295
  %v4316 = vsel %vm3670, %v4279, %v4295
  %v4318 = vrot.slane %v4316, 2
  %v4321 = vsel %vm3666, %v4280, %v4296
  %v4322 = vsel %vm3670, %v4280, %v4296
  %v4324 = vrot.slane %v4322, 2
  %v4327 = vsel %vm3666, %v4281, %v4297
  %v4328 = vsel %vm3670, %v4281, %v4297
  %v4330 = vrot.slane %v4328, 2
  %v4333 = vsel %vm3666, %v4282, %v4298
  %v4334 = vsel %vm3670, %v4282, %v4298
  %v4336 = vrot.slane %v4334, 2
  %v4339 = vsel %vm3666, %v4283, %v4299
  %v4340 = vsel %vm3670, %v4283, %v4299
  %v4342 = vrot.slane %v4340, 2
  %v4345 = vsel %vm3666, %v4284, %v4300
  %v4346 = vsel %vm3670, %v4284, %v4300
  %v4348 = vrot.slane %v4346, 2
  %v4349 = vshrl.u32 %v4303, 16
  %v4351 = vrot.slane %v4349, 6
  %v4352 = vshll.u32 %v4303, 16
  %v4354 = vrot.slane %v4352, 7
  %v4355 = vor.u32 %v4351, %v4354
  %v4356 = vrot.slane %v4355, 2
  %v4358 = vshll.u32 %v4306, 16
  %v4360 = vrot.slane %v4358, 7
  %v4361 = vsel %vm3722, %v4356, %v4360
  %v4362 = vshrl.u32 %v4309, 16
  %v4364 = vrot.slane %v4362, 6
  %v4365 = vshll.u32 %v4309, 16
  %v4367 = vrot.slane %v4365, 7
  %v4368 = vor.u32 %v4364, %v4367
  %v4369 = vrot.slane %v4368, 2
  %v4371 = vshll.u32 %v4312, 16
  %v4373 = vrot.slane %v4371, 7
  %v4374 = vsel %vm3722, %v4369, %v4373
  %v4375 = vshrl.u32 %v4315, 16
  %v4377 = vrot.slane %v4375, 6
  %v4378 = vshll.u32 %v4315, 16
  %v4380 = vrot.slane %v4378, 7
  %v4381 = vor.u32 %v4377, %v4380
  %v4382 = vrot.slane %v4381, 2
  %v4384 = vshll.u32 %v4318, 16
  %v4386 = vrot.slane %v4384, 7
  %v4387 = vsel %vm3722, %v4382, %v4386
  %v4388 = vshrl.u32 %v4321, 16
  %v4390 = vrot.slane %v4388, 6
  %v4391 = vshll.u32 %v4321, 16
  %v4393 = vrot.slane %v4391, 7
  %v4394 = vor.u32 %v4390, %v4393
  %v4395 = vrot.slane %v4394, 2
  %v4397 = vshll.u32 %v4324, 16
  %v4399 = vrot.slane %v4397, 7
  %v4400 = vsel %vm3722, %v4395, %v4399
  %v4401 = vshrl.u32 %v4327, 16
  %v4403 = vrot.slane %v4401, 6
  %v4404 = vshll.u32 %v4327, 16
  %v4406 = vrot.slane %v4404, 7
  %v4407 = vor.u32 %v4403, %v4406
  %v4408 = vrot.slane %v4407, 2
  %v4410 = vshll.u32 %v4330, 16
  %v4412 = vrot.slane %v4410, 7
  %v4413 = vsel %vm3722, %v4408, %v4412
  %v4414 = vshrl.u32 %v4333, 16
  %v4416 = vrot.slane %v4414, 6
  %v4417 = vshll.u32 %v4333, 16
  %v4419 = vrot.slane %v4417, 7
  %v4420 = vor.u32 %v4416, %v4419
  %v4421 = vrot.slane %v4420, 2
  %v4423 = vshll.u32 %v4336, 16
  %v4425 = vrot.slane %v4423, 7
  %v4426 = vsel %vm3722, %v4421, %v4425
  %v4427 = vshrl.u32 %v4339, 16
  %v4429 = vrot.slane %v4427, 6
  %v4430 = vshll.u32 %v4339, 16
  %v4432 = vrot.slane %v4430, 7
  %v4433 = vor.u32 %v4429, %v4432
  %v4434 = vrot.slane %v4433, 2
  %v4436 = vshll.u32 %v4342, 16
  %v4438 = vrot.slane %v4436, 7
  %v4439 = vsel %vm3722, %v4434, %v4438
  %v4440 = vshrl.u32 %v4345, 16
  %v4442 = vrot.slane %v4440, 6
  %v4443 = vshll.u32 %v4345, 16
  %v4445 = vrot.slane %v4443, 7
  %v4446 = vor.u32 %v4442, %v4445
  %v4447 = vrot.slane %v4446, 2
  %v4449 = vshll.u32 %v4348, 16
  %v4451 = vrot.slane %v4449, 7
  %v4452 = vsel %vm3722, %v4447, %v4451
  %s4453 = scalar_lea.vmem %s4, 128
  %v4454 = vld [vmem:[%s4453] sm:$0xf]
  %v4455 = vld [vmem:[%s4453 + $0x4] sm:$0xf]
  %v4456 = vld [vmem:[%s4453 + $0x8] sm:$0xf]
  %v4457 = vld [vmem:[%s4453 + $0xc] sm:$0xf]
  %v4458 = vld [vmem:[%s4453 + $0x10] sm:$0xf]
  %v4459 = vld [vmem:[%s4453 + $0x14] sm:$0xf]
  %v4460 = vld [vmem:[%s4453 + $0x18] sm:$0xf]
  %v4461 = vld [vmem:[%s4453 + $0x1c] sm:$0xf]
  %4463 = vst [vmem:[#allocation1] ss:$4 sm:$0xff] %v4361
  %s4465 = scalar_lea.vmem [#allocation1], 1
  %4466 = vst [vmem:[%s4465] ss:$4 sm:$0xff] %v4374
  %s4468 = scalar_lea.vmem [#allocation1], 2
  %4469 = vst [vmem:[%s4468] ss:$4 sm:$0xff] %v4387
  %s4471 = scalar_lea.vmem [#allocation1], 3
  %4472 = vst [vmem:[%s4471] ss:$4 sm:$0xff] %v4400
  %s4474 = scalar_lea.vmem [#allocation1], 32
  %4475 = vst [vmem:[%s4474] ss:$4 sm:$0xff] %v4413
  %s4477 = scalar_lea.vmem [#allocation1], 33
  %4478 = vst [vmem:[%s4477] ss:$4 sm:$0xff] %v4426
  %s4480 = scalar_lea.vmem [#allocation1], 34
  %4481 = vst [vmem:[%s4480] ss:$4 sm:$0xff] %v4439
  %s4483 = scalar_lea.vmem [#allocation1], 35
  %4484 = vst [vmem:[%s4483] ss:$4 sm:$0xff] %v4452
  %v4485 = vld.sshfl [vmem:[#allocation1] sm:$0xff pattern:$0x73625140]
  %v4486 = vld.sshfl [vmem:[#allocation1 + $0x20] sm:$0xff pattern:$0x73625140]
  %v4495 = vunpack.c.l.b16 %v4454
  %v4496 = vunpack.c.l.b16 %v4455
  %v4497 = vunpack.c.l.b16 %v4456
  %v4498 = vunpack.c.l.b16 %v4457
  %v4499 = vunpack.c.l.b16 %v4458
  %v4500 = vunpack.c.l.b16 %v4459
  %v4501 = vunpack.c.l.b16 %v4460
  %v4502 = vunpack.c.l.b16 %v4461
  %v4503 = vpack.c.b16 %v4496, %v4495
  %v4504 = vpack.c.b16 %v4498, %v4497
  %v4505 = vpack.c.b16 %v4500, %v4499
  %v4506 = vpack.c.b16 %v4502, %v4501
  %v4511 = vsel %vm3349, %v4485, 0
  %v4513 = vsel %vm3349, %v4486, 0
  %4515 = vmatpush.bf16.msra.mxu0 0
  %4516 = vmatpush.bf16.msra.mxu0 0
  %4517 = vmatpush.bf16.msra.mxu0 0
  %4518 = vmatpush.bf16.msra.mxu0 0
  %4519 = vmatpush.bf16.msra.mxu0 %v4506
  %4520 = vmatpush.bf16.msra.mxu0 %v4505
  %4521 = vmatpush.bf16.msra.mxu0 %v4504
  %4522 = vmatpush.bf16.msra.mxu0 %v4503
  %4523 = vmatmul.bf16.gmra.mxu0 %v4511
  %v4524 = vpop.f32.mrf.mxu0
  %v4525 = vadd.f32 0.0, %v4524
  %v4526 = vpop.f32.mrf.mxu0
  %v4527 = vadd.f32 0.0, %v4526
  %4528 = vmatmul.bf16.gmra.mxu0 %v4513
  %v4529 = vpop.f32.mrf.mxu0
  %v4530 = vadd.f32 0.0, %v4529
  %v4531 = vpop.f32.mrf.mxu0
  %v4532 = vadd.f32 0.0, %v4531
  %4533 = vdwg.mxu0
  %v4534 = vadd.f32 %v4273, %v4525
  %v4535 = vadd.f32 %v4274, %v4527
  %v4536 = vadd.f32 %v4275, %v4530
  %v4537 = vadd.f32 %v4276, %v4532
  %v4538 = vld [vmem:[%s3598] sm:$0x6]
  %v4539 = vld [vmem:[%s3598 + $0x4] sm:$0x6]
  %v4540 = vld [vmem:[%s3598 + $0x8] sm:$0x6]
  %v4541 = vld [vmem:[%s3598 + $0xc] sm:$0x6]
  %v4542 = vld [vmem:[%s3598 + $0x18] sm:$0x6]
  %v4543 = vld [vmem:[%s3598 + $0x1c] sm:$0x6]
  %v4544 = vld [vmem:[%s3598 + $0x20] sm:$0x6]
  %v4545 = vld [vmem:[%s3598 + $0x24] sm:$0x6]
  %v4554 = vrot.slane %v4538, 2
  %v4555 = vrot.slane %v4539, 2
  %v4556 = vrot.slane %v4540, 2
  %v4557 = vrot.slane %v4541, 2
  %v4558 = vrot.slane %v4542, 2
  %v4559 = vrot.slane %v4543, 2
  %v4560 = vrot.slane %v4544, 2
  %v4561 = vrot.slane %v4545, 2
  %v4564 = vsel %vm3666, %v4538, %v4554
  %v4566 = vsel %vm3670, %v4538, %v4554
  %v4568 = vrot.slane %v4566, 2
  %v4571 = vsel %vm3666, %v4539, %v4555
  %v4573 = vsel %vm3670, %v4539, %v4555
  %v4575 = vrot.slane %v4573, 2
  %v4578 = vsel %vm3666, %v4540, %v4556
  %v4580 = vsel %vm3670, %v4540, %v4556
  %v4582 = vrot.slane %v4580, 2
  %v4585 = vsel %vm3666, %v4541, %v4557
  %v4587 = vsel %vm3670, %v4541, %v4557
  %v4589 = vrot.slane %v4587, 2
  %v4592 = vsel %vm3666, %v4542, %v4558
  %v4594 = vsel %vm3670, %v4542, %v4558
  %v4596 = vrot.slane %v4594, 2
  %v4599 = vsel %vm3666, %v4543, %v4559
  %v4601 = vsel %vm3670, %v4543, %v4559
  %v4603 = vrot.slane %v4601, 2
  %v4606 = vsel %vm3666, %v4544, %v4560
  %v4608 = vsel %vm3670, %v4544, %v4560
  %v4610 = vrot.slane %v4608, 2
  %v4613 = vsel %vm3666, %v4545, %v4561
  %v4615 = vsel %vm3670, %v4545, %v4561
  %v4617 = vrot.slane %v4615, 2
  %v4618 = vrot.slane %v4564, 7
  %v4619 = vrot.slane %v4618, 2
  %v4620 = vrot.slane %v4568, 7
  %v4621 = vsel %vm4066, %v4619, %v4620
  %v4622 = vrot.slane %v4571, 7
  %v4623 = vrot.slane %v4622, 2
  %v4624 = vrot.slane %v4575, 7
  %v4625 = vsel %vm4066, %v4623, %v4624
  %v4626 = vrot.slane %v4578, 7
  %v4627 = vrot.slane %v4626, 2
  %v4628 = vrot.slane %v4582, 7
  %v4629 = vsel %vm4066, %v4627, %v4628
  %v4630 = vrot.slane %v4585, 7
  %v4631 = vrot.slane %v4630, 2
  %v4632 = vrot.slane %v4589, 7
  %v4633 = vsel %vm4066, %v4631, %v4632
  %v4634 = vrot.slane %v4592, 7
  %v4635 = vrot.slane %v4634, 2
  %v4636 = vrot.slane %v4596, 7
  %v4637 = vsel %vm4066, %v4635, %v4636
  %v4638 = vrot.slane %v4599, 7
  %v4639 = vrot.slane %v4638, 2
  %v4640 = vrot.slane %v4603, 7
  %v4641 = vsel %vm4066, %v4639, %v4640
  %v4642 = vrot.slane %v4606, 7
  %v4643 = vrot.slane %v4642, 2
  %v4644 = vrot.slane %v4610, 7
  %v4645 = vsel %vm4066, %v4643, %v4644
  %v4646 = vrot.slane %v4613, 7
  %v4647 = vrot.slane %v4646, 2
  %v4648 = vrot.slane %v4617, 7
  %v4649 = vsel %vm4066, %v4647, %v4648
  %s4650 = scalar_lea.vmem %s4, 160
  %v4651 = vld [vmem:[%s4650] sm:$0xf]
  %v4652 = vld [vmem:[%s4650 + $0x4] sm:$0xf]
  %v4653 = vld [vmem:[%s4650 + $0x8] sm:$0xf]
  %v4654 = vld [vmem:[%s4650 + $0xc] sm:$0xf]
  %v4655 = vld [vmem:[%s4650 + $0x10] sm:$0xf]
  %v4656 = vld [vmem:[%s4650 + $0x14] sm:$0xf]
  %v4657 = vld [vmem:[%s4650 + $0x18] sm:$0xf]
  %v4658 = vld [vmem:[%s4650 + $0x1c] sm:$0xf]
  %4660 = vst [vmem:[#allocation1] ss:$4 sm:$0xff] %v4621
  %s4662 = scalar_lea.vmem [#allocation1], 1
  %4663 = vst [vmem:[%s4662] ss:$4 sm:$0xff] %v4625
  %s4665 = scalar_lea.vmem [#allocation1], 2
  %4666 = vst [vmem:[%s4665] ss:$4 sm:$0xff] %v4629
  %s4668 = scalar_lea.vmem [#allocation1], 3
  %4669 = vst [vmem:[%s4668] ss:$4 sm:$0xff] %v4633
  %s4671 = scalar_lea.vmem [#allocation1], 32
  %4672 = vst [vmem:[%s4671] ss:$4 sm:$0xff] %v4637
  %s4674 = scalar_lea.vmem [#allocation1], 33
  %4675 = vst [vmem:[%s4674] ss:$4 sm:$0xff] %v4641
  %s4677 = scalar_lea.vmem [#allocation1], 34
  %4678 = vst [vmem:[%s4677] ss:$4 sm:$0xff] %v4645
  %s4680 = scalar_lea.vmem [#allocation1], 35
  %4681 = vst [vmem:[%s4680] ss:$4 sm:$0xff] %v4649
  %v4682 = vld.sshfl [vmem:[#allocation1] sm:$0xff pattern:$0x73625140]
  %v4683 = vld.sshfl [vmem:[#allocation1 + $0x20] sm:$0xff pattern:$0x73625140]
  %v4692 = vunpack.c.l.b16 %v4651
  %v4693 = vunpack.c.l.b16 %v4652
  %v4694 = vunpack.c.l.b16 %v4653
  %v4695 = vunpack.c.l.b16 %v4654
  %v4696 = vunpack.c.l.b16 %v4655
  %v4697 = vunpack.c.l.b16 %v4656
  %v4698 = vunpack.c.l.b16 %v4657
  %v4699 = vunpack.c.l.b16 %v4658
  %v4700 = vpack.c.b16 %v4693, %v4692
  %v4701 = vpack.c.b16 %v4695, %v4694
  %v4702 = vpack.c.b16 %v4697, %v4696
  %v4703 = vpack.c.b16 %v4699, %v4698
  %v4708 = vsel %vm3349, %v4682, 0
  %v4710 = vsel %vm3349, %v4683, 0
  %4712 = vmatpush.bf16.msra.mxu0 0
  %4713 = vmatpush.bf16.msra.mxu0 0
  %4714 = vmatpush.bf16.msra.mxu0 0
  %4715 = vmatpush.bf16.msra.mxu0 0
  %4716 = vmatpush.bf16.msra.mxu0 %v4703
  %4717 = vmatpush.bf16.msra.mxu0 %v4702
  %4718 = vmatpush.bf16.msra.mxu0 %v4701
  %4719 = vmatpush.bf16.msra.mxu0 %v4700
  %4720 = vmatmul.bf16.gmra.mxu0 %v4708
  %v4721 = vpop.f32.mrf.mxu0
  %v4722 = vadd.f32 0.0, %v4721
  %v4723 = vpop.f32.mrf.mxu0
  %v4724 = vadd.f32 0.0, %v4723
  %4725 = vmatmul.bf16.gmra.mxu0 %v4710
  %v4726 = vpop.f32.mrf.mxu0
  %v4727 = vadd.f32 0.0, %v4726
  %v4728 = vpop.f32.mrf.mxu0
  %v4729 = vadd.f32 0.0, %v4728
  %4730 = vdwg.mxu0
  %v4731 = vadd.f32 %v4534, %v4722
  %v4732 = vadd.f32 %v4535, %v4724
  %v4733 = vadd.f32 %v4536, %v4727
  %v4734 = vadd.f32 %v4537, %v4729
  %s4735 = scalar_lea.vmem [#allocation2], 8
  %v4736 = vld [vmem:[%s4735] sm:$0x3]
  %v4737 = vld [vmem:[%s4735 + $0x4] sm:$0x3]
  %v4738 = vld [vmem:[%s4735 + $0x8] sm:$0x3]
  %v4739 = vld [vmem:[%s4735 + $0xc] sm:$0x3]
  %v4740 = vld [vmem:[%s4735 + $0x18] sm:$0x3]
  %v4741 = vld [vmem:[%s4735 + $0x1c] sm:$0x3]
  %v4742 = vld [vmem:[%s4735 + $0x20] sm:$0x3]
  %v4743 = vld [vmem:[%s4735 + $0x24] sm:$0x3]
  %s4744 = scalar_lea.vmem %s4, 192
  %v4745 = vld [vmem:[%s4744] sm:$0xf]
  %v4746 = vld [vmem:[%s4744 + $0x4] sm:$0xf]
  %v4747 = vld [vmem:[%s4744 + $0x8] sm:$0xf]
  %v4748 = vld [vmem:[%s4744 + $0xc] sm:$0xf]
  %v4749 = vld [vmem:[%s4744 + $0x10] sm:$0xf]
  %v4750 = vld [vmem:[%s4744 + $0x14] sm:$0xf]
  %v4751 = vld [vmem:[%s4744 + $0x18] sm:$0xf]
  %v4752 = vld [vmem:[%s4744 + $0x1c] sm:$0xf]
  %4754 = vst [vmem:[#allocation1] ss:$4 sm:$0xff] %v4736
  %s4756 = scalar_lea.vmem [#allocation1], 1
  %4757 = vst [vmem:[%s4756] ss:$4 sm:$0xff] %v4737
  %s4759 = scalar_lea.vmem [#allocation1], 2
  %4760 = vst [vmem:[%s4759] ss:$4 sm:$0xff] %v4738
  %s4762 = scalar_lea.vmem [#allocation1], 3
  %4763 = vst [vmem:[%s4762] ss:$4 sm:$0xff] %v4739
  %s4765 = scalar_lea.vmem [#allocation1], 32
  %4766 = vst [vmem:[%s4765] ss:$4 sm:$0xff] %v4740
  %s4768 = scalar_lea.vmem [#allocation1], 33
  %4769 = vst [vmem:[%s4768] ss:$4 sm:$0xff] %v4741
  %s4771 = scalar_lea.vmem [#allocation1], 34
  %4772 = vst [vmem:[%s4771] ss:$4 sm:$0xff] %v4742
  %s4774 = scalar_lea.vmem [#allocation1], 35
  %4775 = vst [vmem:[%s4774] ss:$4 sm:$0xff] %v4743
  %v4776 = vld.sshfl [vmem:[#allocation1] sm:$0xff pattern:$0x73625140]
  %v4777 = vld.sshfl [vmem:[#allocation1 + $0x20] sm:$0xff pattern:$0x73625140]
  %v4786 = vunpack.c.l.b16 %v4745
  %v4787 = vunpack.c.l.b16 %v4746
  %v4788 = vunpack.c.l.b16 %v4747
  %v4789 = vunpack.c.l.b16 %v4748
  %v4790 = vunpack.c.l.b16 %v4749
  %v4791 = vunpack.c.l.b16 %v4750
  %v4792 = vunpack.c.l.b16 %v4751
  %v4793 = vunpack.c.l.b16 %v4752
  %v4794 = vpack.c.b16 %v4787, %v4786
  %v4795 = vpack.c.b16 %v4789, %v4788
  %v4796 = vpack.c.b16 %v4791, %v4790
  %v4797 = vpack.c.b16 %v4793, %v4792
  %v4802 = vsel %vm3349, %v4776, 0
  %v4804 = vsel %vm3349, %v4777, 0
  %4806 = vmatpush.bf16.msra.mxu0 0
  %4807 = vmatpush.bf16.msra.mxu0 0
  %4808 = vmatpush.bf16.msra.mxu0 0
  %4809 = vmatpush.bf16.msra.mxu0 0
  %4810 = vmatpush.bf16.msra.mxu0 %v4797
  %4811 = vmatpush.bf16.msra.mxu0 %v4796
  %4812 = vmatpush.bf16.msra.mxu0 %v4795
  %4813 = vmatpush.bf16.msra.mxu0 %v4794
  %4814 = vmatmul.bf16.gmra.mxu0 %v4802
  %v4815 = vpop.f32.mrf.mxu0
  %v4816 = vadd.f32 0.0, %v4815
  %v4817 = vpop.f32.mrf.mxu0
  %v4818 = vadd.f32 0.0, %v4817
  %4819 = vmatmul.bf16.gmra.mxu0 %v4804
  %v4820 = vpop.f32.mrf.mxu0
  %v4821 = vadd.f32 0.0, %v4820
  %v4822 = vpop.f32.mrf.mxu0
  %v4823 = vadd.f32 0.0, %v4822
  %4824 = vdwg.mxu0
  %v4825 = vadd.f32 %v4731, %v4816
  %v4826 = vadd.f32 %v4732, %v4818
  %v4827 = vadd.f32 %v4733, %v4821
  %v4828 = vadd.f32 %v4734, %v4823
  %v4829 = vld [vmem:[%s4735] sm:$0x7]
  %v4830 = vld [vmem:[%s4735 + $0x4] sm:$0x7]
  %v4831 = vld [vmem:[%s4735 + $0x8] sm:$0x7]
  %v4832 = vld [vmem:[%s4735 + $0xc] sm:$0x7]
  %v4833 = vld [vmem:[%s4735 + $0x18] sm:$0x7]
  %v4834 = vld [vmem:[%s4735 + $0x1c] sm:$0x7]
  %v4835 = vld [vmem:[%s4735 + $0x20] sm:$0x7]
  %v4836 = vld [vmem:[%s4735 + $0x24] sm:$0x7]
  %v4845 = vrot.slane %v4829, 2
  %v4846 = vrot.slane %v4830, 2
  %v4847 = vrot.slane %v4831, 2
  %v4848 = vrot.slane %v4832, 2
  %v4849 = vrot.slane %v4833, 2
  %v4850 = vrot.slane %v4834, 2
  %v4851 = vrot.slane %v4835, 2
  %v4852 = vrot.slane %v4836, 2
  %v4855 = vsel %vm3666, %v4829, %v4845
  %v4856 = vsel %vm3670, %v4829, %v4845
  %v4858 = vrot.slane %v4856, 2
  %v4861 = vsel %vm3666, %v4830, %v4846
  %v4862 = vsel %vm3670, %v4830, %v4846
  %v4864 = vrot.slane %v4862, 2
  %v4867 = vsel %vm3666, %v4831, %v4847
  %v4868 = vsel %vm3670, %v4831, %v4847
  %v4870 = vrot.slane %v4868, 2
  %v4873 = vsel %vm3666, %v4832, %v4848
  %v4874 = vsel %vm3670, %v4832, %v4848
  %v4876 = vrot.slane %v4874, 2
  %v4879 = vsel %vm3666, %v4833, %v4849
  %v4880 = vsel %vm3670, %v4833, %v4849
  %v4882 = vrot.slane %v4880, 2
  %v4885 = vsel %vm3666, %v4834, %v4850
  %v4886 = vsel %vm3670, %v4834, %v4850
  %v4888 = vrot.slane %v4886, 2
  %v4891 = vsel %vm3666, %v4835, %v4851
  %v4892 = vsel %vm3670, %v4835, %v4851
  %v4894 = vrot.slane %v4892, 2
  %v4897 = vsel %vm3666, %v4836, %v4852
  %v4898 = vsel %vm3670, %v4836, %v4852
  %v4900 = vrot.slane %v4898, 2
  %v4901 = vshrl.u32 %v4855, 16
  %v4903 = vrot.slane %v4901, 6
  %v4904 = vshll.u32 %v4855, 16
  %v4906 = vrot.slane %v4904, 7
  %v4907 = vor.u32 %v4903, %v4906
  %v4908 = vrot.slane %v4907, 2
  %v4910 = vshll.u32 %v4858, 16
  %v4912 = vrot.slane %v4910, 7
  %v4913 = vsel %vm3722, %v4908, %v4912
  %v4914 = vshrl.u32 %v4861, 16
  %v4916 = vrot.slane %v4914, 6
  %v4917 = vshll.u32 %v4861, 16
  %v4919 = vrot.slane %v4917, 7
  %v4920 = vor.u32 %v4916, %v4919
  %v4921 = vrot.slane %v4920, 2
  %v4923 = vshll.u32 %v4864, 16
  %v4925 = vrot.slane %v4923, 7
  %v4926 = vsel %vm3722, %v4921, %v4925
  %v4927 = vshrl.u32 %v4867, 16
  %v4929 = vrot.slane %v4927, 6
  %v4930 = vshll.u32 %v4867, 16
  %v4932 = vrot.slane %v4930, 7
  %v4933 = vor.u32 %v4929, %v4932
  %v4934 = vrot.slane %v4933, 2
  %v4936 = vshll.u32 %v4870, 16
  %v4938 = vrot.slane %v4936, 7
  %v4939 = vsel %vm3722, %v4934, %v4938
  %v4940 = vshrl.u32 %v4873, 16
  %v4942 = vrot.slane %v4940, 6
  %v4943 = vshll.u32 %v4873, 16
  %v4945 = vrot.slane %v4943, 7
  %v4946 = vor.u32 %v4942, %v4945
  %v4947 = vrot.slane %v4946, 2
  %v4949 = vshll.u32 %v4876, 16
  %v4951 = vrot.slane %v4949, 7
  %v4952 = vsel %vm3722, %v4947, %v4951
  %v4953 = vshrl.u32 %v4879, 16
  %v4955 = vrot.slane %v4953, 6
  %v4956 = vshll.u32 %v4879, 16
  %v4958 = vrot.slane %v4956, 7
  %v4959 = vor.u32 %v4955, %v4958
  %v4960 = vrot.slane %v4959, 2
  %v4962 = vshll.u32 %v4882, 16
  %v4964 = vrot.slane %v4962, 7
  %v4965 = vsel %vm3722, %v4960, %v4964
  %v4966 = vshrl.u32 %v4885, 16
  %v4968 = vrot.slane %v4966, 6
  %v4969 = vshll.u32 %v4885, 16
  %v4971 = vrot.slane %v4969, 7
  %v4972 = vor.u32 %v4968, %v4971
  %v4973 = vrot.slane %v4972, 2
  %v4975 = vshll.u32 %v4888, 16
  %v4977 = vrot.slane %v4975, 7
  %v4978 = vsel %vm3722, %v4973, %v4977
  %v4979 = vshrl.u32 %v4891, 16
  %v4981 = vrot.slane %v4979, 6
  %v4982 = vshll.u32 %v4891, 16
  %v4984 = vrot.slane %v4982, 7
  %v4985 = vor.u32 %v4981, %v4984
  %v4986 = vrot.slane %v4985, 2
  %v4988 = vshll.u32 %v4894, 16
  %v4990 = vrot.slane %v4988, 7
  %v4991 = vsel %vm3722, %v4986, %v4990
  %v4992 = vshrl.u32 %v4897, 16
  %v4994 = vrot.slane %v4992, 6
  %v4995 = vshll.u32 %v4897, 16
  %v4997 = vrot.slane %v4995, 7
  %v4998 = vor.u32 %v4994, %v4997
  %v4999 = vrot.slane %v4998, 2
  %v5001 = vshll.u32 %v4900, 16
  %v5003 = vrot.slane %v5001, 7
  %v5004 = vsel %vm3722, %v4999, %v5003
  %s5005 = scalar_lea.vmem %s4, 224
  %v5006 = vld [vmem:[%s5005] sm:$0xf]
  %v5007 = vld [vmem:[%s5005 + $0x4] sm:$0xf]
  %v5008 = vld [vmem:[%s5005 + $0x8] sm:$0xf]
  %v5009 = vld [vmem:[%s5005 + $0xc] sm:$0xf]
  %v5010 = vld [vmem:[%s5005 + $0x10] sm:$0xf]
  %v5011 = vld [vmem:[%s5005 + $0x14] sm:$0xf]
  %v5012 = vld [vmem:[%s5005 + $0x18] sm:$0xf]
  %v5013 = vld [vmem:[%s5005 + $0x1c] sm:$0xf]
  %5015 = vst [vmem:[#allocation1] ss:$4 sm:$0xff] %v4913
  %s5017 = scalar_lea.vmem [#allocation1], 1
  %5018 = vst [vmem:[%s5017] ss:$4 sm:$0xff] %v4926
  %s5020 = scalar_lea.vmem [#allocation1], 2
  %5021 = vst [vmem:[%s5020] ss:$4 sm:$0xff] %v4939
  %s5023 = scalar_lea.vmem [#allocation1], 3
  %5024 = vst [vmem:[%s5023] ss:$4 sm:$0xff] %v4952
  %s5026 = scalar_lea.vmem [#allocation1], 32
  %5027 = vst [vmem:[%s5026] ss:$4 sm:$0xff] %v4965
  %s5029 = scalar_lea.vmem [#allocation1], 33
  %5030 = vst [vmem:[%s5029] ss:$4 sm:$0xff] %v4978
  %s5032 = scalar_lea.vmem [#allocation1], 34
  %5033 = vst [vmem:[%s5032] ss:$4 sm:$0xff] %v4991
  %s5035 = scalar_lea.vmem [#allocation1], 35
  %5036 = vst [vmem:[%s5035] ss:$4 sm:$0xff] %v5004
  %v5037 = vld.sshfl [vmem:[#allocation1] sm:$0xff pattern:$0x73625140]
  %v5038 = vld.sshfl [vmem:[#allocation1 + $0x20] sm:$0xff pattern:$0x73625140]
  %v5047 = vunpack.c.l.b16 %v5006
  %v5048 = vunpack.c.l.b16 %v5007
  %v5049 = vunpack.c.l.b16 %v5008
  %v5050 = vunpack.c.l.b16 %v5009
  %v5051 = vunpack.c.l.b16 %v5010
  %v5052 = vunpack.c.l.b16 %v5011
  %v5053 = vunpack.c.l.b16 %v5012
  %v5054 = vunpack.c.l.b16 %v5013
  %v5055 = vpack.c.b16 %v5048, %v5047
  %v5056 = vpack.c.b16 %v5050, %v5049
  %v5057 = vpack.c.b16 %v5052, %v5051
  %v5058 = vpack.c.b16 %v5054, %v5053
  %v5063 = vsel %vm3349, %v5037, 0
  %v5065 = vsel %vm3349, %v5038, 0
  %5067 = vmatpush.bf16.msra.mxu0 0
  %5068 = vmatpush.bf16.msra.mxu0 0
  %5069 = vmatpush.bf16.msra.mxu0 0
  %5070 = vmatpush.bf16.msra.mxu0 0
  %5071 = vmatpush.bf16.msra.mxu0 %v5058
  %5072 = vmatpush.bf16.msra.mxu0 %v5057
  %5073 = vmatpush.bf16.msra.mxu0 %v5056
  %5074 = vmatpush.bf16.msra.mxu0 %v5055
  %5075 = vmatmul.bf16.gmra.mxu0 %v5063
  %v5076 = vpop.f32.mrf.mxu0
  %v5077 = vadd.f32 0.0, %v5076
  %v5078 = vpop.f32.mrf.mxu0
  %v5079 = vadd.f32 0.0, %v5078
  %5080 = vmatmul.bf16.gmra.mxu0 %v5065
  %v5081 = vpop.f32.mrf.mxu0
  %v5082 = vadd.f32 0.0, %v5081
  %v5083 = vpop.f32.mrf.mxu0
  %v5084 = vadd.f32 0.0, %v5083
  %5085 = vdwg.mxu0
  %v5086 = vadd.f32 %v4825, %v5077
  %v5087 = vadd.f32 %v4826, %v5079
  %v5088 = vadd.f32 %v4827, %v5082
  %v5089 = vadd.f32 %v4828, %v5084
  %v5090 = vld [vmem:[%s4735] sm:$0x6]
  %v5091 = vld [vmem:[%s4735 + $0x4] sm:$0x6]
  %v5092 = vld [vmem:[%s4735 + $0x8] sm:$0x6]
  %v5093 = vld [vmem:[%s4735 + $0xc] sm:$0x6]
  %v5094 = vld [vmem:[%s4735 + $0x18] sm:$0x6]
  %v5095 = vld [vmem:[%s4735 + $0x1c] sm:$0x6]
  %v5096 = vld [vmem:[%s4735 + $0x20] sm:$0x6]
  %v5097 = vld [vmem:[%s4735 + $0x24] sm:$0x6]
  %v5106 = vrot.slane %v5090, 2
  %v5107 = vrot.slane %v5091, 2
  %v5108 = vrot.slane %v5092, 2
  %v5109 = vrot.slane %v5093, 2
  %v5110 = vrot.slane %v5094, 2
  %v5111 = vrot.slane %v5095, 2
  %v5112 = vrot.slane %v5096, 2
  %v5113 = vrot.slane %v5097, 2
  %v5116 = vsel %vm3666, %v5090, %v5106
  %v5118 = vsel %vm3670, %v5090, %v5106
  %v5120 = vrot.slane %v5118, 2
  %v5123 = vsel %vm3666, %v5091, %v5107
  %v5125 = vsel %vm3670, %v5091, %v5107
  %v5127 = vrot.slane %v5125, 2
  %v5130 = vsel %vm3666, %v5092, %v5108
  %v5132 = vsel %vm3670, %v5092, %v5108
  %v5134 = vrot.slane %v5132, 2
  %v5137 = vsel %vm3666, %v5093, %v5109
  %v5139 = vsel %vm3670, %v5093, %v5109
  %v5141 = vrot.slane %v5139, 2
  %v5144 = vsel %vm3666, %v5094, %v5110
  %v5146 = vsel %vm3670, %v5094, %v5110
  %v5148 = vrot.slane %v5146, 2
  %v5151 = vsel %vm3666, %v5095, %v5111
  %v5153 = vsel %vm3670, %v5095, %v5111
  %v5155 = vrot.slane %v5153, 2
  %v5158 = vsel %vm3666, %v5096, %v5112
  %v5160 = vsel %vm3670, %v5096, %v5112
  %v5162 = vrot.slane %v5160, 2
  %v5165 = vsel %vm3666, %v5097, %v5113
  %v5167 = vsel %vm3670, %v5097, %v5113
  %v5169 = vrot.slane %v5167, 2
  %v5170 = vrot.slane %v5116, 7
  %v5171 = vrot.slane %v5170, 2
  %v5172 = vrot.slane %v5120, 7
  %v5173 = vsel %vm4066, %v5171, %v5172
  %v5174 = vrot.slane %v5123, 7
  %v5175 = vrot.slane %v5174, 2
  %v5176 = vrot.slane %v5127, 7
  %v5177 = vsel %vm4066, %v5175, %v5176
  %v5178 = vrot.slane %v5130, 7
  %v5179 = vrot.slane %v5178, 2
  %v5180 = vrot.slane %v5134, 7
  %v5181 = vsel %vm4066, %v5179, %v5180
  %v5182 = vrot.slane %v5137, 7
  %v5183 = vrot.slane %v5182, 2
  %v5184 = vrot.slane %v5141, 7
  %v5185 = vsel %vm4066, %v5183, %v5184
  %v5186 = vrot.slane %v5144, 7
  %v5187 = vrot.slane %v5186, 2
  %v5188 = vrot.slane %v5148, 7
  %v5189 = vsel %vm4066, %v5187, %v5188
  %v5190 = vrot.slane %v5151, 7
  %v5191 = vrot.slane %v5190, 2
  %v5192 = vrot.slane %v5155, 7
  %v5193 = vsel %vm4066, %v5191, %v5192
  %v5194 = vrot.slane %v5158, 7
  %v5195 = vrot.slane %v5194, 2
  %v5196 = vrot.slane %v5162, 7
  %v5197 = vsel %vm4066, %v5195, %v5196
  %v5198 = vrot.slane %v5165, 7
  %v5199 = vrot.slane %v5198, 2
  %v5200 = vrot.slane %v5169, 7
  %v5201 = vsel %vm4066, %v5199, %v5200
  %s5202 = scalar_lea.vmem %s4, 256
  %v5203 = vld [vmem:[%s5202] sm:$0xf]
  %v5204 = vld [vmem:[%s5202 + $0x4] sm:$0xf]
  %v5205 = vld [vmem:[%s5202 + $0x8] sm:$0xf]
  %v5206 = vld [vmem:[%s5202 + $0xc] sm:$0xf]
  %v5207 = vld [vmem:[%s5202 + $0x10] sm:$0xf]
  %v5208 = vld [vmem:[%s5202 + $0x14] sm:$0xf]
  %v5209 = vld [vmem:[%s5202 + $0x18] sm:$0xf]
  %v5210 = vld [vmem:[%s5202 + $0x1c] sm:$0xf]
  %5212 = vst [vmem:[#allocation1] ss:$4 sm:$0xff] %v5173
  %s5214 = scalar_lea.vmem [#allocation1], 1
  %5215 = vst [vmem:[%s5214] ss:$4 sm:$0xff] %v5177
  %s5217 = scalar_lea.vmem [#allocation1], 2
  %5218 = vst [vmem:[%s5217] ss:$4 sm:$0xff] %v5181
  %s5220 = scalar_lea.vmem [#allocation1], 3
  %5221 = vst [vmem:[%s5220] ss:$4 sm:$0xff] %v5185
  %s5223 = scalar_lea.vmem [#allocation1], 32
  %5224 = vst [vmem:[%s5223] ss:$4 sm:$0xff] %v5189
  %s5226 = scalar_lea.vmem [#allocation1], 33
  %5227 = vst [vmem:[%s5226] ss:$4 sm:$0xff] %v5193
  %s5229 = scalar_lea.vmem [#allocation1], 34
  %5230 = vst [vmem:[%s5229] ss:$4 sm:$0xff] %v5197
  %s5232 = scalar_lea.vmem [#allocation1], 35
  %5233 = vst [vmem:[%s5232] ss:$4 sm:$0xff] %v5201
  %v5234 = vld.sshfl [vmem:[#allocation1] sm:$0xff pattern:$0x73625140]
  %v5235 = vld.sshfl [vmem:[#allocation1 + $0x20] sm:$0xff pattern:$0x73625140]
  %v5244 = vunpack.c.l.b16 %v5203
  %v5245 = vunpack.c.l.b16 %v5204
  %v5246 = vunpack.c.l.b16 %v5205
  %v5247 = vunpack.c.l.b16 %v5206
  %v5248 = vunpack.c.l.b16 %v5207
  %v5249 = vunpack.c.l.b16 %v5208
  %v5250 = vunpack.c.l.b16 %v5209
  %v5251 = vunpack.c.l.b16 %v5210
  %v5252 = vpack.c.b16 %v5245, %v5244
  %v5253 = vpack.c.b16 %v5247, %v5246
  %v5254 = vpack.c.b16 %v5249, %v5248
  %v5255 = vpack.c.b16 %v5251, %v5250
  %v5260 = vsel %vm3349, %v5234, 0
  %v5262 = vsel %vm3349, %v5235, 0
  %5264 = vmatpush.bf16.msra.mxu0 0
  %5265 = vmatpush.bf16.msra.mxu0 0
  %5266 = vmatpush.bf16.msra.mxu0 0
  %5267 = vmatpush.bf16.msra.mxu0 0
  %5268 = vmatpush.bf16.msra.mxu0 %v5255
  %5269 = vmatpush.bf16.msra.mxu0 %v5254
  %5270 = vmatpush.bf16.msra.mxu0 %v5253
  %5271 = vmatpush.bf16.msra.mxu0 %v5252
  %5272 = vmatmul.bf16.gmra.mxu0 %v5260
  %v5273 = vpop.f32.mrf.mxu0
  %v5274 = vadd.f32 0.0, %v5273
  %v5275 = vpop.f32.mrf.mxu0
  %v5276 = vadd.f32 0.0, %v5275
  %5277 = vmatmul.bf16.gmra.mxu0 %v5262
  %v5278 = vpop.f32.mrf.mxu0
  %v5279 = vadd.f32 0.0, %v5278
  %v5280 = vpop.f32.mrf.mxu0
  %v5281 = vadd.f32 0.0, %v5280
  %5282 = vdwg.mxu0
  %v5283 = vadd.f32 %v5086, %v5274
  %v5284 = vadd.f32 %v5087, %v5276
  %v5285 = vadd.f32 %v5088, %v5279
  %v5286 = vadd.f32 %v5089, %v5281
  %vm5287 = vcmask 261120
  %v5289 = vsel %vm5287, 1.0, 0
  %5291 = vmatpush.msra.mxu0 0.0
  %5292 = vmatpush.msra.mxu0 0.0
  %5293 = vmatpush.msra.mxu0 0.0
  %5294 = vmatpush.msra.mxu0 0.0
  %5295 = vmatpush.msra.mxu0 0.0
  %5296 = vmatpush.msra.mxu0 0.0
  %5297 = vmatpush.msra.mxu0 0.0
  %5298 = vmatpush.msra.mxu0 0.0
  %5299 = vmatpush.msra.mxu0 0.0
  %5300 = vmatpush.msra.mxu0 0.0
  %5301 = vmatpush.msra.mxu0 0.0
  %5302 = vmatpush.msra.mxu0 0.0
  %5303 = vmatpush.msra.mxu0 %v5286
  %5304 = vmatpush.msra.mxu0 %v5285
  %5305 = vmatpush.msra.mxu0 %v5284
  %5306 = vmatpush.msra.mxu0 %v5283
  %5307 = vmatmul.f32.gmra.mxu0 %v5289
  %v5308 = vpop.f32.mrf.mxu0
  %v5309 = vadd.f32 0.0, %v5308
  %5310 = vdwg.mxu0
  %v5311 = vmul.f32 %v5283, %v5283
  %v5312 = vmul.f32 %v5284, %v5284
  %v5313 = vmul.f32 %v5285, %v5285
  %v5314 = vmul.f32 %v5286, %v5286
  %5315 = vmatpush.msra.mxu0 0.0
  %5316 = vmatpush.msra.mxu0 0.0
  %5317 = vmatpush.msra.mxu0 0.0
  %5318 = vmatpush.msra.mxu0 0.0
  %5319 = vmatpush.msra.mxu0 0.0
  %5320 = vmatpush.msra.mxu0 0.0
  %5321 = vmatpush.msra.mxu0 0.0
  %5322 = vmatpush.msra.mxu0 0.0
  %5323 = vmatpush.msra.mxu0 0.0
  %5324 = vmatpush.msra.mxu0 0.0
  %5325 = vmatpush.msra.mxu0 0.0
  %5326 = vmatpush.msra.mxu0 0.0
  %5327 = vmatpush.msra.mxu0 %v5314
  %5328 = vmatpush.msra.mxu0 %v5313
  %5329 = vmatpush.msra.mxu0 %v5312
  %5330 = vmatpush.msra.mxu0 %v5311
  %5331 = vmatmul.f32.gmra.mxu0 %v5289
  %v5332 = vpop.f32.mrf.mxu0
  %v5333 = vadd.f32 0.0, %v5332
  %5334 = vdwg.mxu0
  %v5335 = vmul.f32 %v5309, 0.03125
  %v5336 = vmul.f32 %v5333, 0.03125
  %v5337 = vmul.f32 %v5335, %v5335
  %v5338 = vsub.f32 %v5336, %v5337
  %v5339 = vld [vmem:[%s5] sm:$0x1]
  %v5340 = vadd.f32 %v5338, 1e-05
  %v5341 = vrsqrt.pop %v5340
  %v5342 = vmul.f32 %v5341, %v5340
  %v5343 = vmul.f32 %v5342, %v5341
  %v5344 = vmul.f32 0.5, %v5343
  %v5345 = vsub.f32 1.5, %v5344
  %v5346 = vmul.f32 %v5341, %v5345
  %vm5347 = vweird.f32 %v5340
  %vm5348 = vweird.f32 %v5341
  %vm5349 = vmor %vm5347, %vm5348
  %v5350 = vsel %vm5349, %v5341, %v5346
  %v5351 = vmul.f32 %v5339, %v5350
  %v5352 = vld [vmem:[%s6] sm:$0x1]
  %v5353 = vmul.f32 %v5335, %v5351
  %v5354 = vsub.f32 %v5352, %v5353
  %v5356 = vperm.slane %v5351, 0
  %v5358 = vmul.f32 %v5283, %v5356
  %v5359 = vmul.f32 %v5284, %v5356
  %v5360 = vmul.f32 %v5285, %v5356
  %v5361 = vmul.f32 %v5286, %v5356
  %v5363 = vperm.slane %v5354, 0
  %v5365 = vadd.f32 %v5358, %v5363
  %v5366 = vadd.f32 %v5359, %v5363
  %v5367 = vadd.f32 %v5360, %v5363
  %v5368 = vadd.f32 %v5361, %v5363
  %v5369 = vmax.f32 %v5365, 0.0
  %v5370 = vmax.f32 %v5366, 0.0
  %v5371 = vmax.f32 %v5367, 0.0
  %v5372 = vmax.f32 %v5368, 0.0
  %v5377 = vrot.slane %v5369, 2
  %v5378 = vrot.slane %v5369, 4
  %v5379 = vrot.slane %v5369, 6
  %v5380 = vrot.slane %v5370, 2
  %v5381 = vrot.slane %v5370, 4
  %v5382 = vrot.slane %v5370, 6
  %v5383 = vrot.slane %v5371, 2
  %v5384 = vrot.slane %v5371, 4
  %v5385 = vrot.slane %v5371, 6
  %v5386 = vrot.slane %v5372, 2
  %v5387 = vrot.slane %v5372, 4
  %v5388 = vrot.slane %v5372, 6
  %v5401 = vsel %vm2900, %v5369, -inf
  %v5402 = vrot.slane %v5401, 4
  %v5403 = vmax.f32 %v5401, %v5402
  %v5404 = vrot.slane %v5403, 2
  %v5405 = vmax.f32 %v5403, %v5404
  %v5406 = vrot.slane %v5405, 1
  %v5407 = vmax.f32 %v5405, %v5406
  %v5408 = vsel %vm2900, %v5377, -inf
  %v5409 = vrot.slane %v5408, 4
  %v5410 = vmax.f32 %v5408, %v5409
  %v5411 = vrot.slane %v5410, 2
  %v5412 = vmax.f32 %v5410, %v5411
  %v5413 = vrot.slane %v5412, 1
  %v5414 = vmax.f32 %v5412, %v5413
  %v5415 = vsel %vm2900, %v5378, -inf
  %v5416 = vrot.slane %v5415, 4
  %v5417 = vmax.f32 %v5415, %v5416
  %v5418 = vrot.slane %v5417, 2
  %v5419 = vmax.f32 %v5417, %v5418
  %v5420 = vrot.slane %v5419, 1
  %v5421 = vmax.f32 %v5419, %v5420
  %v5422 = vsel %vm2900, %v5379, -inf
  %v5423 = vrot.slane %v5422, 4
  %v5424 = vmax.f32 %v5422, %v5423
  %v5425 = vrot.slane %v5424, 2
  %v5426 = vmax.f32 %v5424, %v5425
  %v5427 = vrot.slane %v5426, 1
  %v5428 = vmax.f32 %v5426, %v5427
  %v5429 = vsel %vm2900, %v5370, -inf
  %v5430 = vrot.slane %v5429, 4
  %v5431 = vmax.f32 %v5429, %v5430
  %v5432 = vrot.slane %v5431, 2
  %v5433 = vmax.f32 %v5431, %v5432
  %v5434 = vrot.slane %v5433, 1
  %v5435 = vmax.f32 %v5433, %v5434
  %v5436 = vsel %vm2900, %v5380, -inf
  %v5437 = vrot.slane %v5436, 4
  %v5438 = vmax.f32 %v5436, %v5437
  %v5439 = vrot.slane %v5438, 2
  %v5440 = vmax.f32 %v5438, %v5439
  %v5441 = vrot.slane %v5440, 1
  %v5442 = vmax.f32 %v5440, %v5441
  %v5443 = vsel %vm2900, %v5381, -inf
  %v5444 = vrot.slane %v5443, 4
  %v5445 = vmax.f32 %v5443, %v5444
  %v5446 = vrot.slane %v5445, 2
  %v5447 = vmax.f32 %v5445, %v5446
  %v5448 = vrot.slane %v5447, 1
  %v5449 = vmax.f32 %v5447, %v5448
  %v5450 = vsel %vm2900, %v5382, -inf
  %v5451 = vrot.slane %v5450, 4
  %v5452 = vmax.f32 %v5450, %v5451
  %v5453 = vrot.slane %v5452, 2
  %v5454 = vmax.f32 %v5452, %v5453
  %v5455 = vrot.slane %v5454, 1
  %v5456 = vmax.f32 %v5454, %v5455
  %v5457 = vsel %vm2900, %v5371, -inf
  %v5458 = vrot.slane %v5457, 4
  %v5459 = vmax.f32 %v5457, %v5458
  %v5460 = vrot.slane %v5459, 2
  %v5461 = vmax.f32 %v5459, %v5460
  %v5462 = vrot.slane %v5461, 1
  %v5463 = vmax.f32 %v5461, %v5462
  %v5464 = vsel %vm2900, %v5383, -inf
  %v5465 = vrot.slane %v5464, 4
  %v5466 = vmax.f32 %v5464, %v5465
  %v5467 = vrot.slane %v5466, 2
  %v5468 = vmax.f32 %v5466, %v5467
  %v5469 = vrot.slane %v5468, 1
  %v5470 = vmax.f32 %v5468, %v5469
  %v5471 = vsel %vm2900, %v5384, -inf
  %v5472 = vrot.slane %v5471, 4
  %v5473 = vmax.f32 %v5471, %v5472
  %v5474 = vrot.slane %v5473, 2
  %v5475 = vmax.f32 %v5473, %v5474
  %v5476 = vrot.slane %v5475, 1
  %v5477 = vmax.f32 %v5475, %v5476
  %v5478 = vsel %vm2900, %v5385, -inf
  %v5479 = vrot.slane %v5478, 4
  %v5480 = vmax.f32 %v5478, %v5479
  %v5481 = vrot.slane %v5480, 2
  %v5482 = vmax.f32 %v5480, %v5481
  %v5483 = vrot.slane %v5482, 1
  %v5484 = vmax.f32 %v5482, %v5483
  %v5485 = vsel %vm2900, %v5372, -inf
  %v5486 = vrot.slane %v5485, 4
  %v5487 = vmax.f32 %v5485, %v5486
  %v5488 = vrot.slane %v5487, 2
  %v5489 = vmax.f32 %v5487, %v5488
  %v5490 = vrot.slane %v5489, 1
  %v5491 = vmax.f32 %v5489, %v5490
  %v5492 = vsel %vm2900, %v5386, -inf
  %v5493 = vrot.slane %v5492, 4
  %v5494 = vmax.f32 %v5492, %v5493
  %v5495 = vrot.slane %v5494, 2
  %v5496 = vmax.f32 %v5494, %v5495
  %v5497 = vrot.slane %v5496, 1
  %v5498 = vmax.f32 %v5496, %v5497
  %v5499 = vsel %vm2900, %v5387, -inf
  %v5500 = vrot.slane %v5499, 4
  %v5501 = vmax.f32 %v5499, %v5500
  %v5502 = vrot.slane %v5501, 2
  %v5503 = vmax.f32 %v5501, %v5502
  %v5504 = vrot.slane %v5503, 1
  %v5505 = vmax.f32 %v5503, %v5504
  %v5506 = vsel %vm2900, %v5388, -inf
  %v5507 = vrot.slane %v5506, 4
  %v5508 = vmax.f32 %v5506, %v5507
  %v5509 = vrot.slane %v5508, 2
  %v5510 = vmax.f32 %v5508, %v5509
  %v5511 = vrot.slane %v5510, 1
  %v5512 = vmax.f32 %v5510, %v5511
  %v5513 = vsel %vm3349, %v5407, -inf
  %v5514 = vsel %vm3349, %v5421, -inf
  %v5515 = vmax.f32 %v5513, %v5514
  %v5516 = vsel %vm3349, %v5414, -inf
  %v5517 = vsel %vm3349, %v5428, -inf
  %v5518 = vmax.f32 %v5516, %v5517
  %v5519 = vsel %vm3349, %v5435, -inf
  %v5520 = vsel %vm3349, %v5449, -inf
  %v5521 = vmax.f32 %v5519, %v5520
  %v5522 = vsel %vm3349, %v5442, -inf
  %v5523 = vsel %vm3349, %v5456, -inf
  %v5524 = vmax.f32 %v5522, %v5523
  %v5525 = vsel %vm3349, %v5463, -inf
  %v5526 = vsel %vm3349, %v5477, -inf
  %v5527 = vmax.f32 %v5525, %v5526
  %v5528 = vsel %vm3349, %v5470, -inf
  %v5529 = vsel %vm3349, %v5484, -inf
  %v5530 = vmax.f32 %v5528, %v5529
  %v5531 = vsel %vm3349, %v5491, -inf
  %v5532 = vsel %vm3349, %v5505, -inf
  %v5533 = vmax.f32 %v5531, %v5532
  %v5534 = vsel %vm3349, %v5498, -inf
  %v5535 = vsel %vm3349, %v5512, -inf
  %v5536 = vmax.f32 %v5534, %v5535
  %v5537 = vld [vmem:[%s7] sm:$0xff]
  %v5538 = vld [vmem:[%s7 + $0x8] sm:$0xff]
  %v5539 = vld [vmem:[%s7 + $0x10] sm:$0xff]
  %v5540 = vld [vmem:[%s7 + $0x18] sm:$0xff]
  %v5541 = vld [vmem:[%s7 + $0x20] sm:$0xff]
  %v5542 = vld [vmem:[%s7 + $0x28] sm:$0xff]
  %v5543 = vld [vmem:[%s7 + $0x30] sm:$0xff]
  %v5544 = vld [vmem:[%s7 + $0x38] sm:$0xff]
  %s5545 = scalar_lea.vmem %s7, 64
  %v5546 = vld [vmem:[%s5545] sm:$0xff]
  %v5547 = vld [vmem:[%s5545 + $0x8] sm:$0xff]
  %v5548 = vld [vmem:[%s5545 + $0x10] sm:$0xff]
  %v5549 = vld [vmem:[%s5545 + $0x18] sm:$0xff]
  %v5550 = vld [vmem:[%s5545 + $0x20] sm:$0xff]
  %v5551 = vld [vmem:[%s5545 + $0x28] sm:$0xff]
  %v5552 = vld [vmem:[%s5545 + $0x30] sm:$0xff]
  %v5553 = vld [vmem:[%s5545 + $0x38] sm:$0xff]
  %vm5556 = vcmask 1041409
  %v5557 = vsel %vm5556, %v5530, %v5518
  %v5558 = vsel %vm3349, %v5557, 0
  %5560 = vmatpush.msra.mxu0 0.0
  %5561 = vmatpush.msra.mxu0 0.0
  %5562 = vmatpush.msra.mxu0 0.0
  %5563 = vmatpush.msra.mxu0 0.0
  %5564 = vmatpush.msra.mxu0 0.0
  %5565 = vmatpush.msra.mxu0 0.0
  %5566 = vmatpush.msra.mxu0 0.0
  %5567 = vmatpush.msra.mxu0 0.0
  %5568 = vmatpush.msra.mxu0 %v5553
  %5569 = vmatpush.msra.mxu0 %v5552
  %5570 = vmatpush.msra.mxu0 %v5551
  %5571 = vmatpush.msra.mxu0 %v5550
  %5572 = vmatpush.msra.mxu0 %v5549
  %5573 = vmatpush.msra.mxu0 %v5548
  %5574 = vmatpush.msra.mxu0 %v5547
  %5575 = vmatpush.msra.mxu0 %v5546
  %5576 = vmatmul.f32.gmra.mxu0 %v5558
  %v5577 = vpop.f32.mrf.mxu0
  %v5578 = vadd.f32 0.0, %v5577
  %5579 = vdwg.mxu0
  %v5582 = vsel %vm5556, %v5527, %v5515
  %v5583 = vsel %vm3349, %v5582, 0
  %5585 = vmatpush.msra.mxu0 0.0
  %5586 = vmatpush.msra.mxu0 0.0
  %5587 = vmatpush.msra.mxu0 0.0
  %5588 = vmatpush.msra.mxu0 0.0
  %5589 = vmatpush.msra.mxu0 0.0
  %5590 = vmatpush.msra.mxu0 0.0
  %5591 = vmatpush.msra.mxu0 0.0
  %5592 = vmatpush.msra.mxu0 0.0
  %5593 = vmatpush.msra.mxu0 %v5544
  %5594 = vmatpush.msra.mxu0 %v5543
  %5595 = vmatpush.msra.mxu0 %v5542
  %5596 = vmatpush.msra.mxu0 %v5541
  %5597 = vmatpush.msra.mxu0 %v5540
  %5598 = vmatpush.msra.mxu0 %v5539
  %5599 = vmatpush.msra.mxu0 %v5538
  %5600 = vmatpush.msra.mxu0 %v5537
  %5601 = vmatmul.f32.gmra.mxu0 %v5583
  %v5602 = vpop.f32.mrf.mxu0
  %v5603 = vadd.f32 %v5578, %v5602
  %5604 = vdwg.mxu0
  %s5605 = scalar_lea.vmem %s7, 128
  %v5606 = vld [vmem:[%s5605] sm:$0xff]
  %v5607 = vld [vmem:[%s5605 + $0x8] sm:$0xff]
  %v5608 = vld [vmem:[%s5605 + $0x10] sm:$0xff]
  %v5609 = vld [vmem:[%s5605 + $0x18] sm:$0xff]
  %v5610 = vld [vmem:[%s5605 + $0x20] sm:$0xff]
  %v5611 = vld [vmem:[%s5605 + $0x28] sm:$0xff]
  %v5612 = vld [vmem:[%s5605 + $0x30] sm:$0xff]
  %v5613 = vld [vmem:[%s5605 + $0x38] sm:$0xff]
  %v5616 = vsel %vm5556, %v5533, %v5521
  %v5617 = vsel %vm3349, %v5616, 0
  %5619 = vmatpush.msra.mxu0 0.0
  %5620 = vmatpush.msra.mxu0 0.0
  %5621 = vmatpush.msra.mxu0 0.0
  %5622 = vmatpush.msra.mxu0 0.0
  %5623 = vmatpush.msra.mxu0 0.0
  %5624 = vmatpush.msra.mxu0 0.0
  %5625 = vmatpush.msra.mxu0 0.0
  %5626 = vmatpush.msra.mxu0 0.0
  %5627 = vmatpush.msra.mxu0 %v5613
  %5628 = vmatpush.msra.mxu0 %v5612
  %5629 = vmatpush.msra.mxu0 %v5611
  %5630 = vmatpush.msra.mxu0 %v5610
  %5631 = vmatpush.msra.mxu0 %v5609
  %5632 = vmatpush.msra.mxu0 %v5608
  %5633 = vmatpush.msra.mxu0 %v5607
  %5634 = vmatpush.msra.mxu0 %v5606
  %5635 = vmatmul.f32.gmra.mxu0 %v5617
  %v5636 = vpop.f32.mrf.mxu0
  %v5637 = vadd.f32 0.0, %v5636
  %5638 = vdwg.mxu0
  %v5639 = vadd.f32 %v5603, %v5637
  %s5640 = scalar_lea.vmem %s7, 192
  %v5641 = vld [vmem:[%s5640] sm:$0xff]
  %v5642 = vld [vmem:[%s5640 + $0x8] sm:$0xff]
  %v5643 = vld [vmem:[%s5640 + $0x10] sm:$0xff]
  %v5644 = vld [vmem:[%s5640 + $0x18] sm:$0xff]
  %v5645 = vld [vmem:[%s5640 + $0x20] sm:$0xff]
  %v5646 = vld [vmem:[%s5640 + $0x28] sm:$0xff]
  %v5647 = vld [vmem:[%s5640 + $0x30] sm:$0xff]
  %v5648 = vld [vmem:[%s5640 + $0x38] sm:$0xff]
  %v5651 = vsel %vm5556, %v5536, %v5524
  %v5652 = vsel %vm3349, %v5651, 0
  %5654 = vmatpush.msra.mxu0 0.0
  %5655 = vmatpush.msra.mxu0 0.0
  %5656 = vmatpush.msra.mxu0 0.0
  %5657 = vmatpush.msra.mxu0 0.0
  %5658 = vmatpush.msra.mxu0 0.0
  %5659 = vmatpush.msra.mxu0 0.0
  %5660 = vmatpush.msra.mxu0 0.0
  %5661 = vmatpush.msra.mxu0 0.0
  %5662 = vmatpush.msra.mxu0 %v5648
  %5663 = vmatpush.msra.mxu0 %v5647
  %5664 = vmatpush.msra.mxu0 %v5646
  %5665 = vmatpush.msra.mxu0 %v5645
  %5666 = vmatpush.msra.mxu0 %v5644
  %5667 = vmatpush.msra.mxu0 %v5643
  %5668 = vmatpush.msra.mxu0 %v5642
  %5669 = vmatpush.msra.mxu0 %v5641
  %5670 = vmatmul.f32.gmra.mxu0 %v5652
  %v5671 = vpop.f32.mrf.mxu0
  %v5672 = vadd.f32 0.0, %v5671
  %5673 = vdwg.mxu0
  %v5674 = vadd.f32 %v5639, %v5672
  %v5675 = vld [vmem:[%s8] sm:$0x1]
  %v5677 = vperm.slane %v5675, 0
  %v5679 = vadd.f32 %v5674, %v5677
  %v5680 = vmax.f32 %v5679, 0.0
  %v5681 = vld [vmem:[%s9] sm:$0x1]
  %v5683 = vperm.slane %v5681, 0
  %v5685 = vmul.f32 %v5680, %v5683
  %vm5686 = vcmask 58368
  %v5687 = vsel %vm5686, %v5685, 0.0
  %5688 = vadd.xlane.f32.xlu0 %v5687
  %v5689 = vpop.xlane.xlu0 %5688
  %v5690 = vld [vmem:[#allocation3] sm:$0x1]
  %v5692 = vperm.slane %v5690, 0
  %v5694 = vadd.f32 %v5689, %v5692
  %v5695 = vsub.f32 0.0, %v5694
  %v5696 = vmul.f32 %v5695, 1.442695
  %v5697 = vpow.pop %v5696
  %v5698 = vadd.f32 %v5697, 1.0
  %v5699 = vrcp.pop %v5698
  %vm5700 = vcmask 1024
  %5701 = vst.msk [vmem:[%s11] sm:$0x3] %vm5700, %v5699
  // Predicated region
  $region46: #{relation_network_forward.1} parent=0 // pred_check
    _
  $region47: #{relation_network_forward.1} parent=0 // pred_check_branch
    %5703 = sbr.rel (0) target = $region49
  $region48: #{relation_network_forward.1} parent=0 // pred_region
    _
  $region49: #{relation_network_forward.1} parent=0 // pred_fallthru
    _
  // Predicated region
  $region50: #{relation_network_forward.1} parent=0 // pred_check
    _
  $region51: #{relation_network_forward.1} parent=0 // pred_check_branch
    %5705 = sbr.rel (0) target = $region53
  $region52: #{relation_network_forward.1} parent=0 // pred_region
    _
  $region53: #{relation_network_forward.1} parent=0 // pred_fallthru
    _

</llo_original>
